<compile_context>
chip_gen: v7x
topology: tpu7x:2x2x1
jax: 0.10.0
libtpu: 0.0.40
codegen_flags: <defaults>
</compile_context>

<pallas_src>
import functools
import math

import jax
import jax.numpy as jnp
from jax.experimental import pallas as pl
from jax.experimental.pallas import tpu as pltpu


# ----------------------------------------------------------------------------
# Fused encoder stack (+ label-wise attention epilogue)
# ----------------------------------------------------------------------------

def _enc_stack_kernel(x0_ref, in_w, in_b, out_w, out_b,
                      ln1_g, ln1_b, ff1_w, ff1_b, ff2_w, ff2_b,
                      ln2_g, ln2_b, awt_ref, abt_ref,
                      u_ref, h_scr, *, nhead, eps, n_layers):
    """Grid = (modality, layer).  Applies one post-norm TransformerEncoderLayer
    per step to the VMEM-resident activation; at the last layer step computes
    the label-wise attention (softmax over the batch dim) and writes u."""
    m = pl.program_id(0)
    l = pl.program_id(1)
    n_l = jnp.where(m == 0, n_layers[0], n_layers[1])

    B, S, D = h_scr.shape
    BS = B * S
    Dh = D // nhead
    scale = 1.0 / math.sqrt(Dh)

    # --- prologue: load the input-projected activation for this modality -----
    @pl.when(l == 0)
    def _():
        h_scr[...] = x0_ref[0].astype(jnp.float32)

    # --- one transformer layer (skipped for padded layers of the short stack) -
    @pl.when(l < n_l)
    def _():
        x2 = h_scr[...].reshape(BS, D)                       # (B*S, D) f32
        xb = x2.astype(jnp.bfloat16)

        qkv = jnp.dot(xb, in_w[0, 0],
                      preferred_element_type=jnp.float32) + in_b[0, 0]
        q = qkv[:, :D]
        k = qkv[:, D:2 * D]
        v = qkv[:, 2 * D:]

        ow = out_w[0, 0]                                     # (D, D) bf16
        attn = None
        for h in range(nhead):
            lo = h * Dh
            qh = q[:, lo:lo + Dh].reshape(B, S, Dh).astype(jnp.bfloat16)
            kh = k[:, lo:lo + Dh].reshape(B, S, Dh).astype(jnp.bfloat16)
            vh = v[:, lo:lo + Dh].reshape(B, S, Dh).astype(jnp.bfloat16)
            s = jnp.einsum('bqd,bkd->bqk', qh, kh,
                           preferred_element_type=jnp.float32) * scale
            s = s - jnp.max(s, axis=-1, keepdims=True)
            p = jnp.exp(s)
            p = p / jnp.sum(p, axis=-1, keepdims=True)       # exact, f32
            oh = jnp.einsum('bqk,bkd->bqd', p.astype(jnp.bfloat16), vh,
                            preferred_element_type=jnp.float32)
            # Fold the output projection into a per-head accumulate.
            contrib = jnp.dot(oh.reshape(BS, Dh).astype(jnp.bfloat16),
                              ow[lo:lo + Dh, :],
                              preferred_element_type=jnp.float32)
            attn = contrib if attn is None else attn + contrib
        attn = attn + out_b[0, 0]

        def ln(val, g, b):
            mu = jnp.mean(val, axis=-1, keepdims=True)
            var = jnp.mean((val - mu) ** 2, axis=-1, keepdims=True)
            return (val - mu) * jax.lax.rsqrt(var + eps) * g + b

        y = ln(x2 + attn, ln1_g[0, 0], ln1_b[0, 0])
        f = jnp.maximum(
            jnp.dot(y.astype(jnp.bfloat16), ff1_w[0, 0],
                    preferred_element_type=jnp.float32) + ff1_b[0, 0], 0.0)
        f = jnp.dot(f.astype(jnp.bfloat16), ff2_w[0, 0],
                    preferred_element_type=jnp.float32) + ff2_b[0, 0]
        z = ln(y + f, ln2_g[0, 0], ln2_b[0, 0])
        h_scr[...] = z.reshape(B, S, D)

    # --- epilogue: label-wise attention while h is still in VMEM -------------
    # Matches PyTorch: attn = softmax(Linear(h), dim=1) on (S, B, N) -> softmax
    # couples examples across the batch; u = einsum('sbd,sbn->bnd', h, attn).
    @pl.when(l == pl.num_programs(1) - 1)
    def _():
        h = h_scr[...]                                       # (B, S, D) f32
        awt = awt_ref[...]                                   # (N, D) bf16
        abt = abt_ref[...]                                   # (N, 1) f32

        logits = []
        for b in range(B):                                   # (N, S) per batch
            hb = h[b].astype(jnp.bfloat16)
            lb = jax.lax.dot_general(awt, hb, (((1,), (1,)), ((), ())),
                                     preferred_element_type=jnp.float32) + abt
            logits.append(lb)

        mmax = logits[0]
        for b in range(1, B):
            mmax = jnp.maximum(mmax, logits[b])
        es = [jnp.exp(lb - mmax) for lb in logits]
        denom = es[0]
        for b in range(1, B):
            denom = denom + es[b]
        inv = 1.0 / denom                                    # exact, f32

        for b in range(B):
            attn_t = (es[b] * inv).astype(jnp.bfloat16)      # (N, S)
            hb = h[b].astype(jnp.bfloat16)
            u_b = jax.lax.dot_general(attn_t, hb, (((1,), (0,)), ((), ())),
                                      preferred_element_type=jnp.float32)
            u_ref[0, b] = u_b                                # (N, D)


def encoder_stacks(x0, ep, attn_wt, attn_bt, *, nhead, n_layers):
    """x0: (2, B, S, D) input-projected activations for both modalities.
    Returns u: (2, B, N_pad, D)."""
    _, B, S, D = x0.shape
    max_l = ep["in_w"].shape[1]
    N = attn_wt.shape[0]
    kernel = functools.partial(_enc_stack_kernel, nhead=nhead, eps=1e-5,
                               n_layers=n_layers)

    def wspec(shape):                     # per-(modality, layer) weight block
        nd = len(shape)
        return pl.BlockSpec((1, 1) + shape, lambda m, l, n=nd: (m, l) + (0,) * n)

    def cspec(shape):                     # constant (shared) block
        return pl.BlockSpec(shape, lambda m, l, n=len(shape): (0,) * n)

    return pl.pallas_call(
        kernel,
        out_shape=jax.ShapeDtypeStruct((2, B, N, D), jnp.float32),
        grid=(2, max_l),
        in_specs=[
            pl.BlockSpec((1, B, S, D), lambda m, l: (m, 0, 0, 0)),
            wspec((D, 3 * D)), wspec((1, 3 * D)),
            wspec((D, D)), wspec((1, D)),
            wspec((1, D)), wspec((1, D)),
            wspec((D, 4 * D)), wspec((1, 4 * D)),
            wspec((4 * D, D)), wspec((1, D)),
            wspec((1, D)), wspec((1, D)),
            cspec((N, D)), cspec((N, 1)),
        ],
        out_specs=pl.BlockSpec((1, B, N, D), lambda m, l: (m, 0, 0, 0)),
        scratch_shapes=[pltpu.VMEM((B, S, D), jnp.float32)],
        compiler_params=pltpu.CompilerParams(
            dimension_semantics=("parallel", "arbitrary")),
    )(x0, ep["in_w"], ep["in_b"], ep["out_w"], ep["out_b"],
      ep["ln1_g"], ep["ln1_b"], ep["ff1_w"], ep["ff1_b"],
      ep["ff2_w"], ep["ff2_b"], ep["ln2_g"], ep["ln2_b"],
      attn_wt, attn_bt)


# ----------------------------------------------------------------------------
# DualContrastiveRecon (output-relevant path) + cross-attention fusion
# ----------------------------------------------------------------------------

def _recon_ca_kernel(u_ref,
                     ew1_w, ew1_b, ew2_w, ew2_b,
                     es1_w, es1_b, es2_w, es2_b,
                     dw_w, dw_b, ds_w, ds_b,
                     s2w_w, s2w_b, w2s_w, w2s_b,
                     wq, bq, wk, bk, wv, bv, wo, bo,
                     o_ref, *, scale, n_valid):
    _, B, N, D = u_ref.shape
    BN = B * N
    uw = u_ref[0].reshape(BN, D)                             # (B*N, D) f32
    us = u_ref[1].reshape(BN, D)

    def dense(x, w_ref, b_ref, relu=False):
        y = jnp.dot(x.astype(jnp.bfloat16), w_ref[...],
                    preferred_element_type=jnp.float32) + b_ref[...]
        return jnp.maximum(y, 0.0) if relu else y

    z_w = dense(dense(uw, ew1_w, ew1_b, relu=True), ew2_w, ew2_b)
    z_s = dense(dense(us, es1_w, es1_b, relu=True), es2_w, es2_b)
    ut_w = dense(z_w, dw_w, dw_b)
    ut_s = dense(z_s, ds_w, ds_b)

    # concat([a, b], -1) @ W  ==  a @ W[:D] + b @ W[D:]  (no concat materialized)
    s2w = s2w_w[...]
    w2s = w2s_w[...]
    ua_w = jnp.maximum(
        jnp.dot(ut_w.astype(jnp.bfloat16), s2w[:D, :],
                preferred_element_type=jnp.float32)
        + jnp.dot(us.astype(jnp.bfloat16), s2w[D:, :],
                  preferred_element_type=jnp.float32)
        + s2w_b[...], 0.0)
    ua_s = jnp.maximum(
        jnp.dot(uw.astype(jnp.bfloat16), w2s[:D, :],
                preferred_element_type=jnp.float32)
        + jnp.dot(ut_s.astype(jnp.bfloat16), w2s[D:, :],
                  preferred_element_type=jnp.float32)
        + w2s_b[...], 0.0)

    # TODO(synk): momentum-queue update (_update_queue) is a training-time buffer
    # side effect that does not influence the returned fused tensor; omitted.

    # TODO(synk): the `CA` class is not defined in the source; implemented as a
    # single-head scaled-dot-product cross attention (Q from w, K/V from s) with
    # an output projection.  Padded label rows (>= n_valid) are masked out of
    # the keys and dropped on the host.
    q = dense(ua_w, wq, bq).reshape(B, N, D)
    k = dense(ua_s, wk, bk).reshape(B, N, D)
    v = dense(ua_s, wv, bv).reshape(B, N, D)

    s = jnp.einsum('bnd,bmd->bnm', q.astype(jnp.bfloat16), k.astype(jnp.bfloat16),
                   preferred_element_type=jnp.float32) * scale
    key_id = jax.lax.broadcasted_iota(jnp.int32, (B, N, N), 2)
    s = jnp.where(key_id < n_valid, s, -1e30)
    s = s - jnp.max(s, axis=-1, keepdims=True)
    p = jnp.exp(s)
    p = p / jnp.sum(p, axis=-1, keepdims=True)               # exact, f32
    att = jnp.einsum('bnm,bmd->bnd', p.astype(jnp.bfloat16), v.astype(jnp.bfloat16),
                     preferred_element_type=jnp.float32)
    out = jnp.dot(att.reshape(BN, D).astype(jnp.bfloat16), wo[...],
                  preferred_element_type=jnp.float32) + bo[...]
    o_ref[...] = out.reshape(B, N, D)


def recon_and_cross_attention(u, rp, cp, *, n_labels):
    """u: (2, B, N_pad, D) from the encoder kernel.  Returns (B, N_pad, D)."""
    _, B, N, D = u.shape
    L = rp["enc_w1_w"].shape[1]
    kernel = functools.partial(_recon_ca_kernel, scale=1.0 / math.sqrt(D),
                               n_valid=n_labels)
    full = lambda shape: pl.BlockSpec(shape, lambda i, n=len(shape): (0,) * n)
    return pl.pallas_call(
        kernel,
        out_shape=jax.ShapeDtypeStruct((B, N, D), jnp.float32),
        grid=(1,),
        in_specs=[
            full((2, B, N, D)),
            full((D, L)), full((1, L)), full((L, L)), full((1, L)),
            full((D, L)), full((1, L)), full((L, L)), full((1, L)),
            full((L, D)), full((1, D)), full((L, D)), full((1, D)),
            full((2 * D, D)), full((1, D)), full((2 * D, D)), full((1, D)),
            full((D, D)), full((1, D)), full((D, D)), full((1, D)),
            full((D, D)), full((1, D)), full((D, D)), full((1, D)),
        ],
        out_specs=full((B, N, D)),
    )(u,
      rp["enc_w1_w"], rp["enc_w1_b"], rp["enc_w2_w"], rp["enc_w2_b"],
      rp["enc_s1_w"], rp["enc_s1_b"], rp["enc_s2_w"], rp["enc_s2_b"],
      rp["dec_w_w"], rp["dec_w_b"], rp["dec_s_w"], rp["dec_s_b"],
      rp["s2w_w"], rp["s2w_b"], rp["w2s_w"], rp["w2s_b"],
      cp["wq"], cp["bq"], cp["wk"], cp["bk"],
      cp["wv"], cp["bv"], cp["wo"], cp["bo"])


# ----------------------------------------------------------------------------
# Forward pass
# ----------------------------------------------------------------------------

@functools.partial(jax.jit,
                   static_argnames=("nhead", "n_labels", "n_layers_w",
                                    "n_layers_s"))
def crn_dual_forward(params, x_w, x_s, nhead, n_labels, n_layers_w, n_layers_s):
    S, B, _ = x_w.shape
    D = params["proj_w_w"].shape[1]

    # Input projections: tiny lane-unaligned matmuls -> plain XLA dots.
    # TODO(synk): dropout inside the transformer layers is omitted (eval mode).
    xw_bf = jnp.transpose(x_w, (1, 0, 2))                    # (B, S, in_w)
    xs_bf = jnp.transpose(x_s, (1, 0, 2))
    h_w0 = jnp.dot(xw_bf, params["proj_w_w"]) + params["proj_w_b"]
    h_s0 = jnp.dot(xs_bf, params["proj_s_w"]) + params["proj_s_b"]
    x0 = jnp.stack([h_w0, h_s0], axis=0)                     # (2, B, S, D)

    # Fused: both transformer stacks + label-wise attention (1 pallas_call).
    u = encoder_stacks(x0, params["enc"], params["attn_wt"], params["attn_bt"],
                       nhead=nhead, n_layers=(n_layers_w, n_layers_s))

    # Fused: DualContrastiveRecon + cross-attention fusion (1 pallas_call).
    fused_pad = recon_and_cross_attention(u, params["recon"], params["ca"],
                                          n_labels=n_labels)
    # Drop the sublane-padding label rows.
    # NOTE: classifier / modal_cls heads exist in the module but are unused by
    # CRN_Dual.forward(), which returns only `fused`.
    return fused_pad[:, :n_labels, :]


# ----------------------------------------------------------------------------
# Deterministic parameter initialization
# ----------------------------------------------------------------------------

class _KeyGen:
    def __init__(self, key):
        self.key = key
        self.i = 0

    def __call__(self):
        self.i += 1
        return jax.random.fold_in(self.key, self.i)


def _init_linear(key, d_in, d_out, scale=0.05, w_dtype=jnp.bfloat16):
    w = (scale * jax.random.normal(key, (d_in, d_out), jnp.float32)).astype(w_dtype)
    b = jnp.zeros((1, d_out), jnp.float32)
    return w, b


def _init_tf_layer(kg, d_model):
    d_ff = 4 * d_model
    in_w, in_b = _init_linear(kg(), d_model, 3 * d_model)
    out_w, out_b = _init_linear(kg(), d_model, d_model)
    ff1_w, ff1_b = _init_linear(kg(), d_model, d_ff)
    ff2_w, ff2_b = _init_linear(kg(), d_ff, d_model)
    return dict(
        in_w=in_w, in_b=in_b, out_w=out_w, out_b=out_b,
        ff1_w=ff1_w, ff1_b=ff1_b, ff2_w=ff2_w, ff2_b=ff2_b,
        ln1_g=jnp.ones((1, d_model), jnp.float32),
        ln1_b=jnp.zeros((1, d_model), jnp.float32),
        ln2_g=jnp.ones((1, d_model), jnp.float32),
        ln2_b=jnp.zeros((1, d_model), jnp.float32),
    )


def _stack_layers(layers_w, layers_s, max_l):
    """Stack per-layer dicts into (2, max_l, ...) arrays (zero-pad short stack;
    padded layers are skipped in-kernel via pl.when)."""
    out = {}
    for name in layers_w[0]:
        def pad_stack(layers):
            arrs = [lyr[name] for lyr in layers]
            while len(arrs) < max_l:
                arrs.append(jnp.zeros_like(arrs[0]))
            return jnp.stack(arrs, axis=0)
        out[name] = jnp.stack([pad_stack(layers_w), pad_stack(layers_s)], axis=0)
    return out


def init_params(key, input_dims, d_model, d_latent, n_labels,
                n_layers_w=6, n_layers_s=4, n_pad=8):
    assert d_model % 128 == 0
    kg = _KeyGen(key)

    proj_w_w, proj_w_b = _init_linear(kg(), input_dims["w"], d_model,
                                      w_dtype=jnp.float32)
    proj_s_w, proj_s_b = _init_linear(kg(), input_dims["s"], d_model,
                                      w_dtype=jnp.float32)

    max_l = max(n_layers_w, n_layers_s)
    enc_w_layers = [_init_tf_layer(kg, d_model) for _ in range(n_layers_w)]
    enc_s_layers = [_init_tf_layer(kg, d_model) for _ in range(n_layers_s)]
    enc = _stack_layers(enc_w_layers, enc_s_layers, max_l)

    # Label-wise attention weight stored transposed (N_pad, d_model); rows
    # >= n_labels are zero padding for sublane alignment.
    attn_wt_real = 0.05 * jax.random.normal(kg(), (n_labels, d_model), jnp.float32)
    attn_wt = jnp.zeros((n_pad, d_model), jnp.float32)
    attn_wt = attn_wt.at[:n_labels].set(attn_wt_real).astype(jnp.bfloat16)
    attn_bt = jnp.zeros((n_pad, 1), jnp.float32)

    recon = {}
    recon["enc_w1_w"], recon["enc_w1_b"] = _init_linear(kg(), d_model, d_latent)
    recon["enc_w2_w"], recon["enc_w2_b"] = _init_linear(kg(), d_latent, d_latent)
    recon["enc_s1_w"], recon["enc_s1_b"] = _init_linear(kg(), d_model, d_latent)
    recon["enc_s2_w"], recon["enc_s2_b"] = _init_linear(kg(), d_latent, d_latent)
    recon["dec_w_w"], recon["dec_w_b"] = _init_linear(kg(), d_latent, d_model)
    recon["dec_s_w"], recon["dec_s_b"] = _init_linear(kg(), d_latent, d_model)
    recon["s2w_w"], recon["s2w_b"] = _init_linear(kg(), 2 * d_model, d_model)
    recon["w2s_w"], recon["w2s_b"] = _init_linear(kg(), 2 * d_model, d_model)

    ca = {}
    ca["wq"], ca["bq"] = _init_linear(kg(), d_model, d_model)
    ca["wk"], ca["bk"] = _init_linear(kg(), d_model, d_model)
    ca["wv"], ca["bv"] = _init_linear(kg(), d_model, d_model)
    ca["wo"], ca["bo"] = _init_linear(kg(), d_model, d_model)

    return dict(
        proj_w_w=proj_w_w, proj_w_b=proj_w_b,
        proj_s_w=proj_s_w, proj_s_b=proj_s_b,
        enc=enc, attn_wt=attn_wt, attn_bt=attn_bt,
        recon=recon, ca=ca,
    )


# ----------------------------------------------------------------------------
# Demo
# ----------------------------------------------------------------------------

if __name__ == "__main__":
    key = jax.random.PRNGKey(0)
    S, B = 8, 2                                   # seq length, batch
    input_dims = {"w": 12, "s": 10}
    d_model, d_latent, n_labels, nhead = 128, 64, 6, 4   # lane-dense d_model
    n_layers_w, n_layers_s = 6, 4

    k_params, k_w, k_s = jax.random.split(key, 3)
    params = init_params(k_params, input_dims, d_model, d_latent, n_labels,
                         n_layers_w=n_layers_w, n_layers_s=n_layers_s)

    x_w = jax.random.normal(k_w, (S, B, input_dims["w"]), jnp.float32)
    x_s = jax.random.normal(k_s, (S, B, input_dims["s"]), jnp.float32)

    fused = crn_dual_forward(params, x_w, x_s, nhead=nhead, n_labels=n_labels,
                             n_layers_w=n_layers_w, n_layers_s=n_layers_s)
    fused = jax.block_until_ready(fused)

    assert fused.shape == (B, n_labels, d_model), fused.shape
    assert bool(jnp.all(jnp.isfinite(fused)))
    print("KERNEL_OK")
</pallas_src>

<mosaic_0001>
module attributes {stable_mosaic.version = 11 : i64} {
  func.func @_enc_stack_kernel(%arg0: i32, %arg1: i32, %arg2: memref<1x2x8x128xf32, #tpu.memory_space<vmem>>, %arg3: memref<1x1x128x384xbf16, #tpu.memory_space<vmem>>, %arg4: memref<1x1x1x384xf32, #tpu.memory_space<vmem>>, %arg5: memref<1x1x128x128xbf16, #tpu.memory_space<vmem>>, %arg6: memref<1x1x1x128xf32, #tpu.memory_space<vmem>>, %arg7: memref<1x1x1x128xf32, #tpu.memory_space<vmem>>, %arg8: memref<1x1x1x128xf32, #tpu.memory_space<vmem>>, %arg9: memref<1x1x128x512xbf16, #tpu.memory_space<vmem>>, %arg10: memref<1x1x1x512xf32, #tpu.memory_space<vmem>>, %arg11: memref<1x1x512x128xbf16, #tpu.memory_space<vmem>>, %arg12: memref<1x1x1x128xf32, #tpu.memory_space<vmem>>, %arg13: memref<1x1x1x128xf32, #tpu.memory_space<vmem>>, %arg14: memref<1x1x1x128xf32, #tpu.memory_space<vmem>>, %arg15: memref<8x128xbf16, #tpu.memory_space<vmem>>, %arg16: memref<8x1xf32, #tpu.memory_space<vmem>>, %arg17: memref<1x2x8x128xf32, #tpu.memory_space<vmem>>, %arg18: memref<2x8x128xf32, #tpu.memory_space<vmem>>) attributes {dimension_semantics = [#tpu.dimension_semantics<parallel>, #tpu.dimension_semantics<arbitrary>], iteration_bounds = array<i64: 2, 6>, scalar_prefetch = 0 : i64, scratch_operands = 1 : i64, tpu.core_type = #tpu.core_type<tc>, window_params = [{transform_indices = @transform_0, window_bounds = array<i64: 1, 2, 8, 128>}, {transform_indices = @transform_1, window_bounds = array<i64: 1, 1, 128, 384>}, {transform_indices = @transform_2, window_bounds = array<i64: 1, 1, 1, 384>}, {transform_indices = @transform_3, window_bounds = array<i64: 1, 1, 128, 128>}, {transform_indices = @transform_4, window_bounds = array<i64: 1, 1, 1, 128>}, {transform_indices = @transform_5, window_bounds = array<i64: 1, 1, 1, 128>}, {transform_indices = @transform_6, window_bounds = array<i64: 1, 1, 1, 128>}, {transform_indices = @transform_7, window_bounds = array<i64: 1, 1, 128, 512>}, {transform_indices = @transform_8, window_bounds = array<i64: 1, 1, 1, 512>}, {transform_indices = @transform_9, window_bounds = array<i64: 1, 1, 512, 128>}, {transform_indices = @transform_10, window_bounds = array<i64: 1, 1, 1, 128>}, {transform_indices = @transform_11, window_bounds = array<i64: 1, 1, 1, 128>}, {transform_indices = @transform_12, window_bounds = array<i64: 1, 1, 1, 128>}, {pipeline_mode = #tpu.pipeline_mode<synchronous>, transform_indices = @transform_13, window_bounds = array<i64: 8, 128>}, {pipeline_mode = #tpu.pipeline_mode<synchronous>, transform_indices = @transform_14, window_bounds = array<i64: 8, 1>}, {transform_indices = @transform_15, window_bounds = array<i64: 1, 2, 8, 128>}]} {
    %c0_i32 = arith.constant 0 : i32
    %0 = arith.cmpi eq, %arg0, %c0_i32 : i32
    %c6_i32 = arith.constant 6 : i32
    %c4_i32 = arith.constant 4 : i32
    %1 = arith.select %0, %c6_i32, %c4_i32 : i32
    %c0_i32_0 = arith.constant 0 : i32
    %2 = arith.cmpi eq, %arg1, %c0_i32_0 : i32
    %3 = arith.extui %2 : i1 to i32
    %c0_i32_1 = arith.constant 0 : i32
    %4 = arith.cmpi ne, %3, %c0_i32_1 : i32
    scf.if %4 {
      %c0 = arith.constant 0 : index
      %c0_4 = arith.constant 0 : index
      %c0_5 = arith.constant 0 : index
      %c0_6 = arith.constant 0 : index
      %11 = vector.load %arg2[%c0, %c0_4, %c0_5, %c0_6] : memref<1x2x8x128xf32, #tpu.memory_space<vmem>>, vector<1x2x8x128xf32>
      %12 = vector.shape_cast %11 : vector<1x2x8x128xf32> to vector<2x8x128xf32>
      %c0_7 = arith.constant 0 : index
      %c0_8 = arith.constant 0 : index
      %c0_9 = arith.constant 0 : index
      %13 = vector.load %arg18[%c0_7, %c0_8, %c0_9] : memref<2x8x128xf32, #tpu.memory_space<vmem>>, vector<2x8x128xf32>
      tpu.vector_store %arg18[%c0_7, %c0_8, %c0_9], %12 {strides = array<i32>} : memref<2x8x128xf32, #tpu.memory_space<vmem>>, vector<2x8x128xf32>,
    } else {
    }
    %5 = arith.cmpi slt, %arg1, %1 : i32
    %6 = arith.extui %5 : i1 to i32
    %c0_i32_2 = arith.constant 0 : i32
    %7 = arith.cmpi ne, %6, %c0_i32_2 : i32
    scf.if %7 {
      %c0 = arith.constant 0 : index
      %c0_4 = arith.constant 0 : index
      %c0_5 = arith.constant 0 : index
      %11 = vector.load %arg18[%c0, %c0_4, %c0_5] : memref<2x8x128xf32, #tpu.memory_space<vmem>>, vector<2x8x128xf32>
      %12 = vector.shape_cast %11 : vector<2x8x128xf32> to vector<16x128xf32>
      %13 = arith.truncf %12 : vector<16x128xf32> to vector<16x128xbf16>
      %c0_6 = arith.constant 0 : index
      %c0_7 = arith.constant 0 : index
      %c0_8 = arith.constant 0 : index
      %c0_9 = arith.constant 0 : index
      %14 = vector.load %arg3[%c0_6, %c0_7, %c0_8, %c0_9] : memref<1x1x128x384xbf16, #tpu.memory_space<vmem>>, vector<1x1x128x384xbf16>
      %15 = vector.shape_cast %14 : vector<1x1x128x384xbf16> to vector<128x384xbf16>
      %cst = arith.constant dense<0.000000e+00> : vector<16x384xf32>
      %16 = tpu.matmul %13, %15, %cst {dimension_numbers = #tpu.dot_dimension_numbers<[1], [0], [0], [1], [0, 0, 1, 1], [], []>} : vector<16x128xbf16>, vector<128x384xbf16>, vector<16x384xf32> -> vector<16x384xf32>
      %c0_10 = arith.constant 0 : index
      %c0_11 = arith.constant 0 : index
      %c0_12 = arith.constant 0 : index
      %c0_13 = arith.constant 0 : index
      %17 = vector.load %arg4[%c0_10, %c0_11, %c0_12, %c0_13] : memref<1x1x1x384xf32, #tpu.memory_space<vmem>>, vector<1x1x1x384xf32>
      %18 = vector.shape_cast %17 : vector<1x1x1x384xf32> to vector<1x384xf32>
      %19 = vector.broadcast %18 : vector<1x384xf32> to vector<16x384xf32>
      %20 = arith.addf %16, %19 : vector<16x384xf32>
      %21 = vector.extract_strided_slice %20 {offsets = [0, 0], sizes = [16, 128], strides = [1, 1]} : vector<16x384xf32> to vector<16x128xf32>
      %22 = vector.extract_strided_slice %20 {offsets = [0, 128], sizes = [16, 128], strides = [1, 1]} : vector<16x384xf32> to vector<16x128xf32>
      %23 = vector.extract_strided_slice %20 {offsets = [0, 256], sizes = [16, 128], strides = [1, 1]} : vector<16x384xf32> to vector<16x128xf32>
      %c0_14 = arith.constant 0 : index
      %c0_15 = arith.constant 0 : index
      %c0_16 = arith.constant 0 : index
      %c0_17 = arith.constant 0 : index
      %24 = vector.load %arg5[%c0_14, %c0_15, %c0_16, %c0_17] : memref<1x1x128x128xbf16, #tpu.memory_space<vmem>>, vector<1x1x128x128xbf16>
      %25 = vector.shape_cast %24 : vector<1x1x128x128xbf16> to vector<128x128xbf16>
      %26 = vector.extract_strided_slice %21 {offsets = [0, 0], sizes = [16, 32], strides = [1, 1]} : vector<16x128xf32> to vector<16x32xf32>
      %27 = vector.shape_cast %26 : vector<16x32xf32> to vector<2x8x32xf32>
      %28 = arith.truncf %27 : vector<2x8x32xf32> to vector<2x8x32xbf16>
      %29 = vector.extract_strided_slice %22 {offsets = [0, 0], sizes = [16, 32], strides = [1, 1]} : vector<16x128xf32> to vector<16x32xf32>
      %30 = vector.shape_cast %29 : vector<16x32xf32> to vector<2x8x32xf32>
      %31 = arith.truncf %30 : vector<2x8x32xf32> to vector<2x8x32xbf16>
      %32 = vector.extract_strided_slice %23 {offsets = [0, 0], sizes = [16, 32], strides = [1, 1]} : vector<16x128xf32> to vector<16x32xf32>
      %33 = vector.shape_cast %32 : vector<16x32xf32> to vector<2x8x32xf32>
      %34 = arith.truncf %33 : vector<2x8x32xf32> to vector<2x8x32xbf16>
      "tpu.trace_start"() <{level = 10 : i32, message = "bqd,bkd->bqk"}> : () -> ()
      %cst_18 = arith.constant dense<0.000000e+00> : vector<2x8x8xf32>
      %35 = tpu.matmul %28, %31, %cst_18 {dimension_numbers = #tpu.dot_dimension_numbers<[2], [2], [1], [1], [0, 0, 0, 1, 1, 1], [0], [0]>} : vector<2x8x32xbf16>, vector<2x8x32xbf16>, vector<2x8x8xf32> -> vector<2x8x8xf32>
      "tpu.trace_stop"() : () -> ()
      %cst_19 = arith.constant 0.176776692 : f32
      %36 = vector.broadcast %cst_19 : f32 to vector<2x8x8xf32>
      %37 = arith.mulf %35, %36 : vector<2x8x8xf32>
      %cst_20 = arith.constant dense<0xFF800000> : vector<2x8xf32>
      %38 = vector.multi_reduction <maximumf>, %37, %cst_20 [2] : vector<2x8x8xf32> to vector<2x8xf32>
      %39 = vector.shape_cast %38 : vector<2x8xf32> to vector<2x8x1xf32>
      %40 = vector.broadcast %39 : vector<2x8x1xf32> to vector<2x8x8xf32>
      %41 = arith.subf %37, %40 : vector<2x8x8xf32>
      %42 = math.exp %41 : vector<2x8x8xf32>
      %cst_21 = arith.constant dense<0.000000e+00> : vector<2x8xf32>
      %43 = vector.multi_reduction <add>, %42, %cst_21 [2] : vector<2x8x8xf32> to vector<2x8xf32>
      %44 = vector.shape_cast %43 : vector<2x8xf32> to vector<2x8x1xf32>
      %45 = vector.broadcast %44 : vector<2x8x1xf32> to vector<2x8x8xf32>
      %46 = arith.divf %42, %45 : vector<2x8x8xf32>
      %47 = arith.truncf %46 : vector<2x8x8xf32> to vector<2x8x8xbf16>
      "tpu.trace_start"() <{level = 10 : i32, message = "bqk,bkd->bqd"}> : () -> ()
      %cst_22 = arith.constant dense<0.000000e+00> : vector<2x8x32xf32>
      %48 = tpu.matmul %47, %34, %cst_22 {dimension_numbers = #tpu.dot_dimension_numbers<[2], [1], [1], [2], [0, 0, 0, 1, 1, 2], [0], [0]>} : vector<2x8x8xbf16>, vector<2x8x32xbf16>, vector<2x8x32xf32> -> vector<2x8x32xf32>
      "tpu.trace_stop"() : () -> ()
      %49 = vector.shape_cast %48 : vector<2x8x32xf32> to vector<16x32xf32>
      %50 = arith.truncf %49 : vector<16x32xf32> to vector<16x32xbf16>
      %51 = vector.extract_strided_slice %25 {offsets = [0, 0], sizes = [32, 128], strides = [1, 1]} : vector<128x128xbf16> to vector<32x128xbf16>
      %cst_23 = arith.constant dense<0.000000e+00> : vector<16x128xf32>
      %52 = tpu.matmul %50, %51, %cst_23 {dimension_numbers = #tpu.dot_dimension_numbers<[1], [0], [0], [1], [0, 0, 1, 1], [], []>} : vector<16x32xbf16>, vector<32x128xbf16>, vector<16x128xf32> -> vector<16x128xf32>
      %53 = vector.extract_strided_slice %21 {offsets = [0, 32], sizes = [16, 32], strides = [1, 1]} : vector<16x128xf32> to vector<16x32xf32>
      %54 = vector.shape_cast %53 : vector<16x32xf32> to vector<2x8x32xf32>
      %55 = arith.truncf %54 : vector<2x8x32xf32> to vector<2x8x32xbf16>
      %56 = vector.extract_strided_slice %22 {offsets = [0, 32], sizes = [16, 32], strides = [1, 1]} : vector<16x128xf32> to vector<16x32xf32>
      %57 = vector.shape_cast %56 : vector<16x32xf32> to vector<2x8x32xf32>
      %58 = arith.truncf %57 : vector<2x8x32xf32> to vector<2x8x32xbf16>
      %59 = vector.extract_strided_slice %23 {offsets = [0, 32], sizes = [16, 32], strides = [1, 1]} : vector<16x128xf32> to vector<16x32xf32>
      %60 = vector.shape_cast %59 : vector<16x32xf32> to vector<2x8x32xf32>
      %61 = arith.truncf %60 : vector<2x8x32xf32> to vector<2x8x32xbf16>
      "tpu.trace_start"() <{level = 10 : i32, message = "bqd,bkd->bqk"}> : () -> ()
      %cst_24 = arith.constant dense<0.000000e+00> : vector<2x8x8xf32>
      %62 = tpu.matmul %55, %58, %cst_24 {dimension_numbers = #tpu.dot_dimension_numbers<[2], [2], [1], [1], [0, 0, 0, 1, 1, 1], [0], [0]>} : vector<2x8x32xbf16>, vector<2x8x32xbf16>, vector<2x8x8xf32> -> vector<2x8x8xf32>
      "tpu.trace_stop"() : () -> ()
      %cst_25 = arith.constant 0.176776692 : f32
      %63 = vector.broadcast %cst_25 : f32 to vector<2x8x8xf32>
      %64 = arith.mulf %62, %63 : vector<2x8x8xf32>
      %cst_26 = arith.constant dense<0xFF800000> : vector<2x8xf32>
      %65 = vector.multi_reduction <maximumf>, %64, %cst_26 [2] : vector<2x8x8xf32> to vector<2x8xf32>
      %66 = vector.shape_cast %65 : vector<2x8xf32> to vector<2x8x1xf32>
      %67 = vector.broadcast %66 : vector<2x8x1xf32> to vector<2x8x8xf32>
      %68 = arith.subf %64, %67 : vector<2x8x8xf32>
      %69 = math.exp %68 : vector<2x8x8xf32>
      %cst_27 = arith.constant dense<0.000000e+00> : vector<2x8xf32>
      %70 = vector.multi_reduction <add>, %69, %cst_27 [2] : vector<2x8x8xf32> to vector<2x8xf32>
      %71 = vector.shape_cast %70 : vector<2x8xf32> to vector<2x8x1xf32>
      %72 = vector.broadcast %71 : vector<2x8x1xf32> to vector<2x8x8xf32>
      %73 = arith.divf %69, %72 : vector<2x8x8xf32>
      %74 = arith.truncf %73 : vector<2x8x8xf32> to vector<2x8x8xbf16>
      "tpu.trace_start"() <{level = 10 : i32, message = "bqk,bkd->bqd"}> : () -> ()
      %cst_28 = arith.constant dense<0.000000e+00> : vector<2x8x32xf32>
      %75 = tpu.matmul %74, %61, %cst_28 {dimension_numbers = #tpu.dot_dimension_numbers<[2], [1], [1], [2], [0, 0, 0, 1, 1, 2], [0], [0]>} : vector<2x8x8xbf16>, vector<2x8x32xbf16>, vector<2x8x32xf32> -> vector<2x8x32xf32>
      "tpu.trace_stop"() : () -> ()
      %76 = vector.shape_cast %75 : vector<2x8x32xf32> to vector<16x32xf32>
      %77 = arith.truncf %76 : vector<16x32xf32> to vector<16x32xbf16>
      %78 = vector.extract_strided_slice %25 {offsets = [32, 0], sizes = [32, 128], strides = [1, 1]} : vector<128x128xbf16> to vector<32x128xbf16>
      %cst_29 = arith.constant dense<0.000000e+00> : vector<16x128xf32>
      %79 = tpu.matmul %77, %78, %cst_29 {dimension_numbers = #tpu.dot_dimension_numbers<[1], [0], [0], [1], [0, 0, 1, 1], [], []>} : vector<16x32xbf16>, vector<32x128xbf16>, vector<16x128xf32> -> vector<16x128xf32>
      %80 = arith.addf %52, %79 : vector<16x128xf32>
      %81 = vector.extract_strided_slice %21 {offsets = [0, 64], sizes = [16, 32], strides = [1, 1]} : vector<16x128xf32> to vector<16x32xf32>
      %82 = vector.shape_cast %81 : vector<16x32xf32> to vector<2x8x32xf32>
      %83 = arith.truncf %82 : vector<2x8x32xf32> to vector<2x8x32xbf16>
      %84 = vector.extract_strided_slice %22 {offsets = [0, 64], sizes = [16, 32], strides = [1, 1]} : vector<16x128xf32> to vector<16x32xf32>
      %85 = vector.shape_cast %84 : vector<16x32xf32> to vector<2x8x32xf32>
      %86 = arith.truncf %85 : vector<2x8x32xf32> to vector<2x8x32xbf16>
      %87 = vector.extract_strided_slice %23 {offsets = [0, 64], sizes = [16, 32], strides = [1, 1]} : vector<16x128xf32> to vector<16x32xf32>
      %88 = vector.shape_cast %87 : vector<16x32xf32> to vector<2x8x32xf32>
      %89 = arith.truncf %88 : vector<2x8x32xf32> to vector<2x8x32xbf16>
      "tpu.trace_start"() <{level = 10 : i32, message = "bqd,bkd->bqk"}> : () -> ()
      %cst_30 = arith.constant dense<0.000000e+00> : vector<2x8x8xf32>
      %90 = tpu.matmul %83, %86, %cst_30 {dimension_numbers = #tpu.dot_dimension_numbers<[2], [2], [1], [1], [0, 0, 0, 1, 1, 1], [0], [0]>} : vector<2x8x32xbf16>, vector<2x8x32xbf16>, vector<2x8x8xf32> -> vector<2x8x8xf32>
      "tpu.trace_stop"() : () -> ()
      %cst_31 = arith.constant 0.176776692 : f32
      %91 = vector.broadcast %cst_31 : f32 to vector<2x8x8xf32>
      %92 = arith.mulf %90, %91 : vector<2x8x8xf32>
      %cst_32 = arith.constant dense<0xFF800000> : vector<2x8xf32>
      %93 = vector.multi_reduction <maximumf>, %92, %cst_32 [2] : vector<2x8x8xf32> to vector<2x8xf32>
      %94 = vector.shape_cast %93 : vector<2x8xf32> to vector<2x8x1xf32>
      %95 = vector.broadcast %94 : vector<2x8x1xf32> to vector<2x8x8xf32>
      %96 = arith.subf %92, %95 : vector<2x8x8xf32>
      %97 = math.exp %96 : vector<2x8x8xf32>
      %cst_33 = arith.constant dense<0.000000e+00> : vector<2x8xf32>
      %98 = vector.multi_reduction <add>, %97, %cst_33 [2] : vector<2x8x8xf32> to vector<2x8xf32>
      %99 = vector.shape_cast %98 : vector<2x8xf32> to vector<2x8x1xf32>
      %100 = vector.broadcast %99 : vector<2x8x1xf32> to vector<2x8x8xf32>
      %101 = arith.divf %97, %100 : vector<2x8x8xf32>
      %102 = arith.truncf %101 : vector<2x8x8xf32> to vector<2x8x8xbf16>
      "tpu.trace_start"() <{level = 10 : i32, message = "bqk,bkd->bqd"}> : () -> ()
      %cst_34 = arith.constant dense<0.000000e+00> : vector<2x8x32xf32>
      %103 = tpu.matmul %102, %89, %cst_34 {dimension_numbers = #tpu.dot_dimension_numbers<[2], [1], [1], [2], [0, 0, 0, 1, 1, 2], [0], [0]>} : vector<2x8x8xbf16>, vector<2x8x32xbf16>, vector<2x8x32xf32> -> vector<2x8x32xf32>
      "tpu.trace_stop"() : () -> ()
      %104 = vector.shape_cast %103 : vector<2x8x32xf32> to vector<16x32xf32>
      %105 = arith.truncf %104 : vector<16x32xf32> to vector<16x32xbf16>
      %106 = vector.extract_strided_slice %25 {offsets = [64, 0], sizes = [32, 128], strides = [1, 1]} : vector<128x128xbf16> to vector<32x128xbf16>
      %cst_35 = arith.constant dense<0.000000e+00> : vector<16x128xf32>
      %107 = tpu.matmul %105, %106, %cst_35 {dimension_numbers = #tpu.dot_dimension_numbers<[1], [0], [0], [1], [0, 0, 1, 1], [], []>} : vector<16x32xbf16>, vector<32x128xbf16>, vector<16x128xf32> -> vector<16x128xf32>
      %108 = arith.addf %80, %107 : vector<16x128xf32>
      %109 = vector.extract_strided_slice %21 {offsets = [0, 96], sizes = [16, 32], strides = [1, 1]} : vector<16x128xf32> to vector<16x32xf32>
      %110 = vector.shape_cast %109 : vector<16x32xf32> to vector<2x8x32xf32>
      %111 = arith.truncf %110 : vector<2x8x32xf32> to vector<2x8x32xbf16>
      %112 = vector.extract_strided_slice %22 {offsets = [0, 96], sizes = [16, 32], strides = [1, 1]} : vector<16x128xf32> to vector<16x32xf32>
      %113 = vector.shape_cast %112 : vector<16x32xf32> to vector<2x8x32xf32>
      %114 = arith.truncf %113 : vector<2x8x32xf32> to vector<2x8x32xbf16>
      %115 = vector.extract_strided_slice %23 {offsets = [0, 96], sizes = [16, 32], strides = [1, 1]} : vector<16x128xf32> to vector<16x32xf32>
      %116 = vector.shape_cast %115 : vector<16x32xf32> to vector<2x8x32xf32>
      %117 = arith.truncf %116 : vector<2x8x32xf32> to vector<2x8x32xbf16>
      "tpu.trace_start"() <{level = 10 : i32, message = "bqd,bkd->bqk"}> : () -> ()
      %cst_36 = arith.constant dense<0.000000e+00> : vector<2x8x8xf32>
      %118 = tpu.matmul %111, %114, %cst_36 {dimension_numbers = #tpu.dot_dimension_numbers<[2], [2], [1], [1], [0, 0, 0, 1, 1, 1], [0], [0]>} : vector<2x8x32xbf16>, vector<2x8x32xbf16>, vector<2x8x8xf32> -> vector<2x8x8xf32>
      "tpu.trace_stop"() : () -> ()
      %cst_37 = arith.constant 0.176776692 : f32
      %119 = vector.broadcast %cst_37 : f32 to vector<2x8x8xf32>
      %120 = arith.mulf %118, %119 : vector<2x8x8xf32>
      %cst_38 = arith.constant dense<0xFF800000> : vector<2x8xf32>
      %121 = vector.multi_reduction <maximumf>, %120, %cst_38 [2] : vector<2x8x8xf32> to vector<2x8xf32>
      %122 = vector.shape_cast %121 : vector<2x8xf32> to vector<2x8x1xf32>
      %123 = vector.broadcast %122 : vector<2x8x1xf32> to vector<2x8x8xf32>
      %124 = arith.subf %120, %123 : vector<2x8x8xf32>
      %125 = math.exp %124 : vector<2x8x8xf32>
      %cst_39 = arith.constant dense<0.000000e+00> : vector<2x8xf32>
      %126 = vector.multi_reduction <add>, %125, %cst_39 [2] : vector<2x8x8xf32> to vector<2x8xf32>
      %127 = vector.shape_cast %126 : vector<2x8xf32> to vector<2x8x1xf32>
      %128 = vector.broadcast %127 : vector<2x8x1xf32> to vector<2x8x8xf32>
      %129 = arith.divf %125, %128 : vector<2x8x8xf32>
      %130 = arith.truncf %129 : vector<2x8x8xf32> to vector<2x8x8xbf16>
      "tpu.trace_start"() <{level = 10 : i32, message = "bqk,bkd->bqd"}> : () -> ()
      %cst_40 = arith.constant dense<0.000000e+00> : vector<2x8x32xf32>
      %131 = tpu.matmul %130, %117, %cst_40 {dimension_numbers = #tpu.dot_dimension_numbers<[2], [1], [1], [2], [0, 0, 0, 1, 1, 2], [0], [0]>} : vector<2x8x8xbf16>, vector<2x8x32xbf16>, vector<2x8x32xf32> -> vector<2x8x32xf32>
      "tpu.trace_stop"() : () -> ()
      %132 = vector.shape_cast %131 : vector<2x8x32xf32> to vector<16x32xf32>
      %133 = arith.truncf %132 : vector<16x32xf32> to vector<16x32xbf16>
      %134 = vector.extract_strided_slice %25 {offsets = [96, 0], sizes = [32, 128], strides = [1, 1]} : vector<128x128xbf16> to vector<32x128xbf16>
      %cst_41 = arith.constant dense<0.000000e+00> : vector<16x128xf32>
      %135 = tpu.matmul %133, %134, %cst_41 {dimension_numbers = #tpu.dot_dimension_numbers<[1], [0], [0], [1], [0, 0, 1, 1], [], []>} : vector<16x32xbf16>, vector<32x128xbf16>, vector<16x128xf32> -> vector<16x128xf32>
      %136 = arith.addf %108, %135 : vector<16x128xf32>
      %c0_42 = arith.constant 0 : index
      %c0_43 = arith.constant 0 : index
      %c0_44 = arith.constant 0 : index
      %c0_45 = arith.constant 0 : index
      %137 = vector.load %arg6[%c0_42, %c0_43, %c0_44, %c0_45] : memref<1x1x1x128xf32, #tpu.memory_space<vmem>>, vector<1x1x1x128xf32>
      %138 = vector.shape_cast %137 : vector<1x1x1x128xf32> to vector<1x128xf32>
      %139 = vector.broadcast %138 : vector<1x128xf32> to vector<16x128xf32>
      %140 = arith.addf %136, %139 : vector<16x128xf32>
      %141 = arith.addf %12, %140 : vector<16x128xf32>
      %c0_46 = arith.constant 0 : index
      %c0_47 = arith.constant 0 : index
      %c0_48 = arith.constant 0 : index
      %c0_49 = arith.constant 0 : index
      %142 = vector.load %arg7[%c0_46, %c0_47, %c0_48, %c0_49] : memref<1x1x1x128xf32, #tpu.memory_space<vmem>>, vector<1x1x1x128xf32>
      %143 = vector.shape_cast %142 : vector<1x1x1x128xf32> to vector<1x128xf32>
      %c0_50 = arith.constant 0 : index
      %c0_51 = arith.constant 0 : index
      %c0_52 = arith.constant 0 : index
      %c0_53 = arith.constant 0 : index
      %144 = vector.load %arg8[%c0_50, %c0_51, %c0_52, %c0_53] : memref<1x1x1x128xf32, #tpu.memory_space<vmem>>, vector<1x1x1x128xf32>
      %145 = vector.shape_cast %144 : vector<1x1x1x128xf32> to vector<1x128xf32>
      %cst_54 = arith.constant dense<0.000000e+00> : vector<16xf32>
      %146 = vector.multi_reduction <add>, %141, %cst_54 [1] : vector<16x128xf32> to vector<16xf32>
      %147 = vector.shape_cast %146 : vector<16xf32> to vector<16x1xf32>
      %cst_55 = arith.constant 1.280000e+02 : f32
      %148 = vector.broadcast %cst_55 : f32 to vector<16x1xf32>
      %149 = arith.divf %147, %148 : vector<16x1xf32>
      %150 = vector.broadcast %149 : vector<16x1xf32> to vector<16x128xf32>
      %151 = arith.subf %141, %150 : vector<16x128xf32>
      %152 = arith.mulf %151, %151 : vector<16x128xf32>
      %cst_56 = arith.constant dense<0.000000e+00> : vector<16xf32>
      %153 = vector.multi_reduction <add>, %152, %cst_56 [1] : vector<16x128xf32> to vector<16xf32>
      %154 = vector.shape_cast %153 : vector<16xf32> to vector<16x1xf32>
      %cst_57 = arith.constant 1.280000e+02 : f32
      %155 = vector.broadcast %cst_57 : f32 to vector<16x1xf32>
      %156 = arith.divf %154, %155 : vector<16x1xf32>
      %157 = vector.broadcast %149 : vector<16x1xf32> to vector<16x128xf32>
      %158 = arith.subf %141, %157 : vector<16x128xf32>
      %cst_58 = arith.constant 9.99999974E-6 : f32
      %159 = vector.broadcast %cst_58 : f32 to vector<16x1xf32>
      %160 = arith.addf %156, %159 : vector<16x1xf32>
      %161 = math.rsqrt %160 : vector<16x1xf32>
      %162 = vector.broadcast %161 : vector<16x1xf32> to vector<16x128xf32>
      %163 = arith.mulf %158, %162 : vector<16x128xf32>
      %164 = vector.broadcast %143 : vector<1x128xf32> to vector<16x128xf32>
      %165 = arith.mulf %163, %164 : vector<16x128xf32>
      %166 = vector.broadcast %145 : vector<1x128xf32> to vector<16x128xf32>
      %167 = arith.addf %165, %166 : vector<16x128xf32>
      %168 = arith.truncf %167 : vector<16x128xf32> to vector<16x128xbf16>
      %c0_59 = arith.constant 0 : index
      %c0_60 = arith.constant 0 : index
      %c0_61 = arith.constant 0 : index
      %c0_62 = arith.constant 0 : index
      %169 = vector.load %arg9[%c0_59, %c0_60, %c0_61, %c0_62] : memref<1x1x128x512xbf16, #tpu.memory_space<vmem>>, vector<1x1x128x512xbf16>
      %170 = vector.shape_cast %169 : vector<1x1x128x512xbf16> to vector<128x512xbf16>
      %cst_63 = arith.constant dense<0.000000e+00> : vector<16x512xf32>
      %171 = tpu.matmul %168, %170, %cst_63 {dimension_numbers = #tpu.dot_dimension_numbers<[1], [0], [0], [1], [0, 0, 1, 1], [], []>} : vector<16x128xbf16>, vector<128x512xbf16>, vector<16x512xf32> -> vector<16x512xf32>
      %c0_64 = arith.constant 0 : index
      %c0_65 = arith.constant 0 : index
      %c0_66 = arith.constant 0 : index
      %c0_67 = arith.constant 0 : index
      %172 = vector.load %arg10[%c0_64, %c0_65, %c0_66, %c0_67] : memref<1x1x1x512xf32, #tpu.memory_space<vmem>>, vector<1x1x1x512xf32>
      %173 = vector.shape_cast %172 : vector<1x1x1x512xf32> to vector<1x512xf32>
      %174 = vector.broadcast %173 : vector<1x512xf32> to vector<16x512xf32>
      %175 = arith.addf %171, %174 : vector<16x512xf32>
      %cst_68 = arith.constant 0.000000e+00 : f32
      %176 = vector.broadcast %cst_68 : f32 to vector<16x512xf32>
      %177 = arith.maximumf %175, %176 : vector<16x512xf32>
      %178 = arith.truncf %177 : vector<16x512xf32> to vector<16x512xbf16>
      %c0_69 = arith.constant 0 : index
      %c0_70 = arith.constant 0 : index
      %c0_71 = arith.constant 0 : index
      %c0_72 = arith.constant 0 : index
      %179 = vector.load %arg11[%c0_69, %c0_70, %c0_71, %c0_72] : memref<1x1x512x128xbf16, #tpu.memory_space<vmem>>, vector<1x1x512x128xbf16>
      %180 = vector.shape_cast %179 : vector<1x1x512x128xbf16> to vector<512x128xbf16>
      %cst_73 = arith.constant dense<0.000000e+00> : vector<16x128xf32>
      %181 = tpu.matmul %178, %180, %cst_73 {dimension_numbers = #tpu.dot_dimension_numbers<[1], [0], [0], [1], [0, 0, 1, 1], [], []>} : vector<16x512xbf16>, vector<512x128xbf16>, vector<16x128xf32> -> vector<16x128xf32>
      %c0_74 = arith.constant 0 : index
      %c0_75 = arith.constant 0 : index
      %c0_76 = arith.constant 0 : index
      %c0_77 = arith.constant 0 : index
      %182 = vector.load %arg12[%c0_74, %c0_75, %c0_76, %c0_77] : memref<1x1x1x128xf32, #tpu.memory_space<vmem>>, vector<1x1x1x128xf32>
      %183 = vector.shape_cast %182 : vector<1x1x1x128xf32> to vector<1x128xf32>
      %184 = vector.broadcast %183 : vector<1x128xf32> to vector<16x128xf32>
      %185 = arith.addf %181, %184 : vector<16x128xf32>
      %186 = arith.addf %167, %185 : vector<16x128xf32>
      %c0_78 = arith.constant 0 : index
      %c0_79 = arith.constant 0 : index
      %c0_80 = arith.constant 0 : index
      %c0_81 = arith.constant 0 : index
      %187 = vector.load %arg13[%c0_78, %c0_79, %c0_80, %c0_81] : memref<1x1x1x128xf32, #tpu.memory_space<vmem>>, vector<1x1x1x128xf32>
      %188 = vector.shape_cast %187 : vector<1x1x1x128xf32> to vector<1x128xf32>
      %c0_82 = arith.constant 0 : index
      %c0_83 = arith.constant 0 : index
      %c0_84 = arith.constant 0 : index
      %c0_85 = arith.constant 0 : index
      %189 = vector.load %arg14[%c0_82, %c0_83, %c0_84, %c0_85] : memref<1x1x1x128xf32, #tpu.memory_space<vmem>>, vector<1x1x1x128xf32>
      %190 = vector.shape_cast %189 : vector<1x1x1x128xf32> to vector<1x128xf32>
      %cst_86 = arith.constant dense<0.000000e+00> : vector<16xf32>
      %191 = vector.multi_reduction <add>, %186, %cst_86 [1] : vector<16x128xf32> to vector<16xf32>
      %192 = vector.shape_cast %191 : vector<16xf32> to vector<16x1xf32>
      %cst_87 = arith.constant 1.280000e+02 : f32
      %193 = vector.broadcast %cst_87 : f32 to vector<16x1xf32>
      %194 = arith.divf %192, %193 : vector<16x1xf32>
      %195 = vector.broadcast %194 : vector<16x1xf32> to vector<16x128xf32>
      %196 = arith.subf %186, %195 : vector<16x128xf32>
      %197 = arith.mulf %196, %196 : vector<16x128xf32>
      %cst_88 = arith.constant dense<0.000000e+00> : vector<16xf32>
      %198 = vector.multi_reduction <add>, %197, %cst_88 [1] : vector<16x128xf32> to vector<16xf32>
      %199 = vector.shape_cast %198 : vector<16xf32> to vector<16x1xf32>
      %cst_89 = arith.constant 1.280000e+02 : f32
      %200 = vector.broadcast %cst_89 : f32 to vector<16x1xf32>
      %201 = arith.divf %199, %200 : vector<16x1xf32>
      %202 = vector.broadcast %194 : vector<16x1xf32> to vector<16x128xf32>
      %203 = arith.subf %186, %202 : vector<16x128xf32>
      %cst_90 = arith.constant 9.99999974E-6 : f32
      %204 = vector.broadcast %cst_90 : f32 to vector<16x1xf32>
      %205 = arith.addf %201, %204 : vector<16x1xf32>
      %206 = math.rsqrt %205 : vector<16x1xf32>
      %207 = vector.broadcast %206 : vector<16x1xf32> to vector<16x128xf32>
      %208 = arith.mulf %203, %207 : vector<16x128xf32>
      %209 = vector.broadcast %188 : vector<1x128xf32> to vector<16x128xf32>
      %210 = arith.mulf %208, %209 : vector<16x128xf32>
      %211 = vector.broadcast %190 : vector<1x128xf32> to vector<16x128xf32>
      %212 = arith.addf %210, %211 : vector<16x128xf32>
      %213 = vector.shape_cast %212 : vector<16x128xf32> to vector<2x8x128xf32>
      %c0_91 = arith.constant 0 : index
      %c0_92 = arith.constant 0 : index
      %c0_93 = arith.constant 0 : index
      %214 = vector.load %arg18[%c0_91, %c0_92, %c0_93] : memref<2x8x128xf32, #tpu.memory_space<vmem>>, vector<2x8x128xf32>
      tpu.vector_store %arg18[%c0_91, %c0_92, %c0_93], %213 {strides = array<i32>} : memref<2x8x128xf32, #tpu.memory_space<vmem>>, vector<2x8x128xf32>,
    } else {
    }
    %c5_i32 = arith.constant 5 : i32
    %8 = arith.cmpi eq, %arg1, %c5_i32 : i32
    %9 = arith.extui %8 : i1 to i32
    %c0_i32_3 = arith.constant 0 : i32
    %10 = arith.cmpi ne, %9, %c0_i32_3 : i32
    scf.if %10 {
      %c0 = arith.constant 0 : index
      %c0_4 = arith.constant 0 : index
      %c0_5 = arith.constant 0 : index
      %11 = vector.load %arg18[%c0, %c0_4, %c0_5] : memref<2x8x128xf32, #tpu.memory_space<vmem>>, vector<2x8x128xf32>
      %c0_6 = arith.constant 0 : index
      %c0_7 = arith.constant 0 : index
      %12 = vector.load %arg15[%c0_6, %c0_7] : memref<8x128xbf16, #tpu.memory_space<vmem>>, vector<8x128xbf16>
      %c0_8 = arith.constant 0 : index
      %c0_9 = arith.constant 0 : index
      %13 = vector.load %arg16[%c0_8, %c0_9] : memref<8x1xf32, #tpu.memory_space<vmem>>, vector<8x1xf32>
      %14 = vector.extract_strided_slice %11 {offsets = [0, 0, 0], sizes = [1, 8, 128], strides = [1, 1, 1]} : vector<2x8x128xf32> to vector<1x8x128xf32>
      %15 = vector.shape_cast %14 : vector<1x8x128xf32> to vector<8x128xf32>
      %16 = arith.truncf %15 : vector<8x128xf32> to vector<8x128xbf16>
      %cst = arith.constant dense<0.000000e+00> : vector<8x8xf32>
      %17 = tpu.matmul %12, %16, %cst {dimension_numbers = #tpu.dot_dimension_numbers<[1], [1], [0], [0], [0, 0, 1, 0], [], []>} : vector<8x128xbf16>, vector<8x128xbf16>, vector<8x8xf32> -> vector<8x8xf32>
      %18 = vector.broadcast %13 : vector<8x1xf32> to vector<8x8xf32>
      %19 = arith.addf %17, %18 : vector<8x8xf32>
      %20 = vector.extract_strided_slice %11 {offsets = [1, 0, 0], sizes = [1, 8, 128], strides = [1, 1, 1]} : vector<2x8x128xf32> to vector<1x8x128xf32>
      %21 = vector.shape_cast %20 : vector<1x8x128xf32> to vector<8x128xf32>
      %22 = arith.truncf %21 : vector<8x128xf32> to vector<8x128xbf16>
      %cst_10 = arith.constant dense<0.000000e+00> : vector<8x8xf32>
      %23 = tpu.matmul %12, %22, %cst_10 {dimension_numbers = #tpu.dot_dimension_numbers<[1], [1], [0], [0], [0, 0, 1, 0], [], []>} : vector<8x128xbf16>, vector<8x128xbf16>, vector<8x8xf32> -> vector<8x8xf32>
      %24 = vector.broadcast %13 : vector<8x1xf32> to vector<8x8xf32>
      %25 = arith.addf %23, %24 : vector<8x8xf32>
      %26 = arith.maximumf %19, %25 : vector<8x8xf32>
      %27 = arith.subf %19, %26 : vector<8x8xf32>
      %28 = math.exp %27 : vector<8x8xf32>
      %29 = arith.subf %25, %26 : vector<8x8xf32>
      %30 = math.exp %29 : vector<8x8xf32>
      %31 = arith.addf %28, %30 : vector<8x8xf32>
      %cst_11 = arith.constant 1.000000e+00 : f32
      %32 = vector.broadcast %cst_11 : f32 to vector<8x8xf32>
      %33 = arith.divf %32, %31 : vector<8x8xf32>
      %34 = arith.mulf %28, %33 : vector<8x8xf32>
      %35 = arith.truncf %34 : vector<8x8xf32> to vector<8x8xbf16>
      %36 = vector.extract_strided_slice %11 {offsets = [0, 0, 0], sizes = [1, 8, 128], strides = [1, 1, 1]} : vector<2x8x128xf32> to vector<1x8x128xf32>
      %37 = vector.shape_cast %36 : vector<1x8x128xf32> to vector<8x128xf32>
      %38 = arith.truncf %37 : vector<8x128xf32> to vector<8x128xbf16>
      %cst_12 = arith.constant dense<0.000000e+00> : vector<8x128xf32>
      %39 = tpu.matmul %35, %38, %cst_12 {dimension_numbers = #tpu.dot_dimension_numbers<[1], [0], [0], [1], [0, 0, 1, 1], [], []>} : vector<8x8xbf16>, vector<8x128xbf16>, vector<8x128xf32> -> vector<8x128xf32>
      %c0_13 = arith.constant 0 : index
      %c0_14 = arith.constant 0 : index
      %c0_15 = arith.constant 0 : index
      %c0_16 = arith.constant 0 : index
      %40 = vector.load %arg17[%c0_13, %c0_14, %c0_15, %c0_16] : memref<1x2x8x128xf32, #tpu.memory_space<vmem>>, vector<1x1x8x128xf32>
      %41 = vector.shape_cast %40 : vector<1x1x8x128xf32> to vector<8x128xf32>
      %42 = vector.shape_cast %39 : vector<8x128xf32> to vector<1x1x8x128xf32>
      tpu.vector_store %arg17[%c0_13, %c0_14, %c0_15, %c0_16], %42 {strides = array<i32>} : memref<1x2x8x128xf32, #tpu.memory_space<vmem>>, vector<1x1x8x128xf32>,
      %43 = arith.mulf %30, %33 : vector<8x8xf32>
      %44 = arith.truncf %43 : vector<8x8xf32> to vector<8x8xbf16>
      %45 = vector.extract_strided_slice %11 {offsets = [1, 0, 0], sizes = [1, 8, 128], strides = [1, 1, 1]} : vector<2x8x128xf32> to vector<1x8x128xf32>
      %46 = vector.shape_cast %45 : vector<1x8x128xf32> to vector<8x128xf32>
      %47 = arith.truncf %46 : vector<8x128xf32> to vector<8x128xbf16>
      %cst_17 = arith.constant dense<0.000000e+00> : vector<8x128xf32>
      %48 = tpu.matmul %44, %47, %cst_17 {dimension_numbers = #tpu.dot_dimension_numbers<[1], [0], [0], [1], [0, 0, 1, 1], [], []>} : vector<8x8xbf16>, vector<8x128xbf16>, vector<8x128xf32> -> vector<8x128xf32>
      %c0_18 = arith.constant 0 : index
      %c1 = arith.constant 1 : index
      %c0_19 = arith.constant 0 : index
      %c0_20 = arith.constant 0 : index
      %49 = vector.load %arg17[%c0_18, %c1, %c0_19, %c0_20] : memref<1x2x8x128xf32, #tpu.memory_space<vmem>>, vector<1x1x8x128xf32>
      %50 = vector.shape_cast %49 : vector<1x1x8x128xf32> to vector<8x128xf32>
      %51 = vector.shape_cast %48 : vector<8x128xf32> to vector<1x1x8x128xf32>
      tpu.vector_store %arg17[%c0_18, %c1, %c0_19, %c0_20], %51 {strides = array<i32>} : memref<1x2x8x128xf32, #tpu.memory_space<vmem>>, vector<1x1x8x128xf32>,
    } else {
    }
    return
  }
  func.func @transform_0(%arg0: i32, %arg1: i32) -> (i32, i32, i32, i32) {
    %c0_i32 = arith.constant 0 : i32
    %c0_i32_0 = arith.constant 0 : i32
    %c0_i32_1 = arith.constant 0 : i32
    %c0_i32_2 = arith.constant 0 : i32
    return %arg0, %c0_i32, %c0_i32_0, %c0_i32_1 : i32, i32, i32, i32
  }
  func.func @transform_1(%arg0: i32, %arg1: i32) -> (i32, i32, i32, i32) {
    %c0_i32 = arith.constant 0 : i32
    %c0_i32_0 = arith.constant 0 : i32
    %c0_i32_1 = arith.constant 0 : i32
    return %arg0, %arg1, %c0_i32, %c0_i32_0 : i32, i32, i32, i32
  }
  func.func @transform_2(%arg0: i32, %arg1: i32) -> (i32, i32, i32, i32) {
    %c0_i32 = arith.constant 0 : i32
    %c0_i32_0 = arith.constant 0 : i32
    %c0_i32_1 = arith.constant 0 : i32
    return %arg0, %arg1, %c0_i32, %c0_i32_0 : i32, i32, i32, i32
  }
  func.func @transform_3(%arg0: i32, %arg1: i32) -> (i32, i32, i32, i32) {
    %c0_i32 = arith.constant 0 : i32
    %c0_i32_0 = arith.constant 0 : i32
    %c0_i32_1 = arith.constant 0 : i32
    return %arg0, %arg1, %c0_i32, %c0_i32_0 : i32, i32, i32, i32
  }
  func.func @transform_4(%arg0: i32, %arg1: i32) -> (i32, i32, i32, i32) {
    %c0_i32 = arith.constant 0 : i32
    %c0_i32_0 = arith.constant 0 : i32
    %c0_i32_1 = arith.constant 0 : i32
    return %arg0, %arg1, %c0_i32, %c0_i32_0 : i32, i32, i32, i32
  }
  func.func @transform_5(%arg0: i32, %arg1: i32) -> (i32, i32, i32, i32) {
    %c0_i32 = arith.constant 0 : i32
    %c0_i32_0 = arith.constant 0 : i32
    %c0_i32_1 = arith.constant 0 : i32
    return %arg0, %arg1, %c0_i32, %c0_i32_0 : i32, i32, i32, i32
  }
  func.func @transform_6(%arg0: i32, %arg1: i32) -> (i32, i32, i32, i32) {
    %c0_i32 = arith.constant 0 : i32
    %c0_i32_0 = arith.constant 0 : i32
    %c0_i32_1 = arith.constant 0 : i32
    return %arg0, %arg1, %c0_i32, %c0_i32_0 : i32, i32, i32, i32
  }
  func.func @transform_7(%arg0: i32, %arg1: i32) -> (i32, i32, i32, i32) {
    %c0_i32 = arith.constant 0 : i32
    %c0_i32_0 = arith.constant 0 : i32
    %c0_i32_1 = arith.constant 0 : i32
    return %arg0, %arg1, %c0_i32, %c0_i32_0 : i32, i32, i32, i32
  }
  func.func @transform_8(%arg0: i32, %arg1: i32) -> (i32, i32, i32, i32) {
    %c0_i32 = arith.constant 0 : i32
    %c0_i32_0 = arith.constant 0 : i32
    %c0_i32_1 = arith.constant 0 : i32
    return %arg0, %arg1, %c0_i32, %c0_i32_0 : i32, i32, i32, i32
  }
  func.func @transform_9(%arg0: i32, %arg1: i32) -> (i32, i32, i32, i32) {
    %c0_i32 = arith.constant 0 : i32
    %c0_i32_0 = arith.constant 0 : i32
    %c0_i32_1 = arith.constant 0 : i32
    return %arg0, %arg1, %c0_i32, %c0_i32_0 : i32, i32, i32, i32
  }
  func.func @transform_10(%arg0: i32, %arg1: i32) -> (i32, i32, i32, i32) {
    %c0_i32 = arith.constant 0 : i32
    %c0_i32_0 = arith.constant 0 : i32
    %c0_i32_1 = arith.constant 0 : i32
    return %arg0, %arg1, %c0_i32, %c0_i32_0 : i32, i32, i32, i32
  }
  func.func @transform_11(%arg0: i32, %arg1: i32) -> (i32, i32, i32, i32) {
    %c0_i32 = arith.constant 0 : i32
    %c0_i32_0 = arith.constant 0 : i32
    %c0_i32_1 = arith.constant 0 : i32
    return %arg0, %arg1, %c0_i32, %c0_i32_0 : i32, i32, i32, i32
  }
  func.func @transform_12(%arg0: i32, %arg1: i32) -> (i32, i32, i32, i32) {
    %c0_i32 = arith.constant 0 : i32
    %c0_i32_0 = arith.constant 0 : i32
    %c0_i32_1 = arith.constant 0 : i32
    return %arg0, %arg1, %c0_i32, %c0_i32_0 : i32, i32, i32, i32
  }
  func.func @transform_13(%arg0: i32, %arg1: i32) -> (i32, i32) {
    %c0_i32 = arith.constant 0 : i32
    %c0_i32_0 = arith.constant 0 : i32
    %c0_i32_1 = arith.constant 0 : i32
    return %c0_i32, %c0_i32_0 : i32, i32
  }
  func.func @transform_14(%arg0: i32, %arg1: i32) -> (i32, i32) {
    %c0_i32 = arith.constant 0 : i32
    %c0_i32_0 = arith.constant 0 : i32
    %c0_i32_1 = arith.constant 0 : i32
    return %c0_i32, %c0_i32_0 : i32, i32
  }
  func.func @transform_15(%arg0: i32, %arg1: i32) -> (i32, i32, i32, i32) {
    %c0_i32 = arith.constant 0 : i32
    %c0_i32_0 = arith.constant 0 : i32
    %c0_i32_1 = arith.constant 0 : i32
    %c0_i32_2 = arith.constant 0 : i32
    return %arg0, %c0_i32, %c0_i32_0, %c0_i32_1 : i32, i32, i32, i32
  }
}

module attributes {stable_mosaic.version = 11 : i64} {
  func.func @_recon_ca_kernel(%arg0: i32, %arg1: memref<2x2x8x128xf32, #tpu.memory_space<vmem>>, %arg2: memref<128x64xbf16, #tpu.memory_space<vmem>>, %arg3: memref<1x64xf32, #tpu.memory_space<vmem>>, %arg4: memref<64x64xbf16, #tpu.memory_space<vmem>>, %arg5: memref<1x64xf32, #tpu.memory_space<vmem>>, %arg6: memref<128x64xbf16, #tpu.memory_space<vmem>>, %arg7: memref<1x64xf32, #tpu.memory_space<vmem>>, %arg8: memref<64x64xbf16, #tpu.memory_space<vmem>>, %arg9: memref<1x64xf32, #tpu.memory_space<vmem>>, %arg10: memref<64x128xbf16, #tpu.memory_space<vmem>>, %arg11: memref<1x128xf32, #tpu.memory_space<vmem>>, %arg12: memref<64x128xbf16, #tpu.memory_space<vmem>>, %arg13: memref<1x128xf32, #tpu.memory_space<vmem>>, %arg14: memref<256x128xbf16, #tpu.memory_space<vmem>>, %arg15: memref<1x128xf32, #tpu.memory_space<vmem>>, %arg16: memref<256x128xbf16, #tpu.memory_space<vmem>>, %arg17: memref<1x128xf32, #tpu.memory_space<vmem>>, %arg18: memref<128x128xbf16, #tpu.memory_space<vmem>>, %arg19: memref<1x128xf32, #tpu.memory_space<vmem>>, %arg20: memref<128x128xbf16, #tpu.memory_space<vmem>>, %arg21: memref<1x128xf32, #tpu.memory_space<vmem>>, %arg22: memref<128x128xbf16, #tpu.memory_space<vmem>>, %arg23: memref<1x128xf32, #tpu.memory_space<vmem>>, %arg24: memref<128x128xbf16, #tpu.memory_space<vmem>>, %arg25: memref<1x128xf32, #tpu.memory_space<vmem>>, %arg26: memref<2x8x128xf32, #tpu.memory_space<vmem>>) attributes {dimension_semantics = [#tpu.dimension_semantics<arbitrary>], iteration_bounds = array<i64: 1>, scalar_prefetch = 0 : i64, scratch_operands = 0 : i64, tpu.core_type = #tpu.core_type<tc>, window_params = [{pipeline_mode = #tpu.pipeline_mode<synchronous>, transform_indices = @transform_0, window_bounds = array<i64: 2, 2, 8, 128>}, {pipeline_mode = #tpu.pipeline_mode<synchronous>, transform_indices = @transform_1, window_bounds = array<i64: 128, 64>}, {pipeline_mode = #tpu.pipeline_mode<synchronous>, transform_indices = @transform_2, window_bounds = array<i64: 1, 64>}, {pipeline_mode = #tpu.pipeline_mode<synchronous>, transform_indices = @transform_3, window_bounds = array<i64: 64, 64>}, {pipeline_mode = #tpu.pipeline_mode<synchronous>, transform_indices = @transform_4, window_bounds = array<i64: 1, 64>}, {pipeline_mode = #tpu.pipeline_mode<synchronous>, transform_indices = @transform_5, window_bounds = array<i64: 128, 64>}, {pipeline_mode = #tpu.pipeline_mode<synchronous>, transform_indices = @transform_6, window_bounds = array<i64: 1, 64>}, {pipeline_mode = #tpu.pipeline_mode<synchronous>, transform_indices = @transform_7, window_bounds = array<i64: 64, 64>}, {pipeline_mode = #tpu.pipeline_mode<synchronous>, transform_indices = @transform_8, window_bounds = array<i64: 1, 64>}, {pipeline_mode = #tpu.pipeline_mode<synchronous>, transform_indices = @transform_9, window_bounds = array<i64: 64, 128>}, {pipeline_mode = #tpu.pipeline_mode<synchronous>, transform_indices = @transform_10, window_bounds = array<i64: 1, 128>}, {pipeline_mode = #tpu.pipeline_mode<synchronous>, transform_indices = @transform_11, window_bounds = array<i64: 64, 128>}, {pipeline_mode = #tpu.pipeline_mode<synchronous>, transform_indices = @transform_12, window_bounds = array<i64: 1, 128>}, {pipeline_mode = #tpu.pipeline_mode<synchronous>, transform_indices = @transform_13, window_bounds = array<i64: 256, 128>}, {pipeline_mode = #tpu.pipeline_mode<synchronous>, transform_indices = @transform_14, window_bounds = array<i64: 1, 128>}, {pipeline_mode = #tpu.pipeline_mode<synchronous>, transform_indices = @transform_15, window_bounds = array<i64: 256, 128>}, {pipeline_mode = #tpu.pipeline_mode<synchronous>, transform_indices = @transform_16, window_bounds = array<i64: 1, 128>}, {pipeline_mode = #tpu.pipeline_mode<synchronous>, transform_indices = @transform_17, window_bounds = array<i64: 128, 128>}, {pipeline_mode = #tpu.pipeline_mode<synchronous>, transform_indices = @transform_18, window_bounds = array<i64: 1, 128>}, {pipeline_mode = #tpu.pipeline_mode<synchronous>, transform_indices = @transform_19, window_bounds = array<i64: 128, 128>}, {pipeline_mode = #tpu.pipeline_mode<synchronous>, transform_indices = @transform_20, window_bounds = array<i64: 1, 128>}, {pipeline_mode = #tpu.pipeline_mode<synchronous>, transform_indices = @transform_21, window_bounds = array<i64: 128, 128>}, {pipeline_mode = #tpu.pipeline_mode<synchronous>, transform_indices = @transform_22, window_bounds = array<i64: 1, 128>}, {pipeline_mode = #tpu.pipeline_mode<synchronous>, transform_indices = @transform_23, window_bounds = array<i64: 128, 128>}, {pipeline_mode = #tpu.pipeline_mode<synchronous>, transform_indices = @transform_24, window_bounds = array<i64: 1, 128>}, {pipeline_mode = #tpu.pipeline_mode<synchronous>, transform_indices = @transform_25, window_bounds = array<i64: 2, 8, 128>}]} {
    %c0 = arith.constant 0 : index
    %c0_0 = arith.constant 0 : index
    %c0_1 = arith.constant 0 : index
    %c0_2 = arith.constant 0 : index
    %0 = vector.load %arg1[%c0, %c0_0, %c0_1, %c0_2] : memref<2x2x8x128xf32, #tpu.memory_space<vmem>>, vector<1x2x8x128xf32>
    %1 = vector.shape_cast %0 : vector<1x2x8x128xf32> to vector<2x8x128xf32>
    %2 = vector.shape_cast %1 : vector<2x8x128xf32> to vector<16x128xf32>
    %c1 = arith.constant 1 : index
    %c0_3 = arith.constant 0 : index
    %c0_4 = arith.constant 0 : index
    %c0_5 = arith.constant 0 : index
    %3 = vector.load %arg1[%c1, %c0_3, %c0_4, %c0_5] : memref<2x2x8x128xf32, #tpu.memory_space<vmem>>, vector<1x2x8x128xf32>
    %4 = vector.shape_cast %3 : vector<1x2x8x128xf32> to vector<2x8x128xf32>
    %5 = vector.shape_cast %4 : vector<2x8x128xf32> to vector<16x128xf32>
    %6 = arith.truncf %2 : vector<16x128xf32> to vector<16x128xbf16>
    %c0_6 = arith.constant 0 : index
    %c0_7 = arith.constant 0 : index
    %7 = vector.load %arg2[%c0_6, %c0_7] : memref<128x64xbf16, #tpu.memory_space<vmem>>, vector<128x64xbf16>
    %cst = arith.constant dense<0.000000e+00> : vector<16x64xf32>
    %8 = tpu.matmul %6, %7, %cst {dimension_numbers = #tpu.dot_dimension_numbers<[1], [0], [0], [1], [0, 0, 1, 1], [], []>} : vector<16x128xbf16>, vector<128x64xbf16>, vector<16x64xf32> -> vector<16x64xf32>
    %c0_8 = arith.constant 0 : index
    %c0_9 = arith.constant 0 : index
    %9 = vector.load %arg3[%c0_8, %c0_9] : memref<1x64xf32, #tpu.memory_space<vmem>>, vector<1x64xf32>
    %10 = vector.broadcast %9 : vector<1x64xf32> to vector<16x64xf32>
    %11 = arith.addf %8, %10 : vector<16x64xf32>
    %cst_10 = arith.constant 0.000000e+00 : f32
    %12 = vector.broadcast %cst_10 : f32 to vector<16x64xf32>
    %13 = arith.maximumf %11, %12 : vector<16x64xf32>
    %14 = arith.truncf %13 : vector<16x64xf32> to vector<16x64xbf16>
    %c0_11 = arith.constant 0 : index
    %c0_12 = arith.constant 0 : index
    %15 = vector.load %arg4[%c0_11, %c0_12] : memref<64x64xbf16, #tpu.memory_space<vmem>>, vector<64x64xbf16>
    %cst_13 = arith.constant dense<0.000000e+00> : vector<16x64xf32>
    %16 = tpu.matmul %14, %15, %cst_13 {dimension_numbers = #tpu.dot_dimension_numbers<[1], [0], [0], [1], [0, 0, 1, 1], [], []>} : vector<16x64xbf16>, vector<64x64xbf16>, vector<16x64xf32> -> vector<16x64xf32>
    %c0_14 = arith.constant 0 : index
    %c0_15 = arith.constant 0 : index
    %17 = vector.load %arg5[%c0_14, %c0_15] : memref<1x64xf32, #tpu.memory_space<vmem>>, vector<1x64xf32>
    %18 = vector.broadcast %17 : vector<1x64xf32> to vector<16x64xf32>
    %19 = arith.addf %16, %18 : vector<16x64xf32>
    %20 = arith.truncf %5 : vector<16x128xf32> to vector<16x128xbf16>
    %c0_16 = arith.constant 0 : index
    %c0_17 = arith.constant 0 : index
    %21 = vector.load %arg6[%c0_16, %c0_17] : memref<128x64xbf16, #tpu.memory_space<vmem>>, vector<128x64xbf16>
    %cst_18 = arith.constant dense<0.000000e+00> : vector<16x64xf32>
    %22 = tpu.matmul %20, %21, %cst_18 {dimension_numbers = #tpu.dot_dimension_numbers<[1], [0], [0], [1], [0, 0, 1, 1], [], []>} : vector<16x128xbf16>, vector<128x64xbf16>, vector<16x64xf32> -> vector<16x64xf32>
    %c0_19 = arith.constant 0 : index
    %c0_20 = arith.constant 0 : index
    %23 = vector.load %arg7[%c0_19, %c0_20] : memref<1x64xf32, #tpu.memory_space<vmem>>, vector<1x64xf32>
    %24 = vector.broadcast %23 : vector<1x64xf32> to vector<16x64xf32>
    %25 = arith.addf %22, %24 : vector<16x64xf32>
    %cst_21 = arith.constant 0.000000e+00 : f32
    %26 = vector.broadcast %cst_21 : f32 to vector<16x64xf32>
    %27 = arith.maximumf %25, %26 : vector<16x64xf32>
    %28 = arith.truncf %27 : vector<16x64xf32> to vector<16x64xbf16>
    %c0_22 = arith.constant 0 : index
    %c0_23 = arith.constant 0 : index
    %29 = vector.load %arg8[%c0_22, %c0_23] : memref<64x64xbf16, #tpu.memory_space<vmem>>, vector<64x64xbf16>
    %cst_24 = arith.constant dense<0.000000e+00> : vector<16x64xf32>
    %30 = tpu.matmul %28, %29, %cst_24 {dimension_numbers = #tpu.dot_dimension_numbers<[1], [0], [0], [1], [0, 0, 1, 1], [], []>} : vector<16x64xbf16>, vector<64x64xbf16>, vector<16x64xf32> -> vector<16x64xf32>
    %c0_25 = arith.constant 0 : index
    %c0_26 = arith.constant 0 : index
    %31 = vector.load %arg9[%c0_25, %c0_26] : memref<1x64xf32, #tpu.memory_space<vmem>>, vector<1x64xf32>
    %32 = vector.broadcast %31 : vector<1x64xf32> to vector<16x64xf32>
    %33 = arith.addf %30, %32 : vector<16x64xf32>
    %34 = arith.truncf %19 : vector<16x64xf32> to vector<16x64xbf16>
    %c0_27 = arith.constant 0 : index
    %c0_28 = arith.constant 0 : index
    %35 = vector.load %arg10[%c0_27, %c0_28] : memref<64x128xbf16, #tpu.memory_space<vmem>>, vector<64x128xbf16>
    %cst_29 = arith.constant dense<0.000000e+00> : vector<16x128xf32>
    %36 = tpu.matmul %34, %35, %cst_29 {dimension_numbers = #tpu.dot_dimension_numbers<[1], [0], [0], [1], [0, 0, 1, 1], [], []>} : vector<16x64xbf16>, vector<64x128xbf16>, vector<16x128xf32> -> vector<16x128xf32>
    %c0_30 = arith.constant 0 : index
    %c0_31 = arith.constant 0 : index
    %37 = vector.load %arg11[%c0_30, %c0_31] : memref<1x128xf32, #tpu.memory_space<vmem>>, vector<1x128xf32>
    %38 = vector.broadcast %37 : vector<1x128xf32> to vector<16x128xf32>
    %39 = arith.addf %36, %38 : vector<16x128xf32>
    %40 = arith.truncf %33 : vector<16x64xf32> to vector<16x64xbf16>
    %c0_32 = arith.constant 0 : index
    %c0_33 = arith.constant 0 : index
    %41 = vector.load %arg12[%c0_32, %c0_33] : memref<64x128xbf16, #tpu.memory_space<vmem>>, vector<64x128xbf16>
    %cst_34 = arith.constant dense<0.000000e+00> : vector<16x128xf32>
    %42 = tpu.matmul %40, %41, %cst_34 {dimension_numbers = #tpu.dot_dimension_numbers<[1], [0], [0], [1], [0, 0, 1, 1], [], []>} : vector<16x64xbf16>, vector<64x128xbf16>, vector<16x128xf32> -> vector<16x128xf32>
    %c0_35 = arith.constant 0 : index
    %c0_36 = arith.constant 0 : index
    %43 = vector.load %arg13[%c0_35, %c0_36] : memref<1x128xf32, #tpu.memory_space<vmem>>, vector<1x128xf32>
    %44 = vector.broadcast %43 : vector<1x128xf32> to vector<16x128xf32>
    %45 = arith.addf %42, %44 : vector<16x128xf32>
    %c0_37 = arith.constant 0 : index
    %c0_38 = arith.constant 0 : index
    %46 = vector.load %arg14[%c0_37, %c0_38] : memref<256x128xbf16, #tpu.memory_space<vmem>>, vector<256x128xbf16>
    %c0_39 = arith.constant 0 : index
    %c0_40 = arith.constant 0 : index
    %47 = vector.load %arg16[%c0_39, %c0_40] : memref<256x128xbf16, #tpu.memory_space<vmem>>, vector<256x128xbf16>
    %48 = arith.truncf %39 : vector<16x128xf32> to vector<16x128xbf16>
    %49 = vector.extract_strided_slice %46 {offsets = [0, 0], sizes = [128, 128], strides = [1, 1]} : vector<256x128xbf16> to vector<128x128xbf16>
    %cst_41 = arith.constant dense<0.000000e+00> : vector<16x128xf32>
    %50 = tpu.matmul %48, %49, %cst_41 {dimension_numbers = #tpu.dot_dimension_numbers<[1], [0], [0], [1], [0, 0, 1, 1], [], []>} : vector<16x128xbf16>, vector<128x128xbf16>, vector<16x128xf32> -> vector<16x128xf32>
    %51 = arith.truncf %5 : vector<16x128xf32> to vector<16x128xbf16>
    %52 = vector.extract_strided_slice %46 {offsets = [128, 0], sizes = [128, 128], strides = [1, 1]} : vector<256x128xbf16> to vector<128x128xbf16>
    %cst_42 = arith.constant dense<0.000000e+00> : vector<16x128xf32>
    %53 = tpu.matmul %51, %52, %cst_42 {dimension_numbers = #tpu.dot_dimension_numbers<[1], [0], [0], [1], [0, 0, 1, 1], [], []>} : vector<16x128xbf16>, vector<128x128xbf16>, vector<16x128xf32> -> vector<16x128xf32>
    %54 = arith.addf %50, %53 : vector<16x128xf32>
    %c0_43 = arith.constant 0 : index
    %c0_44 = arith.constant 0 : index
    %55 = vector.load %arg15[%c0_43, %c0_44] : memref<1x128xf32, #tpu.memory_space<vmem>>, vector<1x128xf32>
    %56 = vector.broadcast %55 : vector<1x128xf32> to vector<16x128xf32>
    %57 = arith.addf %54, %56 : vector<16x128xf32>
    %cst_45 = arith.constant 0.000000e+00 : f32
    %58 = vector.broadcast %cst_45 : f32 to vector<16x128xf32>
    %59 = arith.maximumf %57, %58 : vector<16x128xf32>
    %60 = arith.truncf %2 : vector<16x128xf32> to vector<16x128xbf16>
    %61 = vector.extract_strided_slice %47 {offsets = [0, 0], sizes = [128, 128], strides = [1, 1]} : vector<256x128xbf16> to vector<128x128xbf16>
    %cst_46 = arith.constant dense<0.000000e+00> : vector<16x128xf32>
    %62 = tpu.matmul %60, %61, %cst_46 {dimension_numbers = #tpu.dot_dimension_numbers<[1], [0], [0], [1], [0, 0, 1, 1], [], []>} : vector<16x128xbf16>, vector<128x128xbf16>, vector<16x128xf32> -> vector<16x128xf32>
    %63 = arith.truncf %45 : vector<16x128xf32> to vector<16x128xbf16>
    %64 = vector.extract_strided_slice %47 {offsets = [128, 0], sizes = [128, 128], strides = [1, 1]} : vector<256x128xbf16> to vector<128x128xbf16>
    %cst_47 = arith.constant dense<0.000000e+00> : vector<16x128xf32>
    %65 = tpu.matmul %63, %64, %cst_47 {dimension_numbers = #tpu.dot_dimension_numbers<[1], [0], [0], [1], [0, 0, 1, 1], [], []>} : vector<16x128xbf16>, vector<128x128xbf16>, vector<16x128xf32> -> vector<16x128xf32>
    %66 = arith.addf %62, %65 : vector<16x128xf32>
    %c0_48 = arith.constant 0 : index
    %c0_49 = arith.constant 0 : index
    %67 = vector.load %arg17[%c0_48, %c0_49] : memref<1x128xf32, #tpu.memory_space<vmem>>, vector<1x128xf32>
    %68 = vector.broadcast %67 : vector<1x128xf32> to vector<16x128xf32>
    %69 = arith.addf %66, %68 : vector<16x128xf32>
    %cst_50 = arith.constant 0.000000e+00 : f32
    %70 = vector.broadcast %cst_50 : f32 to vector<16x128xf32>
    %71 = arith.maximumf %69, %70 : vector<16x128xf32>
    %72 = arith.truncf %59 : vector<16x128xf32> to vector<16x128xbf16>
    %c0_51 = arith.constant 0 : index
    %c0_52 = arith.constant 0 : index
    %73 = vector.load %arg18[%c0_51, %c0_52] : memref<128x128xbf16, #tpu.memory_space<vmem>>, vector<128x128xbf16>
    %cst_53 = arith.constant dense<0.000000e+00> : vector<16x128xf32>
    %74 = tpu.matmul %72, %73, %cst_53 {dimension_numbers = #tpu.dot_dimension_numbers<[1], [0], [0], [1], [0, 0, 1, 1], [], []>} : vector<16x128xbf16>, vector<128x128xbf16>, vector<16x128xf32> -> vector<16x128xf32>
    %c0_54 = arith.constant 0 : index
    %c0_55 = arith.constant 0 : index
    %75 = vector.load %arg19[%c0_54, %c0_55] : memref<1x128xf32, #tpu.memory_space<vmem>>, vector<1x128xf32>
    %76 = vector.broadcast %75 : vector<1x128xf32> to vector<16x128xf32>
    %77 = arith.addf %74, %76 : vector<16x128xf32>
    %78 = vector.shape_cast %77 : vector<16x128xf32> to vector<2x8x128xf32>
    %79 = arith.truncf %71 : vector<16x128xf32> to vector<16x128xbf16>
    %c0_56 = arith.constant 0 : index
    %c0_57 = arith.constant 0 : index
    %80 = vector.load %arg20[%c0_56, %c0_57] : memref<128x128xbf16, #tpu.memory_space<vmem>>, vector<128x128xbf16>
    %cst_58 = arith.constant dense<0.000000e+00> : vector<16x128xf32>
    %81 = tpu.matmul %79, %80, %cst_58 {dimension_numbers = #tpu.dot_dimension_numbers<[1], [0], [0], [1], [0, 0, 1, 1], [], []>} : vector<16x128xbf16>, vector<128x128xbf16>, vector<16x128xf32> -> vector<16x128xf32>
    %c0_59 = arith.constant 0 : index
    %c0_60 = arith.constant 0 : index
    %82 = vector.load %arg21[%c0_59, %c0_60] : memref<1x128xf32, #tpu.memory_space<vmem>>, vector<1x128xf32>
    %83 = vector.broadcast %82 : vector<1x128xf32> to vector<16x128xf32>
    %84 = arith.addf %81, %83 : vector<16x128xf32>
    %85 = vector.shape_cast %84 : vector<16x128xf32> to vector<2x8x128xf32>
    %86 = arith.truncf %71 : vector<16x128xf32> to vector<16x128xbf16>
    %c0_61 = arith.constant 0 : index
    %c0_62 = arith.constant 0 : index
    %87 = vector.load %arg22[%c0_61, %c0_62] : memref<128x128xbf16, #tpu.memory_space<vmem>>, vector<128x128xbf16>
    %cst_63 = arith.constant dense<0.000000e+00> : vector<16x128xf32>
    %88 = tpu.matmul %86, %87, %cst_63 {dimension_numbers = #tpu.dot_dimension_numbers<[1], [0], [0], [1], [0, 0, 1, 1], [], []>} : vector<16x128xbf16>, vector<128x128xbf16>, vector<16x128xf32> -> vector<16x128xf32>
    %c0_64 = arith.constant 0 : index
    %c0_65 = arith.constant 0 : index
    %89 = vector.load %arg23[%c0_64, %c0_65] : memref<1x128xf32, #tpu.memory_space<vmem>>, vector<1x128xf32>
    %90 = vector.broadcast %89 : vector<1x128xf32> to vector<16x128xf32>
    %91 = arith.addf %88, %90 : vector<16x128xf32>
    %92 = vector.shape_cast %91 : vector<16x128xf32> to vector<2x8x128xf32>
    %93 = arith.truncf %78 : vector<2x8x128xf32> to vector<2x8x128xbf16>
    %94 = arith.truncf %85 : vector<2x8x128xf32> to vector<2x8x128xbf16>
    "tpu.trace_start"() <{level = 10 : i32, message = "bnd,bmd->bnm"}> : () -> ()
    %cst_66 = arith.constant dense<0.000000e+00> : vector<2x8x8xf32>
    %95 = tpu.matmul %93, %94, %cst_66 {dimension_numbers = #tpu.dot_dimension_numbers<[2], [2], [1], [1], [0, 0, 0, 1, 1, 1], [0], [0]>} : vector<2x8x128xbf16>, vector<2x8x128xbf16>, vector<2x8x8xf32> -> vector<2x8x8xf32>
    "tpu.trace_stop"() : () -> ()
    %cst_67 = arith.constant 0.0883883461 : f32
    %96 = vector.broadcast %cst_67 : f32 to vector<2x8x8xf32>
    %97 = arith.mulf %95, %96 : vector<2x8x8xf32>
    %98 = tpu.iota {dimensions = array<i32: 2>} : vector<2x8x8xi32>
    %c6_i32 = arith.constant 6 : i32
    %99 = vector.broadcast %c6_i32 : i32 to vector<2x8x8xi32>
    %100 = arith.cmpi slt, %98, %99 : vector<2x8x8xi32>
    %cst_68 = arith.constant -1.000000e+30 : f32
    %101 = vector.broadcast %cst_68 : f32 to vector<2x8x8xf32>
    %102 = arith.select %100, %97, %101 : vector<2x8x8xi1>, vector<2x8x8xf32>
    %cst_69 = arith.constant dense<0xFF800000> : vector<2x8xf32>
    %103 = vector.multi_reduction <maximumf>, %102, %cst_69 [2] : vector<2x8x8xf32> to vector<2x8xf32>
    %104 = vector.shape_cast %103 : vector<2x8xf32> to vector<2x8x1xf32>
    %105 = vector.broadcast %104 : vector<2x8x1xf32> to vector<2x8x8xf32>
    %106 = arith.subf %102, %105 : vector<2x8x8xf32>
    %107 = math.exp %106 : vector<2x8x8xf32>
    %cst_70 = arith.constant dense<0.000000e+00> : vector<2x8xf32>
    %108 = vector.multi_reduction <add>, %107, %cst_70 [2] : vector<2x8x8xf32> to vector<2x8xf32>
    %109 = vector.shape_cast %108 : vector<2x8xf32> to vector<2x8x1xf32>
    %110 = vector.broadcast %109 : vector<2x8x1xf32> to vector<2x8x8xf32>
    %111 = arith.divf %107, %110 : vector<2x8x8xf32>
    %112 = arith.truncf %111 : vector<2x8x8xf32> to vector<2x8x8xbf16>
    %113 = arith.truncf %92 : vector<2x8x128xf32> to vector<2x8x128xbf16>
    "tpu.trace_start"() <{level = 10 : i32, message = "bnm,bmd->bnd"}> : () -> ()
    %cst_71 = arith.constant dense<0.000000e+00> : vector<2x8x128xf32>
    %114 = tpu.matmul %112, %113, %cst_71 {dimension_numbers = #tpu.dot_dimension_numbers<[2], [1], [1], [2], [0, 0, 0, 1, 1, 2], [0], [0]>} : vector<2x8x8xbf16>, vector<2x8x128xbf16>, vector<2x8x128xf32> -> vector<2x8x128xf32>
    "tpu.trace_stop"() : () -> ()
    %115 = vector.shape_cast %114 : vector<2x8x128xf32> to vector<16x128xf32>
    %116 = arith.truncf %115 : vector<16x128xf32> to vector<16x128xbf16>
    %c0_72 = arith.constant 0 : index
    %c0_73 = arith.constant 0 : index
    %117 = vector.load %arg24[%c0_72, %c0_73] : memref<128x128xbf16, #tpu.memory_space<vmem>>, vector<128x128xbf16>
    %cst_74 = arith.constant dense<0.000000e+00> : vector<16x128xf32>
    %118 = tpu.matmul %116, %117, %cst_74 {dimension_numbers = #tpu.dot_dimension_numbers<[1], [0], [0], [1], [0, 0, 1, 1], [], []>} : vector<16x128xbf16>, vector<128x128xbf16>, vector<16x128xf32> -> vector<16x128xf32>
    %c0_75 = arith.constant 0 : index
    %c0_76 = arith.constant 0 : index
    %119 = vector.load %arg25[%c0_75, %c0_76] : memref<1x128xf32, #tpu.memory_space<vmem>>, vector<1x128xf32>
    %120 = vector.broadcast %119 : vector<1x128xf32> to vector<16x128xf32>
    %121 = arith.addf %118, %120 : vector<16x128xf32>
    %122 = vector.shape_cast %121 : vector<16x128xf32> to vector<2x8x128xf32>
    %c0_77 = arith.constant 0 : index
    %c0_78 = arith.constant 0 : index
    %c0_79 = arith.constant 0 : index
    %123 = vector.load %arg26[%c0_77, %c0_78, %c0_79] : memref<2x8x128xf32, #tpu.memory_space<vmem>>, vector<2x8x128xf32>
    tpu.vector_store %arg26[%c0_77, %c0_78, %c0_79], %122 {strides = array<i32>} : memref<2x8x128xf32, #tpu.memory_space<vmem>>, vector<2x8x128xf32>,
    return
  }
  func.func @transform_0(%arg0: i32) -> (i32, i32, i32, i32) {
    %c0_i32 = arith.constant 0 : i32
    %c0_i32_0 = arith.constant 0 : i32
    %c0_i32_1 = arith.constant 0 : i32
    %c0_i32_2 = arith.constant 0 : i32
    %c0_i32_3 = arith.constant 0 : i32
    return %c0_i32, %c0_i32_0, %c0_i32_1, %c0_i32_2 : i32, i32, i32, i32
  }
  func.func @transform_1(%arg0: i32) -> (i32, i32) {
    %c0_i32 = arith.constant 0 : i32
    %c0_i32_0 = arith.constant 0 : i32
    %c0_i32_1 = arith.constant 0 : i32
    return %c0_i32, %c0_i32_0 : i32, i32
  }
  func.func @transform_2(%arg0: i32) -> (i32, i32) {
    %c0_i32 = arith.constant 0 : i32
    %c0_i32_0 = arith.constant 0 : i32
    %c0_i32_1 = arith.constant 0 : i32
    return %c0_i32, %c0_i32_0 : i32, i32
  }
  func.func @transform_3(%arg0: i32) -> (i32, i32) {
    %c0_i32 = arith.constant 0 : i32
    %c0_i32_0 = arith.constant 0 : i32
    %c0_i32_1 = arith.constant 0 : i32
    return %c0_i32, %c0_i32_0 : i32, i32
  }
  func.func @transform_4(%arg0: i32) -> (i32, i32) {
    %c0_i32 = arith.constant 0 : i32
    %c0_i32_0 = arith.constant 0 : i32
    %c0_i32_1 = arith.constant 0 : i32
    return %c0_i32, %c0_i32_0 : i32, i32
  }
  func.func @transform_5(%arg0: i32) -> (i32, i32) {
    %c0_i32 = arith.constant 0 : i32
    %c0_i32_0 = arith.constant 0 : i32
    %c0_i32_1 = arith.constant 0 : i32
    return %c0_i32, %c0_i32_0 : i32, i32
  }
  func.func @transform_6(%arg0: i32) -> (i32, i32) {
    %c0_i32 = arith.constant 0 : i32
    %c0_i32_0 = arith.constant 0 : i32
    %c0_i32_1 = arith.constant 0 : i32
    return %c0_i32, %c0_i32_0 : i32, i32
  }
  func.func @transform_7(%arg0: i32) -> (i32, i32) {
    %c0_i32 = arith.constant 0 : i32
    %c0_i32_0 = arith.constant 0 : i32
    %c0_i32_1 = arith.constant 0 : i32
    return %c0_i32, %c0_i32_0 : i32, i32
  }
  func.func @transform_8(%arg0: i32) -> (i32, i32) {
    %c0_i32 = arith.constant 0 : i32
    %c0_i32_0 = arith.constant 0 : i32
    %c0_i32_1 = arith.constant 0 : i32
    return %c0_i32, %c0_i32_0 : i32, i32
  }
  func.func @transform_9(%arg0: i32) -> (i32, i32) {
    %c0_i32 = arith.constant 0 : i32
    %c0_i32_0 = arith.constant 0 : i32
    %c0_i32_1 = arith.constant 0 : i32
    return %c0_i32, %c0_i32_0 : i32, i32
  }
  func.func @transform_10(%arg0: i32) -> (i32, i32) {
    %c0_i32 = arith.constant 0 : i32
    %c0_i32_0 = arith.constant 0 : i32
    %c0_i32_1 = arith.constant 0 : i32
    return %c0_i32, %c0_i32_0 : i32, i32
  }
  func.func @transform_11(%arg0: i32) -> (i32, i32) {
    %c0_i32 = arith.constant 0 : i32
    %c0_i32_0 = arith.constant 0 : i32
    %c0_i32_1 = arith.constant 0 : i32
    return %c0_i32, %c0_i32_0 : i32, i32
  }
  func.func @transform_12(%arg0: i32) -> (i32, i32) {
    %c0_i32 = arith.constant 0 : i32
    %c0_i32_0 = arith.constant 0 : i32
    %c0_i32_1 = arith.constant 0 : i32
    return %c0_i32, %c0_i32_0 : i32, i32
  }
  func.func @transform_13(%arg0: i32) -> (i32, i32) {
    %c0_i32 = arith.constant 0 : i32
    %c0_i32_0 = arith.constant 0 : i32
    %c0_i32_1 = arith.constant 0 : i32
    return %c0_i32, %c0_i32_0 : i32, i32
  }
  func.func @transform_14(%arg0: i32) -> (i32, i32) {
    %c0_i32 = arith.constant 0 : i32
    %c0_i32_0 = arith.constant 0 : i32
    %c0_i32_1 = arith.constant 0 : i32
    return %c0_i32, %c0_i32_0 : i32, i32
  }
  func.func @transform_15(%arg0: i32) -> (i32, i32) {
    %c0_i32 = arith.constant 0 : i32
    %c0_i32_0 = arith.constant 0 : i32
    %c0_i32_1 = arith.constant 0 : i32
    return %c0_i32, %c0_i32_0 : i32, i32
  }
  func.func @transform_16(%arg0: i32) -> (i32, i32) {
    %c0_i32 = arith.constant 0 : i32
    %c0_i32_0 = arith.constant 0 : i32
    %c0_i32_1 = arith.constant 0 : i32
    return %c0_i32, %c0_i32_0 : i32, i32
  }
  func.func @transform_17(%arg0: i32) -> (i32, i32) {
    %c0_i32 = arith.constant 0 : i32
    %c0_i32_0 = arith.constant 0 : i32
    %c0_i32_1 = arith.constant 0 : i32
    return %c0_i32, %c0_i32_0 : i32, i32
  }
  func.func @transform_18(%arg0: i32) -> (i32, i32) {
    %c0_i32 = arith.constant 0 : i32
    %c0_i32_0 = arith.constant 0 : i32
    %c0_i32_1 = arith.constant 0 : i32
    return %c0_i32, %c0_i32_0 : i32, i32
  }
  func.func @transform_19(%arg0: i32) -> (i32, i32) {
    %c0_i32 = arith.constant 0 : i32
    %c0_i32_0 = arith.constant 0 : i32
    %c0_i32_1 = arith.constant 0 : i32
    return %c0_i32, %c0_i32_0 : i32, i32
  }
  func.func @transform_20(%arg0: i32) -> (i32, i32) {
    %c0_i32 = arith.constant 0 : i32
    %c0_i32_0 = arith.constant 0 : i32
    %c0_i32_1 = arith.constant 0 : i32
    return %c0_i32, %c0_i32_0 : i32, i32
  }
  func.func @transform_21(%arg0: i32) -> (i32, i32) {
    %c0_i32 = arith.constant 0 : i32
    %c0_i32_0 = arith.constant 0 : i32
    %c0_i32_1 = arith.constant 0 : i32
    return %c0_i32, %c0_i32_0 : i32, i32
  }
  func.func @transform_22(%arg0: i32) -> (i32, i32) {
    %c0_i32 = arith.constant 0 : i32
    %c0_i32_0 = arith.constant 0 : i32
    %c0_i32_1 = arith.constant 0 : i32
    return %c0_i32, %c0_i32_0 : i32, i32
  }
  func.func @transform_23(%arg0: i32) -> (i32, i32) {
    %c0_i32 = arith.constant 0 : i32
    %c0_i32_0 = arith.constant 0 : i32
    %c0_i32_1 = arith.constant 0 : i32
    return %c0_i32, %c0_i32_0 : i32, i32
  }
  func.func @transform_24(%arg0: i32) -> (i32, i32) {
    %c0_i32 = arith.constant 0 : i32
    %c0_i32_0 = arith.constant 0 : i32
    %c0_i32_1 = arith.constant 0 : i32
    return %c0_i32, %c0_i32_0 : i32, i32
  }
  func.func @transform_25(%arg0: i32) -> (i32, i32, i32) {
    %c0_i32 = arith.constant 0 : i32
    %c0_i32_0 = arith.constant 0 : i32
    %c0_i32_1 = arith.constant 0 : i32
    %c0_i32_2 = arith.constant 0 : i32
    return %c0_i32, %c0_i32_0, %c0_i32_1 : i32, i32, i32
  }
}

</mosaic_0001>

<llo_original>
// kernel: crn_dual_forward.3
$region0: #{crn_dual_forward.3}
  #allocation0 [shape = 'u32[]', space=smem, size = 0x4, offset = 0x4, fixed_abs, tag = 'smem constant byte address 0x4 - core index']
  #allocation1 [shape = 'u32[144,128]{1,0:T(1,128)}', space=vmem, size = 0x12000, scoped, tag = 'internal scratch']
  %s0 = inlined_call_operand.vmem [shape: f32[2,2,8,128], index: 0, kind: input, shape index: {}]
  %s1 = inlined_call_operand.vmem [shape: bf16[128,64], index: 1, kind: input, shape index: {}]
  %s2 = inlined_call_operand.vmem [shape: f32[1,64], index: 2, kind: input, shape index: {}]
  %s3 = inlined_call_operand.vmem [shape: bf16[64,64], index: 3, kind: input, shape index: {}]
  %s4 = inlined_call_operand.vmem [shape: f32[1,64], index: 4, kind: input, shape index: {}]
  %s5 = inlined_call_operand.vmem [shape: bf16[128,64], index: 5, kind: input, shape index: {}]
  %s6 = inlined_call_operand.vmem [shape: f32[1,64], index: 6, kind: input, shape index: {}]
  %s7 = inlined_call_operand.vmem [shape: bf16[64,64], index: 7, kind: input, shape index: {}]
  %s8 = inlined_call_operand.vmem [shape: f32[1,64], index: 8, kind: input, shape index: {}]
  %s9 = inlined_call_operand.vmem [shape: bf16[64,128], index: 9, kind: input, shape index: {}]
  %s10 = inlined_call_operand.vmem [shape: f32[1,128], index: 10, kind: input, shape index: {}]
  %s11 = inlined_call_operand.vmem [shape: bf16[64,128], index: 11, kind: input, shape index: {}]
  %s12 = inlined_call_operand.vmem [shape: f32[1,128], index: 12, kind: input, shape index: {}]
  %s13 = inlined_call_operand.vmem [shape: bf16[256,128], index: 13, kind: input, shape index: {}]
  %s14 = inlined_call_operand.vmem [shape: f32[1,128], index: 14, kind: input, shape index: {}]
  %s15 = inlined_call_operand.vmem [shape: bf16[256,128], index: 15, kind: input, shape index: {}]
  %s16 = inlined_call_operand.vmem [shape: f32[1,128], index: 16, kind: input, shape index: {}]
  %s17 = inlined_call_operand.vmem [shape: bf16[128,128], index: 17, kind: input, shape index: {}]
  %s18 = inlined_call_operand.vmem [shape: f32[1,128], index: 18, kind: input, shape index: {}]
  %s19 = inlined_call_operand.vmem [shape: bf16[128,128], index: 19, kind: input, shape index: {}]
  %s20 = inlined_call_operand.vmem [shape: f32[1,128], index: 20, kind: input, shape index: {}]
  %s21 = inlined_call_operand.vmem [shape: bf16[128,128], index: 21, kind: input, shape index: {}]
  %s22 = inlined_call_operand.vmem [shape: f32[1,128], index: 22, kind: input, shape index: {}]
  %s23 = inlined_call_operand.vmem [shape: bf16[128,128], index: 23, kind: input, shape index: {}]
  %s24 = inlined_call_operand.vmem [shape: f32[1,128], index: 24, kind: input, shape index: {}]
  %s25 = inlined_call_operand.vmem [shape: f32[2,8,128], index: 25, kind: output, shape index: {}]
  %s26 = sld [smem:[#allocation0]]
  $region110: #{crn_dual_forward.3} parent=0
    _
  %s28 = ssub.s32 1, %s26
  %s29 = scalar_select 0, %s28, %s26
  // Predicated region
  $region2: #{crn_dual_forward.3} parent=0 // pred_check
    _
  $region3: #{crn_dual_forward.3} parent=0 // pred_check_branch
    %31 = sbr.rel (0) target = $region5
  $region4: #{crn_dual_forward.3} parent=0 // pred_region
    _
  $region5: #{crn_dual_forward.3} parent=0 // pred_fallthru
    _
  // Predicated region
  $region6: #{crn_dual_forward.3} parent=0 // pred_check
    _
  $region7: #{crn_dual_forward.3} parent=0 // pred_check_branch
    %33 = sbr.rel (0) target = $region9
  $region8: #{crn_dual_forward.3} parent=0 // pred_region
    _
  $region9: #{crn_dual_forward.3} parent=0 // pred_fallthru
    _
  // Predicated region
  $region10: #{crn_dual_forward.3} parent=0 // pred_check
    _
  $region11: #{crn_dual_forward.3} parent=0 // pred_check_branch
    %35 = sbr.rel (0) target = $region13
  $region12: #{crn_dual_forward.3} parent=0 // pred_region
    _
  $region13: #{crn_dual_forward.3} parent=0 // pred_fallthru
    _
  // Predicated region
  $region14: #{crn_dual_forward.3} parent=0 // pred_check
    _
  $region15: #{crn_dual_forward.3} parent=0 // pred_check_branch
    %37 = sbr.rel (0) target = $region17
  $region16: #{crn_dual_forward.3} parent=0 // pred_region
    _
  $region17: #{crn_dual_forward.3} parent=0 // pred_fallthru
    _
  // Predicated region
  $region18: #{crn_dual_forward.3} parent=0 // pred_check
    _
  $region19: #{crn_dual_forward.3} parent=0 // pred_check_branch
    %39 = sbr.rel (0) target = $region21
  $region20: #{crn_dual_forward.3} parent=0 // pred_region
    _
  $region21: #{crn_dual_forward.3} parent=0 // pred_fallthru
    _
  // Predicated region
  $region22: #{crn_dual_forward.3} parent=0 // pred_check
    _
  $region23: #{crn_dual_forward.3} parent=0 // pred_check_branch
    %41 = sbr.rel (0) target = $region25
  $region24: #{crn_dual_forward.3} parent=0 // pred_region
    _
  $region25: #{crn_dual_forward.3} parent=0 // pred_fallthru
    _
  // Predicated region
  $region26: #{crn_dual_forward.3} parent=0 // pred_check
    _
  $region27: #{crn_dual_forward.3} parent=0 // pred_check_branch
    %43 = sbr.rel (0) target = $region29
  $region28: #{crn_dual_forward.3} parent=0 // pred_region
    _
  $region29: #{crn_dual_forward.3} parent=0 // pred_fallthru
    _
  // Predicated region
  $region30: #{crn_dual_forward.3} parent=0 // pred_check
    _
  $region31: #{crn_dual_forward.3} parent=0 // pred_check_branch
    %45 = sbr.rel (0) target = $region33
  $region32: #{crn_dual_forward.3} parent=0 // pred_region
    _
  $region33: #{crn_dual_forward.3} parent=0 // pred_fallthru
    _
  // Predicated region
  $region34: #{crn_dual_forward.3} parent=0 // pred_check
    _
  $region35: #{crn_dual_forward.3} parent=0 // pred_check_branch
    %47 = sbr.rel (0) target = $region37
  $region36: #{crn_dual_forward.3} parent=0 // pred_region
    _
  $region37: #{crn_dual_forward.3} parent=0 // pred_fallthru
    _
  // Predicated region
  $region38: #{crn_dual_forward.3} parent=0 // pred_check
    _
  $region39: #{crn_dual_forward.3} parent=0 // pred_check_branch
    %49 = sbr.rel (0) target = $region41
  $region40: #{crn_dual_forward.3} parent=0 // pred_region
    _
  $region41: #{crn_dual_forward.3} parent=0 // pred_fallthru
    _
  // Predicated region
  $region42: #{crn_dual_forward.3} parent=0 // pred_check
    _
  $region43: #{crn_dual_forward.3} parent=0 // pred_check_branch
    %51 = sbr.rel (0) target = $region45
  $region44: #{crn_dual_forward.3} parent=0 // pred_region
    _
  $region45: #{crn_dual_forward.3} parent=0 // pred_fallthru
    _
  // Predicated region
  $region46: #{crn_dual_forward.3} parent=0 // pred_check
    _
  $region47: #{crn_dual_forward.3} parent=0 // pred_check_branch
    %53 = sbr.rel (0) target = $region49
  $region48: #{crn_dual_forward.3} parent=0 // pred_region
    _
  $region49: #{crn_dual_forward.3} parent=0 // pred_fallthru
    _
  // Predicated region
  $region50: #{crn_dual_forward.3} parent=0 // pred_check
    _
  $region51: #{crn_dual_forward.3} parent=0 // pred_check_branch
    %55 = sbr.rel (0) target = $region53
  $region52: #{crn_dual_forward.3} parent=0 // pred_region
    _
  $region53: #{crn_dual_forward.3} parent=0 // pred_fallthru
    _
  // Predicated region
  $region54: #{crn_dual_forward.3} parent=0 // pred_check
    _
  $region55: #{crn_dual_forward.3} parent=0 // pred_check_branch
    %57 = sbr.rel (0) target = $region57
  $region56: #{crn_dual_forward.3} parent=0 // pred_region
    _
  $region57: #{crn_dual_forward.3} parent=0 // pred_fallthru
    _
  // Predicated region
  $region58: #{crn_dual_forward.3} parent=0 // pred_check
    _
  $region59: #{crn_dual_forward.3} parent=0 // pred_check_branch
    %59 = sbr.rel (0) target = $region61
  $region60: #{crn_dual_forward.3} parent=0 // pred_region
    _
  $region61: #{crn_dual_forward.3} parent=0 // pred_fallthru
    _
  // Predicated region
  $region62: #{crn_dual_forward.3} parent=0 // pred_check
    _
  $region63: #{crn_dual_forward.3} parent=0 // pred_check_branch
    %61 = sbr.rel (0) target = $region65
  $region64: #{crn_dual_forward.3} parent=0 // pred_region
    _
  $region65: #{crn_dual_forward.3} parent=0 // pred_fallthru
    _
  // Predicated region
  $region66: #{crn_dual_forward.3} parent=0 // pred_check
    _
  $region67: #{crn_dual_forward.3} parent=0 // pred_check_branch
    %63 = sbr.rel (0) target = $region69
  $region68: #{crn_dual_forward.3} parent=0 // pred_region
    _
  $region69: #{crn_dual_forward.3} parent=0 // pred_fallthru
    _
  // Predicated region
  $region70: #{crn_dual_forward.3} parent=0 // pred_check
    _
  $region71: #{crn_dual_forward.3} parent=0 // pred_check_branch
    %65 = sbr.rel (0) target = $region73
  $region72: #{crn_dual_forward.3} parent=0 // pred_region
    _
  $region73: #{crn_dual_forward.3} parent=0 // pred_fallthru
    _
  // Predicated region
  $region74: #{crn_dual_forward.3} parent=0 // pred_check
    _
  $region75: #{crn_dual_forward.3} parent=0 // pred_check_branch
    %67 = sbr.rel (0) target = $region77
  $region76: #{crn_dual_forward.3} parent=0 // pred_region
    _
  $region77: #{crn_dual_forward.3} parent=0 // pred_fallthru
    _
  // Predicated region
  $region78: #{crn_dual_forward.3} parent=0 // pred_check
    _
  $region79: #{crn_dual_forward.3} parent=0 // pred_check_branch
    %69 = sbr.rel (0) target = $region81
  $region80: #{crn_dual_forward.3} parent=0 // pred_region
    _
  $region81: #{crn_dual_forward.3} parent=0 // pred_fallthru
    _
  // Predicated region
  $region82: #{crn_dual_forward.3} parent=0 // pred_check
    _
  $region83: #{crn_dual_forward.3} parent=0 // pred_check_branch
    %71 = sbr.rel (0) target = $region85
  $region84: #{crn_dual_forward.3} parent=0 // pred_region
    _
  $region85: #{crn_dual_forward.3} parent=0 // pred_fallthru
    _
  // Predicated region
  $region86: #{crn_dual_forward.3} parent=0 // pred_check
    _
  $region87: #{crn_dual_forward.3} parent=0 // pred_check_branch
    %73 = sbr.rel (0) target = $region89
  $region88: #{crn_dual_forward.3} parent=0 // pred_region
    _
  $region89: #{crn_dual_forward.3} parent=0 // pred_fallthru
    _
  // Predicated region
  $region90: #{crn_dual_forward.3} parent=0 // pred_check
    _
  $region91: #{crn_dual_forward.3} parent=0 // pred_check_branch
    %75 = sbr.rel (0) target = $region93
  $region92: #{crn_dual_forward.3} parent=0 // pred_region
    _
  $region93: #{crn_dual_forward.3} parent=0 // pred_fallthru
    _
  // Predicated region
  $region94: #{crn_dual_forward.3} parent=0 // pred_check
    _
  $region95: #{crn_dual_forward.3} parent=0 // pred_check_branch
    %77 = sbr.rel (0) target = $region97
  $region96: #{crn_dual_forward.3} parent=0 // pred_region
    _
  $region97: #{crn_dual_forward.3} parent=0 // pred_fallthru
    _
  // Predicated region
  $region98: #{crn_dual_forward.3} parent=0 // pred_check
    _
  $region99: #{crn_dual_forward.3} parent=0 // pred_check_branch
    %79 = sbr.rel (0) target = $region101
  $region100: #{crn_dual_forward.3} parent=0 // pred_region
    _
  $region101: #{crn_dual_forward.3} parent=0 // pred_fallthru
    _
  %v81 = vld [vmem:[%s0] sm:$0xff]
  %v82 = vld [vmem:[%s0 + $0x8] sm:$0xff]
  %s83 = scalar_lea.vmem %s0, 16
  %v84 = vld [vmem:[%s83] sm:$0xff]
  %v85 = vld [vmem:[%s83 + $0x8] sm:$0xff]
  %v86 = vpack.c.bf16 %v82, %v81
  %v87 = vld [vmem:[%s1] sm:$0xf]
  %v88 = vld [vmem:[%s1 + $0x4] sm:$0xf]
  %v89 = vld [vmem:[%s1 + $0x8] sm:$0xf]
  %v90 = vld [vmem:[%s1 + $0xc] sm:$0xf]
  %v91 = vld [vmem:[%s1 + $0x10] sm:$0xf]
  %v92 = vld [vmem:[%s1 + $0x14] sm:$0xf]
  %v93 = vld [vmem:[%s1 + $0x18] sm:$0xf]
  %v94 = vld [vmem:[%s1 + $0x1c] sm:$0xf]
  %v95 = vld [vmem:[%s1 + $0x20] sm:$0xf]
  %v96 = vld [vmem:[%s1 + $0x24] sm:$0xf]
  %v97 = vld [vmem:[%s1 + $0x28] sm:$0xf]
  %v98 = vld [vmem:[%s1 + $0x2c] sm:$0xf]
  %v99 = vld [vmem:[%s1 + $0x30] sm:$0xf]
  %v100 = vld [vmem:[%s1 + $0x34] sm:$0xf]
  %v101 = vld [vmem:[%s1 + $0x38] sm:$0xf]
  %v102 = vld [vmem:[%s1 + $0x3c] sm:$0xf]
  %v103 = vld [vmem:[%s2] sm:$0x1]
  %v105 = vlaneseq
  %v106 = vshrl.u32 %v105, 7
  %v107 = vsub.s32 0, %v106
  %v108 = vrot.slane %v103, %v107
  %v126 = vunpack.c.l.b16 %v87
  %v127 = vunpack.c.l.b16 %v88
  %v128 = vunpack.c.l.b16 %v89
  %v129 = vunpack.c.l.b16 %v90
  %v130 = vunpack.c.l.b16 %v91
  %v131 = vunpack.c.l.b16 %v92
  %v132 = vunpack.c.l.b16 %v93
  %v133 = vunpack.c.l.b16 %v94
  %v134 = vunpack.c.l.b16 %v95
  %v135 = vunpack.c.l.b16 %v96
  %v136 = vunpack.c.l.b16 %v97
  %v137 = vunpack.c.l.b16 %v98
  %v138 = vunpack.c.l.b16 %v99
  %v139 = vunpack.c.l.b16 %v100
  %v140 = vunpack.c.l.b16 %v101
  %v141 = vunpack.c.l.b16 %v102
  %v142 = vpack.c.b16 %v127, %v126
  %v143 = vpack.c.b16 %v129, %v128
  %v144 = vpack.c.b16 %v131, %v130
  %v145 = vpack.c.b16 %v133, %v132
  %v146 = vpack.c.b16 %v135, %v134
  %v147 = vpack.c.b16 %v137, %v136
  %v148 = vpack.c.b16 %v139, %v138
  %v149 = vpack.c.b16 %v141, %v140
  %158 = vmatprep.subr.bf16.mxu0 0
  %159 = vmatpush1.bf16.msra.mxu0 %v142
  %160 = vmatprep.subr.bf16.mxu0 0
  %161 = vmatpush1.bf16.msra.mxu0 %v143
  %162 = vmatprep.subr.bf16.mxu0 0
  %163 = vmatpush1.bf16.msra.mxu0 %v144
  %164 = vmatprep.subr.bf16.mxu0 0
  %165 = vmatpush1.bf16.msra.mxu0 %v145
  %166 = vmatprep.subr.bf16.mxu0 0
  %167 = vmatpush1.bf16.msra.mxu0 %v146
  %168 = vmatprep.subr.bf16.mxu0 0
  %169 = vmatpush1.bf16.msra.mxu0 %v147
  %170 = vmatprep.subr.bf16.mxu0 0
  %171 = vmatpush1.bf16.msra.mxu0 %v148
  %172 = vmatprep.subr.bf16.mxu0 0
  %173 = vmatpush1.bf16.msra.mxu0 %v149
  %174 = vmatprep.subr.bf16.mxu0 0
  %175 = vmatpush1.bf16.msra.mxu0 0
  %176 = vmatprep.subr.bf16.mxu0 0
  %177 = vmatpush1.bf16.msra.mxu0 0
  %178 = vmatprep.subr.bf16.mxu0 0
  %179 = vmatpush1.bf16.msra.mxu0 0
  %180 = vmatprep.subr.bf16.mxu0 0
  %181 = vmatpush1.bf16.msra.mxu0 0
  %182 = vmatprep.subr.bf16.mxu0 0
  %183 = vmatpush1.bf16.msra.mxu0 0
  %184 = vmatprep.subr.bf16.mxu0 0
  %185 = vmatpush1.bf16.msra.mxu0 0
  %186 = vmatprep.subr.bf16.mxu0 0
  %187 = vmatpush1.bf16.msra.mxu0 0
  %188 = vmatprep.subr.bf16.mxu0 0
  %189 = vmatpush1.bf16.msra.mxu0 0
  %190 = vmatprep.mubr.bf16.mxu0 0
  %191 = vmatmul.mubr.bf16.gmra.mrb[0].mxu0 %v86
  %v192 = vpop.f32.mrb[0].mxu0
  %v193 = vadd.f32 %v108, %v192
  %v194 = vpop.f32.mrb[0].mxu0
  %v195 = vpop.f32.mrb[0].mxu0
  %v196 = vadd.f32 %v108, %v195
  %v197 = vpop.f32.mrb[0].mxu0
  %198 = vdwg.mxu0
  %v199 = vmax.f32 %v193, 0.0
  %v200 = vmax.f32 %v196, 0.0
  %v201 = vpack.c.bf16 %v200, %v199
  %v202 = vld [vmem:[%s3] sm:$0xf]
  %v203 = vld [vmem:[%s3 + $0x4] sm:$0xf]
  %v204 = vld [vmem:[%s3 + $0x8] sm:$0xf]
  %v205 = vld [vmem:[%s3 + $0xc] sm:$0xf]
  %v206 = vld [vmem:[%s3 + $0x10] sm:$0xf]
  %v207 = vld [vmem:[%s3 + $0x14] sm:$0xf]
  %v208 = vld [vmem:[%s3 + $0x18] sm:$0xf]
  %v209 = vld [vmem:[%s3 + $0x1c] sm:$0xf]
  %v210 = vld [vmem:[%s4] sm:$0x1]
  %v212 = vlaneseq
  %v213 = vshrl.u32 %v212, 7
  %v214 = vsub.s32 0, %v213
  %v215 = vrot.slane %v210, %v214
  %v225 = vunpack.c.l.b16 %v202
  %v226 = vunpack.c.l.b16 %v203
  %v227 = vunpack.c.l.b16 %v204
  %v228 = vunpack.c.l.b16 %v205
  %v229 = vunpack.c.l.b16 %v206
  %v230 = vunpack.c.l.b16 %v207
  %v231 = vunpack.c.l.b16 %v208
  %v232 = vunpack.c.l.b16 %v209
  %v233 = vpack.c.b16 %v226, %v225
  %v234 = vpack.c.b16 %v228, %v227
  %v235 = vpack.c.b16 %v230, %v229
  %v236 = vpack.c.b16 %v232, %v231
  %vm241 = vcmask 523264
  %v243 = vsel %vm241, %v201, 0
  %245 = vmatprep.subr.bf16.mxu0 0
  %246 = vmatpush1.bf16.msra.mxu0 %v233
  %247 = vmatprep.subr.bf16.mxu0 0
  %248 = vmatpush1.bf16.msra.mxu0 %v234
  %249 = vmatprep.subr.bf16.mxu0 0
  %250 = vmatpush1.bf16.msra.mxu0 %v235
  %251 = vmatprep.subr.bf16.mxu0 0
  %252 = vmatpush1.bf16.msra.mxu0 %v236
  %253 = vmatprep.subr.bf16.mxu0 0
  %254 = vmatpush1.bf16.msra.mxu0 0
  %255 = vmatprep.subr.bf16.mxu0 0
  %256 = vmatpush1.bf16.msra.mxu0 0
  %257 = vmatprep.subr.bf16.mxu0 0
  %258 = vmatpush1.bf16.msra.mxu0 0
  %259 = vmatprep.subr.bf16.mxu0 0
  %260 = vmatpush1.bf16.msra.mxu0 0
  %261 = vmatprep.subr.bf16.mxu0 0
  %262 = vmatpush1.bf16.msra.mxu0 0
  %263 = vmatprep.subr.bf16.mxu0 0
  %264 = vmatpush1.bf16.msra.mxu0 0
  %265 = vmatprep.subr.bf16.mxu0 0
  %266 = vmatpush1.bf16.msra.mxu0 0
  %267 = vmatprep.subr.bf16.mxu0 0
  %268 = vmatpush1.bf16.msra.mxu0 0
  %269 = vmatprep.subr.bf16.mxu0 0
  %270 = vmatpush1.bf16.msra.mxu0 0
  %271 = vmatprep.subr.bf16.mxu0 0
  %272 = vmatpush1.bf16.msra.mxu0 0
  %273 = vmatprep.subr.bf16.mxu0 0
  %274 = vmatpush1.bf16.msra.mxu0 0
  %275 = vmatprep.subr.bf16.mxu0 0
  %276 = vmatpush1.bf16.msra.mxu0 0
  %277 = vmatprep.mubr.bf16.mxu0 0
  %278 = vmatmul.mubr.bf16.gmra.mrb[0].mxu0 %v243
  %v279 = vpop.f32.mrb[0].mxu0
  %v280 = vadd.f32 %v215, %v279
  %v281 = vpop.f32.mrb[0].mxu0
  %v282 = vpop.f32.mrb[0].mxu0
  %v283 = vadd.f32 %v215, %v282
  %v284 = vpop.f32.mrb[0].mxu0
  %285 = vdwg.mxu0
  %v286 = vpack.c.bf16 %v85, %v84
  %v287 = vld [vmem:[%s5] sm:$0xf]
  %v288 = vld [vmem:[%s5 + $0x4] sm:$0xf]
  %v289 = vld [vmem:[%s5 + $0x8] sm:$0xf]
  %v290 = vld [vmem:[%s5 + $0xc] sm:$0xf]
  %v291 = vld [vmem:[%s5 + $0x10] sm:$0xf]
  %v292 = vld [vmem:[%s5 + $0x14] sm:$0xf]
  %v293 = vld [vmem:[%s5 + $0x18] sm:$0xf]
  %v294 = vld [vmem:[%s5 + $0x1c] sm:$0xf]
  %v295 = vld [vmem:[%s5 + $0x20] sm:$0xf]
  %v296 = vld [vmem:[%s5 + $0x24] sm:$0xf]
  %v297 = vld [vmem:[%s5 + $0x28] sm:$0xf]
  %v298 = vld [vmem:[%s5 + $0x2c] sm:$0xf]
  %v299 = vld [vmem:[%s5 + $0x30] sm:$0xf]
  %v300 = vld [vmem:[%s5 + $0x34] sm:$0xf]
  %v301 = vld [vmem:[%s5 + $0x38] sm:$0xf]
  %v302 = vld [vmem:[%s5 + $0x3c] sm:$0xf]
  %v303 = vld [vmem:[%s6] sm:$0x1]
  %v305 = vlaneseq
  %v306 = vshrl.u32 %v305, 7
  %v307 = vsub.s32 0, %v306
  %v308 = vrot.slane %v303, %v307
  %v326 = vunpack.c.l.b16 %v287
  %v327 = vunpack.c.l.b16 %v288
  %v328 = vunpack.c.l.b16 %v289
  %v329 = vunpack.c.l.b16 %v290
  %v330 = vunpack.c.l.b16 %v291
  %v331 = vunpack.c.l.b16 %v292
  %v332 = vunpack.c.l.b16 %v293
  %v333 = vunpack.c.l.b16 %v294
  %v334 = vunpack.c.l.b16 %v295
  %v335 = vunpack.c.l.b16 %v296
  %v336 = vunpack.c.l.b16 %v297
  %v337 = vunpack.c.l.b16 %v298
  %v338 = vunpack.c.l.b16 %v299
  %v339 = vunpack.c.l.b16 %v300
  %v340 = vunpack.c.l.b16 %v301
  %v341 = vunpack.c.l.b16 %v302
  %v342 = vpack.c.b16 %v327, %v326
  %v343 = vpack.c.b16 %v329, %v328
  %v344 = vpack.c.b16 %v331, %v330
  %v345 = vpack.c.b16 %v333, %v332
  %v346 = vpack.c.b16 %v335, %v334
  %v347 = vpack.c.b16 %v337, %v336
  %v348 = vpack.c.b16 %v339, %v338
  %v349 = vpack.c.b16 %v341, %v340
  %358 = vmatprep.subr.bf16.mxu0 0
  %359 = vmatpush1.bf16.msra.mxu0 %v342
  %360 = vmatprep.subr.bf16.mxu0 0
  %361 = vmatpush1.bf16.msra.mxu0 %v343
  %362 = vmatprep.subr.bf16.mxu0 0
  %363 = vmatpush1.bf16.msra.mxu0 %v344
  %364 = vmatprep.subr.bf16.mxu0 0
  %365 = vmatpush1.bf16.msra.mxu0 %v345
  %366 = vmatprep.subr.bf16.mxu0 0
  %367 = vmatpush1.bf16.msra.mxu0 %v346
  %368 = vmatprep.subr.bf16.mxu0 0
  %369 = vmatpush1.bf16.msra.mxu0 %v347
  %370 = vmatprep.subr.bf16.mxu0 0
  %371 = vmatpush1.bf16.msra.mxu0 %v348
  %372 = vmatprep.subr.bf16.mxu0 0
  %373 = vmatpush1.bf16.msra.mxu0 %v349
  %374 = vmatprep.subr.bf16.mxu0 0
  %375 = vmatpush1.bf16.msra.mxu0 0
  %376 = vmatprep.subr.bf16.mxu0 0
  %377 = vmatpush1.bf16.msra.mxu0 0
  %378 = vmatprep.subr.bf16.mxu0 0
  %379 = vmatpush1.bf16.msra.mxu0 0
  %380 = vmatprep.subr.bf16.mxu0 0
  %381 = vmatpush1.bf16.msra.mxu0 0
  %382 = vmatprep.subr.bf16.mxu0 0
  %383 = vmatpush1.bf16.msra.mxu0 0
  %384 = vmatprep.subr.bf16.mxu0 0
  %385 = vmatpush1.bf16.msra.mxu0 0
  %386 = vmatprep.subr.bf16.mxu0 0
  %387 = vmatpush1.bf16.msra.mxu0 0
  %388 = vmatprep.subr.bf16.mxu0 0
  %389 = vmatpush1.bf16.msra.mxu0 0
  %390 = vmatprep.mubr.bf16.mxu0 0
  %391 = vmatmul.mubr.bf16.gmra.mrb[0].mxu0 %v286
  %v392 = vpop.f32.mrb[0].mxu0
  %v393 = vadd.f32 %v308, %v392
  %v394 = vpop.f32.mrb[0].mxu0
  %v395 = vpop.f32.mrb[0].mxu0
  %v396 = vadd.f32 %v308, %v395
  %v397 = vpop.f32.mrb[0].mxu0
  %398 = vdwg.mxu0
  %v399 = vmax.f32 %v393, 0.0
  %v400 = vmax.f32 %v396, 0.0
  %v401 = vpack.c.bf16 %v400, %v399
  %v402 = vld [vmem:[%s7] sm:$0xf]
  %v403 = vld [vmem:[%s7 + $0x4] sm:$0xf]
  %v404 = vld [vmem:[%s7 + $0x8] sm:$0xf]
  %v405 = vld [vmem:[%s7 + $0xc] sm:$0xf]
  %v406 = vld [vmem:[%s7 + $0x10] sm:$0xf]
  %v407 = vld [vmem:[%s7 + $0x14] sm:$0xf]
  %v408 = vld [vmem:[%s7 + $0x18] sm:$0xf]
  %v409 = vld [vmem:[%s7 + $0x1c] sm:$0xf]
  %v410 = vld [vmem:[%s8] sm:$0x1]
  %v412 = vlaneseq
  %v413 = vshrl.u32 %v412, 7
  %v414 = vsub.s32 0, %v413
  %v415 = vrot.slane %v410, %v414
  %v425 = vunpack.c.l.b16 %v402
  %v426 = vunpack.c.l.b16 %v403
  %v427 = vunpack.c.l.b16 %v404
  %v428 = vunpack.c.l.b16 %v405
  %v429 = vunpack.c.l.b16 %v406
  %v430 = vunpack.c.l.b16 %v407
  %v431 = vunpack.c.l.b16 %v408
  %v432 = vunpack.c.l.b16 %v409
  %v433 = vpack.c.b16 %v426, %v425
  %v434 = vpack.c.b16 %v428, %v427
  %v435 = vpack.c.b16 %v430, %v429
  %v436 = vpack.c.b16 %v432, %v431
  %v442 = vsel %vm241, %v401, 0
  %444 = vmatprep.subr.bf16.mxu0 0
  %445 = vmatpush1.bf16.msra.mxu0 %v433
  %446 = vmatprep.subr.bf16.mxu0 0
  %447 = vmatpush1.bf16.msra.mxu0 %v434
  %448 = vmatprep.subr.bf16.mxu0 0
  %449 = vmatpush1.bf16.msra.mxu0 %v435
  %450 = vmatprep.subr.bf16.mxu0 0
  %451 = vmatpush1.bf16.msra.mxu0 %v436
  %452 = vmatprep.subr.bf16.mxu0 0
  %453 = vmatpush1.bf16.msra.mxu0 0
  %454 = vmatprep.subr.bf16.mxu0 0
  %455 = vmatpush1.bf16.msra.mxu0 0
  %456 = vmatprep.subr.bf16.mxu0 0
  %457 = vmatpush1.bf16.msra.mxu0 0
  %458 = vmatprep.subr.bf16.mxu0 0
  %459 = vmatpush1.bf16.msra.mxu0 0
  %460 = vmatprep.subr.bf16.mxu0 0
  %461 = vmatpush1.bf16.msra.mxu0 0
  %462 = vmatprep.subr.bf16.mxu0 0
  %463 = vmatpush1.bf16.msra.mxu0 0
  %464 = vmatprep.subr.bf16.mxu0 0
  %465 = vmatpush1.bf16.msra.mxu0 0
  %466 = vmatprep.subr.bf16.mxu0 0
  %467 = vmatpush1.bf16.msra.mxu0 0
  %468 = vmatprep.subr.bf16.mxu0 0
  %469 = vmatpush1.bf16.msra.mxu0 0
  %470 = vmatprep.subr.bf16.mxu0 0
  %471 = vmatpush1.bf16.msra.mxu0 0
  %472 = vmatprep.subr.bf16.mxu0 0
  %473 = vmatpush1.bf16.msra.mxu0 0
  %474 = vmatprep.subr.bf16.mxu0 0
  %475 = vmatpush1.bf16.msra.mxu0 0
  %476 = vmatprep.mubr.bf16.mxu0 0
  %477 = vmatmul.mubr.bf16.gmra.mrb[0].mxu0 %v442
  %v478 = vpop.f32.mrb[0].mxu0
  %v479 = vadd.f32 %v415, %v478
  %v480 = vpop.f32.mrb[0].mxu0
  %v481 = vpop.f32.mrb[0].mxu0
  %v482 = vadd.f32 %v415, %v481
  %v483 = vpop.f32.mrb[0].mxu0
  %484 = vdwg.mxu0
  %v485 = vpack.c.bf16 %v283, %v280
  %v486 = vld [vmem:[%s9] sm:$0xf]
  %v487 = vld [vmem:[%s9 + $0x4] sm:$0xf]
  %v488 = vld [vmem:[%s9 + $0x8] sm:$0xf]
  %v489 = vld [vmem:[%s9 + $0xc] sm:$0xf]
  %v490 = vld [vmem:[%s9 + $0x10] sm:$0xf]
  %v491 = vld [vmem:[%s9 + $0x14] sm:$0xf]
  %v492 = vld [vmem:[%s9 + $0x18] sm:$0xf]
  %v493 = vld [vmem:[%s9 + $0x1c] sm:$0xf]
  %v494 = vld [vmem:[%s10] sm:$0x1]
  %v496 = vlaneseq
  %v497 = vshrl.u32 %v496, 7
  %v498 = vsub.s32 0, %v497
  %v499 = vrot.slane %v494, %v498
  %v509 = vunpack.c.l.b16 %v486
  %v510 = vunpack.c.l.b16 %v487
  %v511 = vunpack.c.l.b16 %v488
  %v512 = vunpack.c.l.b16 %v489
  %v513 = vunpack.c.l.b16 %v490
  %v514 = vunpack.c.l.b16 %v491
  %v515 = vunpack.c.l.b16 %v492
  %v516 = vunpack.c.l.b16 %v493
  %v517 = vpack.c.b16 %v510, %v509
  %v518 = vpack.c.b16 %v512, %v511
  %v519 = vpack.c.b16 %v514, %v513
  %v520 = vpack.c.b16 %v516, %v515
  %v526 = vsel %vm241, %v485, 0
  %528 = vmatprep.subr.bf16.mxu0 0
  %529 = vmatpush1.bf16.msra.mxu0 %v517
  %530 = vmatprep.subr.bf16.mxu0 0
  %531 = vmatpush1.bf16.msra.mxu0 %v518
  %532 = vmatprep.subr.bf16.mxu0 0
  %533 = vmatpush1.bf16.msra.mxu0 %v519
  %534 = vmatprep.subr.bf16.mxu0 0
  %535 = vmatpush1.bf16.msra.mxu0 %v520
  %536 = vmatprep.subr.bf16.mxu0 0
  %537 = vmatpush1.bf16.msra.mxu0 0
  %538 = vmatprep.subr.bf16.mxu0 0
  %539 = vmatpush1.bf16.msra.mxu0 0
  %540 = vmatprep.subr.bf16.mxu0 0
  %541 = vmatpush1.bf16.msra.mxu0 0
  %542 = vmatprep.subr.bf16.mxu0 0
  %543 = vmatpush1.bf16.msra.mxu0 0
  %544 = vmatprep.subr.bf16.mxu0 0
  %545 = vmatpush1.bf16.msra.mxu0 0
  %546 = vmatprep.subr.bf16.mxu0 0
  %547 = vmatpush1.bf16.msra.mxu0 0
  %548 = vmatprep.subr.bf16.mxu0 0
  %549 = vmatpush1.bf16.msra.mxu0 0
  %550 = vmatprep.subr.bf16.mxu0 0
  %551 = vmatpush1.bf16.msra.mxu0 0
  %552 = vmatprep.subr.bf16.mxu0 0
  %553 = vmatpush1.bf16.msra.mxu0 0
  %554 = vmatprep.subr.bf16.mxu0 0
  %555 = vmatpush1.bf16.msra.mxu0 0
  %556 = vmatprep.subr.bf16.mxu0 0
  %557 = vmatpush1.bf16.msra.mxu0 0
  %558 = vmatprep.subr.bf16.mxu0 0
  %559 = vmatpush1.bf16.msra.mxu0 0
  %560 = vmatprep.mubr.bf16.mxu0 0
  %561 = vmatmul.mubr.bf16.gmra.mrb[0].mxu0 %v526
  %v562 = vpop.f32.mrb[0].mxu0
  %v563 = vadd.f32 %v499, %v562
  %v564 = vpop.f32.mrb[0].mxu0
  %v565 = vpop.f32.mrb[0].mxu0
  %v566 = vadd.f32 %v499, %v565
  %v567 = vpop.f32.mrb[0].mxu0
  %568 = vdwg.mxu0
  %v569 = vpack.c.bf16 %v482, %v479
  %v570 = vld [vmem:[%s11] sm:$0xf]
  %v571 = vld [vmem:[%s11 + $0x4] sm:$0xf]
  %v572 = vld [vmem:[%s11 + $0x8] sm:$0xf]
  %v573 = vld [vmem:[%s11 + $0xc] sm:$0xf]
  %v574 = vld [vmem:[%s11 + $0x10] sm:$0xf]
  %v575 = vld [vmem:[%s11 + $0x14] sm:$0xf]
  %v576 = vld [vmem:[%s11 + $0x18] sm:$0xf]
  %v577 = vld [vmem:[%s11 + $0x1c] sm:$0xf]
  %v578 = vld [vmem:[%s12] sm:$0x1]
  %v580 = vlaneseq
  %v581 = vshrl.u32 %v580, 7
  %v582 = vsub.s32 0, %v581
  %v583 = vrot.slane %v578, %v582
  %v593 = vunpack.c.l.b16 %v570
  %v594 = vunpack.c.l.b16 %v571
  %v595 = vunpack.c.l.b16 %v572
  %v596 = vunpack.c.l.b16 %v573
  %v597 = vunpack.c.l.b16 %v574
  %v598 = vunpack.c.l.b16 %v575
  %v599 = vunpack.c.l.b16 %v576
  %v600 = vunpack.c.l.b16 %v577
  %v601 = vpack.c.b16 %v594, %v593
  %v602 = vpack.c.b16 %v596, %v595
  %v603 = vpack.c.b16 %v598, %v597
  %v604 = vpack.c.b16 %v600, %v599
  %v610 = vsel %vm241, %v569, 0
  %612 = vmatprep.subr.bf16.mxu0 0
  %613 = vmatpush1.bf16.msra.mxu0 %v601
  %614 = vmatprep.subr.bf16.mxu0 0
  %615 = vmatpush1.bf16.msra.mxu0 %v602
  %616 = vmatprep.subr.bf16.mxu0 0
  %617 = vmatpush1.bf16.msra.mxu0 %v603
  %618 = vmatprep.subr.bf16.mxu0 0
  %619 = vmatpush1.bf16.msra.mxu0 %v604
  %620 = vmatprep.subr.bf16.mxu0 0
  %621 = vmatpush1.bf16.msra.mxu0 0
  %622 = vmatprep.subr.bf16.mxu0 0
  %623 = vmatpush1.bf16.msra.mxu0 0
  %624 = vmatprep.subr.bf16.mxu0 0
  %625 = vmatpush1.bf16.msra.mxu0 0
  %626 = vmatprep.subr.bf16.mxu0 0
  %627 = vmatpush1.bf16.msra.mxu0 0
  %628 = vmatprep.subr.bf16.mxu0 0
  %629 = vmatpush1.bf16.msra.mxu0 0
  %630 = vmatprep.subr.bf16.mxu0 0
  %631 = vmatpush1.bf16.msra.mxu0 0
  %632 = vmatprep.subr.bf16.mxu0 0
  %633 = vmatpush1.bf16.msra.mxu0 0
  %634 = vmatprep.subr.bf16.mxu0 0
  %635 = vmatpush1.bf16.msra.mxu0 0
  %636 = vmatprep.subr.bf16.mxu0 0
  %637 = vmatpush1.bf16.msra.mxu0 0
  %638 = vmatprep.subr.bf16.mxu0 0
  %639 = vmatpush1.bf16.msra.mxu0 0
  %640 = vmatprep.subr.bf16.mxu0 0
  %641 = vmatpush1.bf16.msra.mxu0 0
  %642 = vmatprep.subr.bf16.mxu0 0
  %643 = vmatpush1.bf16.msra.mxu0 0
  %644 = vmatprep.mubr.bf16.mxu0 0
  %645 = vmatmul.mubr.bf16.gmra.mrb[0].mxu0 %v610
  %v646 = vpop.f32.mrb[0].mxu0
  %v647 = vadd.f32 %v583, %v646
  %v648 = vpop.f32.mrb[0].mxu0
  %v649 = vpop.f32.mrb[0].mxu0
  %v650 = vadd.f32 %v583, %v649
  %v651 = vpop.f32.mrb[0].mxu0
  %652 = vdwg.mxu0
  %v653 = vld [vmem:[%s13] sm:$0xf]
  %v654 = vld [vmem:[%s13 + $0x4] sm:$0xf]
  %v655 = vld [vmem:[%s13 + $0x8] sm:$0xf]
  %v656 = vld [vmem:[%s13 + $0xc] sm:$0xf]
  %v657 = vld [vmem:[%s13 + $0x10] sm:$0xf]
  %v658 = vld [vmem:[%s13 + $0x14] sm:$0xf]
  %v659 = vld [vmem:[%s13 + $0x18] sm:$0xf]
  %v660 = vld [vmem:[%s13 + $0x1c] sm:$0xf]
  %v661 = vld [vmem:[%s13 + $0x20] sm:$0xf]
  %v662 = vld [vmem:[%s13 + $0x24] sm:$0xf]
  %v663 = vld [vmem:[%s13 + $0x28] sm:$0xf]
  %v664 = vld [vmem:[%s13 + $0x2c] sm:$0xf]
  %v665 = vld [vmem:[%s13 + $0x30] sm:$0xf]
  %v666 = vld [vmem:[%s13 + $0x34] sm:$0xf]
  %v667 = vld [vmem:[%s13 + $0x38] sm:$0xf]
  %v668 = vld [vmem:[%s13 + $0x3c] sm:$0xf]
  %v669 = vld [vmem:[%s13 + $0x40] sm:$0xf]
  %v670 = vld [vmem:[%s13 + $0x44] sm:$0xf]
  %v671 = vld [vmem:[%s13 + $0x48] sm:$0xf]
  %v672 = vld [vmem:[%s13 + $0x4c] sm:$0xf]
  %v673 = vld [vmem:[%s13 + $0x50] sm:$0xf]
  %v674 = vld [vmem:[%s13 + $0x54] sm:$0xf]
  %v675 = vld [vmem:[%s13 + $0x58] sm:$0xf]
  %v676 = vld [vmem:[%s13 + $0x5c] sm:$0xf]
  %v677 = vld [vmem:[%s13 + $0x60] sm:$0xf]
  %v678 = vld [vmem:[%s13 + $0x64] sm:$0xf]
  %v679 = vld [vmem:[%s13 + $0x68] sm:$0xf]
  %v680 = vld [vmem:[%s13 + $0x6c] sm:$0xf]
  %v681 = vld [vmem:[%s13 + $0x70] sm:$0xf]
  %v682 = vld [vmem:[%s13 + $0x74] sm:$0xf]
  %v683 = vld [vmem:[%s13 + $0x78] sm:$0xf]
  %v684 = vld [vmem:[%s13 + $0x7c] sm:$0xf]
  %v685 = vld [vmem:[%s15] sm:$0xf]
  %v686 = vld [vmem:[%s15 + $0x4] sm:$0xf]
  %v687 = vld [vmem:[%s15 + $0x8] sm:$0xf]
  %v688 = vld [vmem:[%s15 + $0xc] sm:$0xf]
  %v689 = vld [vmem:[%s15 + $0x10] sm:$0xf]
  %v690 = vld [vmem:[%s15 + $0x14] sm:$0xf]
  %v691 = vld [vmem:[%s15 + $0x18] sm:$0xf]
  %v692 = vld [vmem:[%s15 + $0x1c] sm:$0xf]
  %v693 = vld [vmem:[%s15 + $0x20] sm:$0xf]
  %v694 = vld [vmem:[%s15 + $0x24] sm:$0xf]
  %v695 = vld [vmem:[%s15 + $0x28] sm:$0xf]
  %v696 = vld [vmem:[%s15 + $0x2c] sm:$0xf]
  %v697 = vld [vmem:[%s15 + $0x30] sm:$0xf]
  %v698 = vld [vmem:[%s15 + $0x34] sm:$0xf]
  %v699 = vld [vmem:[%s15 + $0x38] sm:$0xf]
  %v700 = vld [vmem:[%s15 + $0x3c] sm:$0xf]
  %v701 = vld [vmem:[%s15 + $0x40] sm:$0xf]
  %v702 = vld [vmem:[%s15 + $0x44] sm:$0xf]
  %v703 = vld [vmem:[%s15 + $0x48] sm:$0xf]
  %v704 = vld [vmem:[%s15 + $0x4c] sm:$0xf]
  %v705 = vld [vmem:[%s15 + $0x50] sm:$0xf]
  %v706 = vld [vmem:[%s15 + $0x54] sm:$0xf]
  %v707 = vld [vmem:[%s15 + $0x58] sm:$0xf]
  %v708 = vld [vmem:[%s15 + $0x5c] sm:$0xf]
  %v709 = vld [vmem:[%s15 + $0x60] sm:$0xf]
  %v710 = vld [vmem:[%s15 + $0x64] sm:$0xf]
  %v711 = vld [vmem:[%s15 + $0x68] sm:$0xf]
  %v712 = vld [vmem:[%s15 + $0x6c] sm:$0xf]
  %v713 = vld [vmem:[%s15 + $0x70] sm:$0xf]
  %v714 = vld [vmem:[%s15 + $0x74] sm:$0xf]
  %v715 = vld [vmem:[%s15 + $0x78] sm:$0xf]
  %v716 = vld [vmem:[%s15 + $0x7c] sm:$0xf]
  %v717 = vpack.c.bf16 %v566, %v563
  %v734 = vunpack.c.l.b16 %v669
  %v735 = vunpack.c.l.b16 %v670
  %v736 = vunpack.c.l.b16 %v671
  %v737 = vunpack.c.l.b16 %v672
  %v738 = vunpack.c.l.b16 %v673
  %v739 = vunpack.c.l.b16 %v674
  %v740 = vunpack.c.l.b16 %v675
  %v741 = vunpack.c.l.b16 %v676
  %v742 = vunpack.c.l.b16 %v677
  %v743 = vunpack.c.l.b16 %v678
  %v744 = vunpack.c.l.b16 %v679
  %v745 = vunpack.c.l.b16 %v680
  %v746 = vunpack.c.l.b16 %v681
  %v747 = vunpack.c.l.b16 %v682
  %v748 = vunpack.c.l.b16 %v683
  %v749 = vunpack.c.l.b16 %v684
  %v750 = vpack.c.b16 %v735, %v734
  %v751 = vpack.c.b16 %v737, %v736
  %v752 = vpack.c.b16 %v739, %v738
  %v753 = vpack.c.b16 %v741, %v740
  %v754 = vpack.c.b16 %v743, %v742
  %v755 = vpack.c.b16 %v745, %v744
  %v756 = vpack.c.b16 %v747, %v746
  %v757 = vpack.c.b16 %v749, %v748
  %766 = vmatprep.subr.bf16.mxu0 0
  %767 = vmatpush1.bf16.msra.mxu0 %v750
  %768 = vmatprep.subr.bf16.mxu0 0
  %769 = vmatpush1.bf16.msra.mxu0 %v751
  %770 = vmatprep.subr.bf16.mxu0 0
  %771 = vmatpush1.bf16.msra.mxu0 %v752
  %772 = vmatprep.subr.bf16.mxu0 0
  %773 = vmatpush1.bf16.msra.mxu0 %v753
  %774 = vmatprep.subr.bf16.mxu0 0
  %775 = vmatpush1.bf16.msra.mxu0 %v754
  %776 = vmatprep.subr.bf16.mxu0 0
  %777 = vmatpush1.bf16.msra.mxu0 %v755
  %778 = vmatprep.subr.bf16.mxu0 0
  %779 = vmatpush1.bf16.msra.mxu0 %v756
  %780 = vmatprep.subr.bf16.mxu0 0
  %781 = vmatpush1.bf16.msra.mxu0 %v757
  %782 = vmatprep.subr.bf16.mxu0 0
  %783 = vmatpush1.bf16.msra.mxu0 0
  %784 = vmatprep.subr.bf16.mxu0 0
  %785 = vmatpush1.bf16.msra.mxu0 0
  %786 = vmatprep.subr.bf16.mxu0 0
  %787 = vmatpush1.bf16.msra.mxu0 0
  %788 = vmatprep.subr.bf16.mxu0 0
  %789 = vmatpush1.bf16.msra.mxu0 0
  %790 = vmatprep.subr.bf16.mxu0 0
  %791 = vmatpush1.bf16.msra.mxu0 0
  %792 = vmatprep.subr.bf16.mxu0 0
  %793 = vmatpush1.bf16.msra.mxu0 0
  %794 = vmatprep.subr.bf16.mxu0 0
  %795 = vmatpush1.bf16.msra.mxu0 0
  %796 = vmatprep.subr.bf16.mxu0 0
  %797 = vmatpush1.bf16.msra.mxu0 0
  %798 = vmatprep.mubr.bf16.mxu0 0
  %799 = vmatmul.mubr.bf16.gmra.mrb[0].mxu0 %v286
  %v800 = vpop.f32.mrb[0].mxu0
  %v801 = vadd.f32 0.0, %v800
  %v802 = vpop.f32.mrb[0].mxu0
  %v803 = vpop.f32.mrb[0].mxu0
  %v804 = vadd.f32 0.0, %v803
  %v805 = vpop.f32.mrb[0].mxu0
  %806 = vdwg.mxu0
  %v823 = vunpack.c.l.b16 %v653
  %v824 = vunpack.c.l.b16 %v654
  %v825 = vunpack.c.l.b16 %v655
  %v826 = vunpack.c.l.b16 %v656
  %v827 = vunpack.c.l.b16 %v657
  %v828 = vunpack.c.l.b16 %v658
  %v829 = vunpack.c.l.b16 %v659
  %v830 = vunpack.c.l.b16 %v660
  %v831 = vunpack.c.l.b16 %v661
  %v832 = vunpack.c.l.b16 %v662
  %v833 = vunpack.c.l.b16 %v663
  %v834 = vunpack.c.l.b16 %v664
  %v835 = vunpack.c.l.b16 %v665
  %v836 = vunpack.c.l.b16 %v666
  %v837 = vunpack.c.l.b16 %v667
  %v838 = vunpack.c.l.b16 %v668
  %v839 = vpack.c.b16 %v824, %v823
  %v840 = vpack.c.b16 %v826, %v825
  %v841 = vpack.c.b16 %v828, %v827
  %v842 = vpack.c.b16 %v830, %v829
  %v843 = vpack.c.b16 %v832, %v831
  %v844 = vpack.c.b16 %v834, %v833
  %v845 = vpack.c.b16 %v836, %v835
  %v846 = vpack.c.b16 %v838, %v837
  %855 = vmatprep.subr.bf16.mxu0 0
  %856 = vmatpush1.bf16.msra.mxu0 %v839
  %857 = vmatprep.subr.bf16.mxu0 0
  %858 = vmatpush1.bf16.msra.mxu0 %v840
  %859 = vmatprep.subr.bf16.mxu0 0
  %860 = vmatpush1.bf16.msra.mxu0 %v841
  %861 = vmatprep.subr.bf16.mxu0 0
  %862 = vmatpush1.bf16.msra.mxu0 %v842
  %863 = vmatprep.subr.bf16.mxu0 0
  %864 = vmatpush1.bf16.msra.mxu0 %v843
  %865 = vmatprep.subr.bf16.mxu0 0
  %866 = vmatpush1.bf16.msra.mxu0 %v844
  %867 = vmatprep.subr.bf16.mxu0 0
  %868 = vmatpush1.bf16.msra.mxu0 %v845
  %869 = vmatprep.subr.bf16.mxu0 0
  %870 = vmatpush1.bf16.msra.mxu0 %v846
  %871 = vmatprep.subr.bf16.mxu0 0
  %872 = vmatpush1.bf16.msra.mxu0 0
  %873 = vmatprep.subr.bf16.mxu0 0
  %874 = vmatpush1.bf16.msra.mxu0 0
  %875 = vmatprep.subr.bf16.mxu0 0
  %876 = vmatpush1.bf16.msra.mxu0 0
  %877 = vmatprep.subr.bf16.mxu0 0
  %878 = vmatpush1.bf16.msra.mxu0 0
  %879 = vmatprep.subr.bf16.mxu0 0
  %880 = vmatpush1.bf16.msra.mxu0 0
  %881 = vmatprep.subr.bf16.mxu0 0
  %882 = vmatpush1.bf16.msra.mxu0 0
  %883 = vmatprep.subr.bf16.mxu0 0
  %884 = vmatpush1.bf16.msra.mxu0 0
  %885 = vmatprep.subr.bf16.mxu0 0
  %886 = vmatpush1.bf16.msra.mxu0 0
  %887 = vmatprep.mubr.bf16.mxu0 0
  %888 = vmatmul.mubr.bf16.gmra.mrb[0].mxu0 %v717
  %v889 = vpop.f32.mrb[0].mxu0
  %v890 = vadd.f32 %v801, %v889
  %v891 = vpop.f32.mrb[0].mxu0
  %v892 = vpop.f32.mrb[0].mxu0
  %v893 = vadd.f32 %v804, %v892
  %v894 = vpop.f32.mrb[0].mxu0
  %895 = vdwg.mxu0
  %v896 = vld [vmem:[%s14] sm:$0x1]
  %v898 = vlaneseq
  %v899 = vshrl.u32 %v898, 7
  %v900 = vsub.s32 0, %v899
  %v901 = vrot.slane %v896, %v900
  %v903 = vadd.f32 %v890, %v901
  %v904 = vadd.f32 %v893, %v901
  %v905 = vmax.f32 %v903, 0.0
  %v906 = vmax.f32 %v904, 0.0
  %v907 = vpack.c.bf16 %v650, %v647
  %v924 = vunpack.c.l.b16 %v701
  %v925 = vunpack.c.l.b16 %v702
  %v926 = vunpack.c.l.b16 %v703
  %v927 = vunpack.c.l.b16 %v704
  %v928 = vunpack.c.l.b16 %v705
  %v929 = vunpack.c.l.b16 %v706
  %v930 = vunpack.c.l.b16 %v707
  %v931 = vunpack.c.l.b16 %v708
  %v932 = vunpack.c.l.b16 %v709
  %v933 = vunpack.c.l.b16 %v710
  %v934 = vunpack.c.l.b16 %v711
  %v935 = vunpack.c.l.b16 %v712
  %v936 = vunpack.c.l.b16 %v713
  %v937 = vunpack.c.l.b16 %v714
  %v938 = vunpack.c.l.b16 %v715
  %v939 = vunpack.c.l.b16 %v716
  %v940 = vpack.c.b16 %v925, %v924
  %v941 = vpack.c.b16 %v927, %v926
  %v942 = vpack.c.b16 %v929, %v928
  %v943 = vpack.c.b16 %v931, %v930
  %v944 = vpack.c.b16 %v933, %v932
  %v945 = vpack.c.b16 %v935, %v934
  %v946 = vpack.c.b16 %v937, %v936
  %v947 = vpack.c.b16 %v939, %v938
  %956 = vmatprep.subr.bf16.mxu0 0
  %957 = vmatpush1.bf16.msra.mxu0 %v940
  %958 = vmatprep.subr.bf16.mxu0 0
  %959 = vmatpush1.bf16.msra.mxu0 %v941
  %960 = vmatprep.subr.bf16.mxu0 0
  %961 = vmatpush1.bf16.msra.mxu0 %v942
  %962 = vmatprep.subr.bf16.mxu0 0
  %963 = vmatpush1.bf16.msra.mxu0 %v943
  %964 = vmatprep.subr.bf16.mxu0 0
  %965 = vmatpush1.bf16.msra.mxu0 %v944
  %966 = vmatprep.subr.bf16.mxu0 0
  %967 = vmatpush1.bf16.msra.mxu0 %v945
  %968 = vmatprep.subr.bf16.mxu0 0
  %969 = vmatpush1.bf16.msra.mxu0 %v946
  %970 = vmatprep.subr.bf16.mxu0 0
  %971 = vmatpush1.bf16.msra.mxu0 %v947
  %972 = vmatprep.subr.bf16.mxu0 0
  %973 = vmatpush1.bf16.msra.mxu0 0
  %974 = vmatprep.subr.bf16.mxu0 0
  %975 = vmatpush1.bf16.msra.mxu0 0
  %976 = vmatprep.subr.bf16.mxu0 0
  %977 = vmatpush1.bf16.msra.mxu0 0
  %978 = vmatprep.subr.bf16.mxu0 0
  %979 = vmatpush1.bf16.msra.mxu0 0
  %980 = vmatprep.subr.bf16.mxu0 0
  %981 = vmatpush1.bf16.msra.mxu0 0
  %982 = vmatprep.subr.bf16.mxu0 0
  %983 = vmatpush1.bf16.msra.mxu0 0
  %984 = vmatprep.subr.bf16.mxu0 0
  %985 = vmatpush1.bf16.msra.mxu0 0
  %986 = vmatprep.subr.bf16.mxu0 0
  %987 = vmatpush1.bf16.msra.mxu0 0
  %988 = vmatprep.mubr.bf16.mxu0 0
  %989 = vmatmul.mubr.bf16.gmra.mrb[0].mxu0 %v907
  %v990 = vpop.f32.mrb[0].mxu0
  %v991 = vadd.f32 0.0, %v990
  %v992 = vpop.f32.mrb[0].mxu0
  %v993 = vpop.f32.mrb[0].mxu0
  %v994 = vadd.f32 0.0, %v993
  %v995 = vpop.f32.mrb[0].mxu0
  %996 = vdwg.mxu0
  %v1013 = vunpack.c.l.b16 %v685
  %v1014 = vunpack.c.l.b16 %v686
  %v1015 = vunpack.c.l.b16 %v687
  %v1016 = vunpack.c.l.b16 %v688
  %v1017 = vunpack.c.l.b16 %v689
  %v1018 = vunpack.c.l.b16 %v690
  %v1019 = vunpack.c.l.b16 %v691
  %v1020 = vunpack.c.l.b16 %v692
  %v1021 = vunpack.c.l.b16 %v693
  %v1022 = vunpack.c.l.b16 %v694
  %v1023 = vunpack.c.l.b16 %v695
  %v1024 = vunpack.c.l.b16 %v696
  %v1025 = vunpack.c.l.b16 %v697
  %v1026 = vunpack.c.l.b16 %v698
  %v1027 = vunpack.c.l.b16 %v699
  %v1028 = vunpack.c.l.b16 %v700
  %v1029 = vpack.c.b16 %v1014, %v1013
  %v1030 = vpack.c.b16 %v1016, %v1015
  %v1031 = vpack.c.b16 %v1018, %v1017
  %v1032 = vpack.c.b16 %v1020, %v1019
  %v1033 = vpack.c.b16 %v1022, %v1021
  %v1034 = vpack.c.b16 %v1024, %v1023
  %v1035 = vpack.c.b16 %v1026, %v1025
  %v1036 = vpack.c.b16 %v1028, %v1027
  %1045 = vmatprep.subr.bf16.mxu0 0
  %1046 = vmatpush1.bf16.msra.mxu0 %v1029
  %1047 = vmatprep.subr.bf16.mxu0 0
  %1048 = vmatpush1.bf16.msra.mxu0 %v1030
  %1049 = vmatprep.subr.bf16.mxu0 0
  %1050 = vmatpush1.bf16.msra.mxu0 %v1031
  %1051 = vmatprep.subr.bf16.mxu0 0
  %1052 = vmatpush1.bf16.msra.mxu0 %v1032
  %1053 = vmatprep.subr.bf16.mxu0 0
  %1054 = vmatpush1.bf16.msra.mxu0 %v1033
  %1055 = vmatprep.subr.bf16.mxu0 0
  %1056 = vmatpush1.bf16.msra.mxu0 %v1034
  %1057 = vmatprep.subr.bf16.mxu0 0
  %1058 = vmatpush1.bf16.msra.mxu0 %v1035
  %1059 = vmatprep.subr.bf16.mxu0 0
  %1060 = vmatpush1.bf16.msra.mxu0 %v1036
  %1061 = vmatprep.subr.bf16.mxu0 0
  %1062 = vmatpush1.bf16.msra.mxu0 0
  %1063 = vmatprep.subr.bf16.mxu0 0
  %1064 = vmatpush1.bf16.msra.mxu0 0
  %1065 = vmatprep.subr.bf16.mxu0 0
  %1066 = vmatpush1.bf16.msra.mxu0 0
  %1067 = vmatprep.subr.bf16.mxu0 0
  %1068 = vmatpush1.bf16.msra.mxu0 0
  %1069 = vmatprep.subr.bf16.mxu0 0
  %1070 = vmatpush1.bf16.msra.mxu0 0
  %1071 = vmatprep.subr.bf16.mxu0 0
  %1072 = vmatpush1.bf16.msra.mxu0 0
  %1073 = vmatprep.subr.bf16.mxu0 0
  %1074 = vmatpush1.bf16.msra.mxu0 0
  %1075 = vmatprep.subr.bf16.mxu0 0
  %1076 = vmatpush1.bf16.msra.mxu0 0
  %1077 = vmatprep.mubr.bf16.mxu0 0
  %1078 = vmatmul.mubr.bf16.gmra.mrb[0].mxu0 %v86
  %v1079 = vpop.f32.mrb[0].mxu0
  %v1080 = vadd.f32 %v991, %v1079
  %v1081 = vpop.f32.mrb[0].mxu0
  %v1082 = vpop.f32.mrb[0].mxu0
  %v1083 = vadd.f32 %v994, %v1082
  %v1084 = vpop.f32.mrb[0].mxu0
  %1085 = vdwg.mxu0
  %v1086 = vld [vmem:[%s16] sm:$0x1]
  %v1088 = vlaneseq
  %v1089 = vshrl.u32 %v1088, 7
  %v1090 = vsub.s32 0, %v1089
  %v1091 = vrot.slane %v1086, %v1090
  %v1093 = vadd.f32 %v1080, %v1091
  %v1094 = vadd.f32 %v1083, %v1091
  %v1095 = vmax.f32 %v1093, 0.0
  %v1096 = vmax.f32 %v1094, 0.0
  %v1097 = vpack.c.bf16 %v906, %v905
  %v1098 = vld [vmem:[%s17] sm:$0xf]
  %v1099 = vld [vmem:[%s17 + $0x4] sm:$0xf]
  %v1100 = vld [vmem:[%s17 + $0x8] sm:$0xf]
  %v1101 = vld [vmem:[%s17 + $0xc] sm:$0xf]
  %v1102 = vld [vmem:[%s17 + $0x10] sm:$0xf]
  %v1103 = vld [vmem:[%s17 + $0x14] sm:$0xf]
  %v1104 = vld [vmem:[%s17 + $0x18] sm:$0xf]
  %v1105 = vld [vmem:[%s17 + $0x1c] sm:$0xf]
  %v1106 = vld [vmem:[%s17 + $0x20] sm:$0xf]
  %v1107 = vld [vmem:[%s17 + $0x24] sm:$0xf]
  %v1108 = vld [vmem:[%s17 + $0x28] sm:$0xf]
  %v1109 = vld [vmem:[%s17 + $0x2c] sm:$0xf]
  %v1110 = vld [vmem:[%s17 + $0x30] sm:$0xf]
  %v1111 = vld [vmem:[%s17 + $0x34] sm:$0xf]
  %v1112 = vld [vmem:[%s17 + $0x38] sm:$0xf]
  %v1113 = vld [vmem:[%s17 + $0x3c] sm:$0xf]
  %v1114 = vld [vmem:[%s18] sm:$0x1]
  %v1116 = vlaneseq
  %v1117 = vshrl.u32 %v1116, 7
  %v1118 = vsub.s32 0, %v1117
  %v1119 = vrot.slane %v1114, %v1118
  %v1137 = vunpack.c.l.b16 %v1098
  %v1138 = vunpack.c.l.b16 %v1099
  %v1139 = vunpack.c.l.b16 %v1100
  %v1140 = vunpack.c.l.b16 %v1101
  %v1141 = vunpack.c.l.b16 %v1102
  %v1142 = vunpack.c.l.b16 %v1103
  %v1143 = vunpack.c.l.b16 %v1104
  %v1144 = vunpack.c.l.b16 %v1105
  %v1145 = vunpack.c.l.b16 %v1106
  %v1146 = vunpack.c.l.b16 %v1107
  %v1147 = vunpack.c.l.b16 %v1108
  %v1148 = vunpack.c.l.b16 %v1109
  %v1149 = vunpack.c.l.b16 %v1110
  %v1150 = vunpack.c.l.b16 %v1111
  %v1151 = vunpack.c.l.b16 %v1112
  %v1152 = vunpack.c.l.b16 %v1113
  %v1153 = vpack.c.b16 %v1138, %v1137
  %v1154 = vpack.c.b16 %v1140, %v1139
  %v1155 = vpack.c.b16 %v1142, %v1141
  %v1156 = vpack.c.b16 %v1144, %v1143
  %v1157 = vpack.c.b16 %v1146, %v1145
  %v1158 = vpack.c.b16 %v1148, %v1147
  %v1159 = vpack.c.b16 %v1150, %v1149
  %v1160 = vpack.c.b16 %v1152, %v1151
  %1169 = vmatprep.subr.bf16.mxu0 0
  %1170 = vmatpush1.bf16.msra.mxu0 %v1153
  %1171 = vmatprep.subr.bf16.mxu0 0
  %1172 = vmatpush1.bf16.msra.mxu0 %v1154
  %1173 = vmatprep.subr.bf16.mxu0 0
  %1174 = vmatpush1.bf16.msra.mxu0 %v1155
  %1175 = vmatprep.subr.bf16.mxu0 0
  %1176 = vmatpush1.bf16.msra.mxu0 %v1156
  %1177 = vmatprep.subr.bf16.mxu0 0
  %1178 = vmatpush1.bf16.msra.mxu0 %v1157
  %1179 = vmatprep.subr.bf16.mxu0 0
  %1180 = vmatpush1.bf16.msra.mxu0 %v1158
  %1181 = vmatprep.subr.bf16.mxu0 0
  %1182 = vmatpush1.bf16.msra.mxu0 %v1159
  %1183 = vmatprep.subr.bf16.mxu0 0
  %1184 = vmatpush1.bf16.msra.mxu0 %v1160
  %1185 = vmatprep.subr.bf16.mxu0 0
  %1186 = vmatpush1.bf16.msra.mxu0 0
  %1187 = vmatprep.subr.bf16.mxu0 0
  %1188 = vmatpush1.bf16.msra.mxu0 0
  %1189 = vmatprep.subr.bf16.mxu0 0
  %1190 = vmatpush1.bf16.msra.mxu0 0
  %1191 = vmatprep.subr.bf16.mxu0 0
  %1192 = vmatpush1.bf16.msra.mxu0 0
  %1193 = vmatprep.subr.bf16.mxu0 0
  %1194 = vmatpush1.bf16.msra.mxu0 0
  %1195 = vmatprep.subr.bf16.mxu0 0
  %1196 = vmatpush1.bf16.msra.mxu0 0
  %1197 = vmatprep.subr.bf16.mxu0 0
  %1198 = vmatpush1.bf16.msra.mxu0 0
  %1199 = vmatprep.subr.bf16.mxu0 0
  %1200 = vmatpush1.bf16.msra.mxu0 0
  %1201 = vmatprep.mubr.bf16.mxu0 0
  %1202 = vmatmul.mubr.bf16.gmra.mrb[0].mxu0 %v1097
  %v1203 = vpop.f32.mrb[0].mxu0
  %v1204 = vadd.f32 %v1119, %v1203
  %v1205 = vpop.f32.mrb[0].mxu0
  %v1206 = vpop.f32.mrb[0].mxu0
  %v1207 = vadd.f32 %v1119, %v1206
  %v1208 = vpop.f32.mrb[0].mxu0
  %1209 = vdwg.mxu0
  %v1210 = vpack.c.bf16 %v1096, %v1095
  %v1211 = vld [vmem:[%s19] sm:$0xf]
  %v1212 = vld [vmem:[%s19 + $0x4] sm:$0xf]
  %v1213 = vld [vmem:[%s19 + $0x8] sm:$0xf]
  %v1214 = vld [vmem:[%s19 + $0xc] sm:$0xf]
  %v1215 = vld [vmem:[%s19 + $0x10] sm:$0xf]
  %v1216 = vld [vmem:[%s19 + $0x14] sm:$0xf]
  %v1217 = vld [vmem:[%s19 + $0x18] sm:$0xf]
  %v1218 = vld [vmem:[%s19 + $0x1c] sm:$0xf]
  %v1219 = vld [vmem:[%s19 + $0x20] sm:$0xf]
  %v1220 = vld [vmem:[%s19 + $0x24] sm:$0xf]
  %v1221 = vld [vmem:[%s19 + $0x28] sm:$0xf]
  %v1222 = vld [vmem:[%s19 + $0x2c] sm:$0xf]
  %v1223 = vld [vmem:[%s19 + $0x30] sm:$0xf]
  %v1224 = vld [vmem:[%s19 + $0x34] sm:$0xf]
  %v1225 = vld [vmem:[%s19 + $0x38] sm:$0xf]
  %v1226 = vld [vmem:[%s19 + $0x3c] sm:$0xf]
  %v1227 = vld [vmem:[%s20] sm:$0x1]
  %v1229 = vlaneseq
  %v1230 = vshrl.u32 %v1229, 7
  %v1231 = vsub.s32 0, %v1230
  %v1232 = vrot.slane %v1227, %v1231
  %v1250 = vunpack.c.l.b16 %v1211
  %v1251 = vunpack.c.l.b16 %v1212
  %v1252 = vunpack.c.l.b16 %v1213
  %v1253 = vunpack.c.l.b16 %v1214
  %v1254 = vunpack.c.l.b16 %v1215
  %v1255 = vunpack.c.l.b16 %v1216
  %v1256 = vunpack.c.l.b16 %v1217
  %v1257 = vunpack.c.l.b16 %v1218
  %v1258 = vunpack.c.l.b16 %v1219
  %v1259 = vunpack.c.l.b16 %v1220
  %v1260 = vunpack.c.l.b16 %v1221
  %v1261 = vunpack.c.l.b16 %v1222
  %v1262 = vunpack.c.l.b16 %v1223
  %v1263 = vunpack.c.l.b16 %v1224
  %v1264 = vunpack.c.l.b16 %v1225
  %v1265 = vunpack.c.l.b16 %v1226
  %v1266 = vpack.c.b16 %v1251, %v1250
  %v1267 = vpack.c.b16 %v1253, %v1252
  %v1268 = vpack.c.b16 %v1255, %v1254
  %v1269 = vpack.c.b16 %v1257, %v1256
  %v1270 = vpack.c.b16 %v1259, %v1258
  %v1271 = vpack.c.b16 %v1261, %v1260
  %v1272 = vpack.c.b16 %v1263, %v1262
  %v1273 = vpack.c.b16 %v1265, %v1264
  %1282 = vmatprep.subr.bf16.mxu0 0
  %1283 = vmatpush1.bf16.msra.mxu0 %v1266
  %1284 = vmatprep.subr.bf16.mxu0 0
  %1285 = vmatpush1.bf16.msra.mxu0 %v1267
  %1286 = vmatprep.subr.bf16.mxu0 0
  %1287 = vmatpush1.bf16.msra.mxu0 %v1268
  %1288 = vmatprep.subr.bf16.mxu0 0
  %1289 = vmatpush1.bf16.msra.mxu0 %v1269
  %1290 = vmatprep.subr.bf16.mxu0 0
  %1291 = vmatpush1.bf16.msra.mxu0 %v1270
  %1292 = vmatprep.subr.bf16.mxu0 0
  %1293 = vmatpush1.bf16.msra.mxu0 %v1271
  %1294 = vmatprep.subr.bf16.mxu0 0
  %1295 = vmatpush1.bf16.msra.mxu0 %v1272
  %1296 = vmatprep.subr.bf16.mxu0 0
  %1297 = vmatpush1.bf16.msra.mxu0 %v1273
  %1298 = vmatprep.subr.bf16.mxu0 0
  %1299 = vmatpush1.bf16.msra.mxu0 0
  %1300 = vmatprep.subr.bf16.mxu0 0
  %1301 = vmatpush1.bf16.msra.mxu0 0
  %1302 = vmatprep.subr.bf16.mxu0 0
  %1303 = vmatpush1.bf16.msra.mxu0 0
  %1304 = vmatprep.subr.bf16.mxu0 0
  %1305 = vmatpush1.bf16.msra.mxu0 0
  %1306 = vmatprep.subr.bf16.mxu0 0
  %1307 = vmatpush1.bf16.msra.mxu0 0
  %1308 = vmatprep.subr.bf16.mxu0 0
  %1309 = vmatpush1.bf16.msra.mxu0 0
  %1310 = vmatprep.subr.bf16.mxu0 0
  %1311 = vmatpush1.bf16.msra.mxu0 0
  %1312 = vmatprep.subr.bf16.mxu0 0
  %1313 = vmatpush1.bf16.msra.mxu0 0
  %1314 = vmatprep.mubr.bf16.mxu0 0
  %1315 = vmatmul.mubr.bf16.gmra.mrb[0].mxu0 %v1210
  %v1316 = vpop.f32.mrb[0].mxu0
  %v1317 = vadd.f32 %v1232, %v1316
  %v1318 = vpop.f32.mrb[0].mxu0
  %v1319 = vpop.f32.mrb[0].mxu0
  %v1320 = vadd.f32 %v1232, %v1319
  %v1321 = vpop.f32.mrb[0].mxu0
  %1322 = vdwg.mxu0
  %v1323 = vld [vmem:[%s21] sm:$0xf]
  %v1324 = vld [vmem:[%s21 + $0x4] sm:$0xf]
  %v1325 = vld [vmem:[%s21 + $0x8] sm:$0xf]
  %v1326 = vld [vmem:[%s21 + $0xc] sm:$0xf]
  %v1327 = vld [vmem:[%s21 + $0x10] sm:$0xf]
  %v1328 = vld [vmem:[%s21 + $0x14] sm:$0xf]
  %v1329 = vld [vmem:[%s21 + $0x18] sm:$0xf]
  %v1330 = vld [vmem:[%s21 + $0x1c] sm:$0xf]
  %v1331 = vld [vmem:[%s21 + $0x20] sm:$0xf]
  %v1332 = vld [vmem:[%s21 + $0x24] sm:$0xf]
  %v1333 = vld [vmem:[%s21 + $0x28] sm:$0xf]
  %v1334 = vld [vmem:[%s21 + $0x2c] sm:$0xf]
  %v1335 = vld [vmem:[%s21 + $0x30] sm:$0xf]
  %v1336 = vld [vmem:[%s21 + $0x34] sm:$0xf]
  %v1337 = vld [vmem:[%s21 + $0x38] sm:$0xf]
  %v1338 = vld [vmem:[%s21 + $0x3c] sm:$0xf]
  %v1339 = vld [vmem:[%s22] sm:$0x1]
  %v1341 = vlaneseq
  %v1342 = vshrl.u32 %v1341, 7
  %v1343 = vsub.s32 0, %v1342
  %v1344 = vrot.slane %v1339, %v1343
  %v1362 = vunpack.c.l.b16 %v1323
  %v1363 = vunpack.c.l.b16 %v1324
  %v1364 = vunpack.c.l.b16 %v1325
  %v1365 = vunpack.c.l.b16 %v1326
  %v1366 = vunpack.c.l.b16 %v1327
  %v1367 = vunpack.c.l.b16 %v1328
  %v1368 = vunpack.c.l.b16 %v1329
  %v1369 = vunpack.c.l.b16 %v1330
  %v1370 = vunpack.c.l.b16 %v1331
  %v1371 = vunpack.c.l.b16 %v1332
  %v1372 = vunpack.c.l.b16 %v1333
  %v1373 = vunpack.c.l.b16 %v1334
  %v1374 = vunpack.c.l.b16 %v1335
  %v1375 = vunpack.c.l.b16 %v1336
  %v1376 = vunpack.c.l.b16 %v1337
  %v1377 = vunpack.c.l.b16 %v1338
  %v1378 = vpack.c.b16 %v1363, %v1362
  %v1379 = vpack.c.b16 %v1365, %v1364
  %v1380 = vpack.c.b16 %v1367, %v1366
  %v1381 = vpack.c.b16 %v1369, %v1368
  %v1382 = vpack.c.b16 %v1371, %v1370
  %v1383 = vpack.c.b16 %v1373, %v1372
  %v1384 = vpack.c.b16 %v1375, %v1374
  %v1385 = vpack.c.b16 %v1377, %v1376
  %1394 = vmatprep.subr.bf16.mxu0 0
  %1395 = vmatpush1.bf16.msra.mxu0 %v1378
  %1396 = vmatprep.subr.bf16.mxu0 0
  %1397 = vmatpush1.bf16.msra.mxu0 %v1379
  %1398 = vmatprep.subr.bf16.mxu0 0
  %1399 = vmatpush1.bf16.msra.mxu0 %v1380
  %1400 = vmatprep.subr.bf16.mxu0 0
  %1401 = vmatpush1.bf16.msra.mxu0 %v1381
  %1402 = vmatprep.subr.bf16.mxu0 0
  %1403 = vmatpush1.bf16.msra.mxu0 %v1382
  %1404 = vmatprep.subr.bf16.mxu0 0
  %1405 = vmatpush1.bf16.msra.mxu0 %v1383
  %1406 = vmatprep.subr.bf16.mxu0 0
  %1407 = vmatpush1.bf16.msra.mxu0 %v1384
  %1408 = vmatprep.subr.bf16.mxu0 0
  %1409 = vmatpush1.bf16.msra.mxu0 %v1385
  %1410 = vmatprep.subr.bf16.mxu0 0
  %1411 = vmatpush1.bf16.msra.mxu0 0
  %1412 = vmatprep.subr.bf16.mxu0 0
  %1413 = vmatpush1.bf16.msra.mxu0 0
  %1414 = vmatprep.subr.bf16.mxu0 0
  %1415 = vmatpush1.bf16.msra.mxu0 0
  %1416 = vmatprep.subr.bf16.mxu0 0
  %1417 = vmatpush1.bf16.msra.mxu0 0
  %1418 = vmatprep.subr.bf16.mxu0 0
  %1419 = vmatpush1.bf16.msra.mxu0 0
  %1420 = vmatprep.subr.bf16.mxu0 0
  %1421 = vmatpush1.bf16.msra.mxu0 0
  %1422 = vmatprep.subr.bf16.mxu0 0
  %1423 = vmatpush1.bf16.msra.mxu0 0
  %1424 = vmatprep.subr.bf16.mxu0 0
  %1425 = vmatpush1.bf16.msra.mxu0 0
  %1426 = vmatprep.mubr.bf16.mxu0 0
  %1427 = vmatmul.mubr.bf16.gmra.mrb[0].mxu0 %v1210
  %v1428 = vpop.f32.mrb[0].mxu0
  %v1429 = vadd.f32 %v1344, %v1428
  %v1430 = vpop.f32.mrb[0].mxu0
  %v1431 = vpop.f32.mrb[0].mxu0
  %v1432 = vadd.f32 %v1344, %v1431
  %v1433 = vpop.f32.mrb[0].mxu0
  %1434 = vdwg.mxu0
  %v1435 = vpack.c.bf16 %v1204, %v1204
  %v1436 = vpack.c.bf16 %v1207, %v1207
  %v1437 = vpack.c.bf16 %v1317, %v1317
  %v1438 = vpack.c.bf16 %v1320, %v1320
  %1439 = vmatprep.subr.bf16.mxu0 0
  %1440 = vmatpush1.bf16.xpose.msra.mxu0 %v1437
  %1441 = vmatprep.subr.bf16.mxu0 0
  %1442 = vmatpush1.bf16.xpose.msra.mxu0 0
  %1443 = vmatprep.subr.bf16.mxu0 0
  %1444 = vmatpush1.bf16.xpose.msra.mxu0 0
  %1445 = vmatprep.subr.bf16.mxu0 0
  %1446 = vmatpush1.bf16.xpose.msra.mxu0 0
  %1447 = vmatprep.subr.bf16.mxu0 0
  %1448 = vmatpush1.bf16.xpose.msra.mxu0 0
  %1449 = vmatprep.subr.bf16.mxu0 0
  %1450 = vmatpush1.bf16.xpose.msra.mxu0 0
  %1451 = vmatprep.subr.bf16.mxu0 0
  %1452 = vmatpush1.bf16.xpose.msra.mxu0 0
  %1453 = vmatprep.subr.bf16.mxu0 0
  %1454 = vmatpush1.bf16.xpose.msra.mxu0 0
  %1455 = vmatprep.subr.bf16.mxu0 0
  %1456 = vmatpush1.bf16.xpose.msra.mxu0 0
  %1457 = vmatprep.subr.bf16.mxu0 0
  %1458 = vmatpush1.bf16.xpose.msra.mxu0 0
  %1459 = vmatprep.subr.bf16.mxu0 0
  %1460 = vmatpush1.bf16.xpose.msra.mxu0 0
  %1461 = vmatprep.subr.bf16.mxu0 0
  %1462 = vmatpush1.bf16.xpose.msra.mxu0 0
  %1463 = vmatprep.subr.bf16.mxu0 0
  %1464 = vmatpush1.bf16.xpose.msra.mxu0 0
  %1465 = vmatprep.subr.bf16.mxu0 0
  %1466 = vmatpush1.bf16.xpose.msra.mxu0 0
  %1467 = vmatprep.subr.bf16.mxu0 0
  %1468 = vmatpush1.bf16.xpose.msra.mxu0 0
  %1469 = vmatprep.subr.bf16.mxu0 0
  %1470 = vmatpush1.bf16.xpose.msra.mxu0 0
  %1471 = vmatprep.mubr.bf16.mxu0 0
  %1472 = vmatmul.mubr.bf16.gmra.mrb[0].mxu0 %v1435
  %v1473 = vpop.f32.mrb[0].mxu0
  %v1474 = vadd.f32 0.0, %v1473
  %v1475 = vpop.f32.mrb[0].mxu0
  %v1476 = vpop.f32.mrb[0].mxu0
  %v1477 = vpop.f32.mrb[0].mxu0
  %1478 = vdwg.mxu0
  %1479 = vmatprep.subr.bf16.mxu0 0
  %1480 = vmatpush1.bf16.xpose.msra.mxu0 %v1438
  %1481 = vmatprep.subr.bf16.mxu0 0
  %1482 = vmatpush1.bf16.xpose.msra.mxu0 0
  %1483 = vmatprep.subr.bf16.mxu0 0
  %1484 = vmatpush1.bf16.xpose.msra.mxu0 0
  %1485 = vmatprep.subr.bf16.mxu0 0
  %1486 = vmatpush1.bf16.xpose.msra.mxu0 0
  %1487 = vmatprep.subr.bf16.mxu0 0
  %1488 = vmatpush1.bf16.xpose.msra.mxu0 0
  %1489 = vmatprep.subr.bf16.mxu0 0
  %1490 = vmatpush1.bf16.xpose.msra.mxu0 0
  %1491 = vmatprep.subr.bf16.mxu0 0
  %1492 = vmatpush1.bf16.xpose.msra.mxu0 0
  %1493 = vmatprep.subr.bf16.mxu0 0
  %1494 = vmatpush1.bf16.xpose.msra.mxu0 0
  %1495 = vmatprep.subr.bf16.mxu0 0
  %1496 = vmatpush1.bf16.xpose.msra.mxu0 0
  %1497 = vmatprep.subr.bf16.mxu0 0
  %1498 = vmatpush1.bf16.xpose.msra.mxu0 0
  %1499 = vmatprep.subr.bf16.mxu0 0
  %1500 = vmatpush1.bf16.xpose.msra.mxu0 0
  %1501 = vmatprep.subr.bf16.mxu0 0
  %1502 = vmatpush1.bf16.xpose.msra.mxu0 0
  %1503 = vmatprep.subr.bf16.mxu0 0
  %1504 = vmatpush1.bf16.xpose.msra.mxu0 0
  %1505 = vmatprep.subr.bf16.mxu0 0
  %1506 = vmatpush1.bf16.xpose.msra.mxu0 0
  %1507 = vmatprep.subr.bf16.mxu0 0
  %1508 = vmatpush1.bf16.xpose.msra.mxu0 0
  %1509 = vmatprep.subr.bf16.mxu0 0
  %1510 = vmatpush1.bf16.xpose.msra.mxu0 0
  %1511 = vmatprep.mubr.bf16.mxu0 0
  %1512 = vmatmul.mubr.bf16.gmra.mrb[0].mxu0 %v1436
  %v1513 = vpop.f32.mrb[0].mxu0
  %v1514 = vadd.f32 0.0, %v1513
  %v1515 = vpop.f32.mrb[0].mxu0
  %v1516 = vpop.f32.mrb[0].mxu0
  %v1517 = vpop.f32.mrb[0].mxu0
  %1518 = vdwg.mxu0
  %v1519 = vmul.f32 %v1474, 0.088388346
  %v1520 = vmul.f32 %v1514, 0.088388346
  %v1521 = vlaneseq
  %v1522 = vand.u32 %v1521, 127
  %vm1523 = vcmp.lt.s32.totalorder %v1522, 6
  %v1524 = vsel %vm1523, %v1519, -1e+30
  %v1525 = vsel %vm1523, %v1520, -1e+30
  %vm1526 = vcmask 64512
  %v1527 = vsel %vm1526, %v1524, -inf
  %1528 = vmax.xlane.f32.xlu0 %v1527
  %v1529 = vpop.xlane.xlu0 %1528
  %v1530 = vsel %vm1526, %v1525, -inf
  %1531 = vmax.xlane.f32.xlu0 %v1530
  %v1532 = vpop.xlane.xlu0 %1531
  %v1533 = vsub.f32 %v1524, %v1529
  %v1534 = vsub.f32 %v1525, %v1532
  %v1535 = vmul.f32 %v1533, 1.442695
  %v1536 = vpow.pop %v1535
  %v1537 = vmul.f32 %v1534, 1.442695
  %v1538 = vpow.pop %v1537
  %v1539 = vsel %vm1526, %v1536, 0.0
  %1540 = vadd.xlane.f32.xlu0 %v1539
  %v1541 = vpop.xlane.xlu0 %1540
  %v1542 = vsel %vm1526, %v1538, 0.0
  %1543 = vadd.xlane.f32.xlu0 %v1542
  %v1544 = vpop.xlane.xlu0 %1543
  %v1545 = vrcp.pop %v1541
  %v1546 = vmul.f32 %v1536, %v1545
  %v1547 = vrcp.pop %v1544
  %v1548 = vmul.f32 %v1538, %v1547
  %v1549 = vpack.c.bf16 %v1546, %v1546
  %v1550 = vpack.c.bf16 %v1548, %v1548
  %v1551 = vpack.c.bf16 %v1429, %v1429
  %v1552 = vpack.c.bf16 %v1432, %v1432
  %v1554 = vsel %vm1526, %v1549, 0
  %vm1556 = vcmask 1043456
  %v1558 = vsel %vm1556, %v1551, 0
  %1560 = vmatprep.subr.bf16.mxu0 0
  %1561 = vmatpush1.bf16.msra.mxu0 %v1558
  %1562 = vmatprep.subr.bf16.mxu0 0
  %1563 = vmatpush1.bf16.msra.mxu0 0
  %1564 = vmatprep.subr.bf16.mxu0 0
  %1565 = vmatpush1.bf16.msra.mxu0 0
  %1566 = vmatprep.subr.bf16.mxu0 0
  %1567 = vmatpush1.bf16.msra.mxu0 0
  %1568 = vmatprep.subr.bf16.mxu0 0
  %1569 = vmatpush1.bf16.msra.mxu0 0
  %1570 = vmatprep.subr.bf16.mxu0 0
  %1571 = vmatpush1.bf16.msra.mxu0 0
  %1572 = vmatprep.subr.bf16.mxu0 0
  %1573 = vmatpush1.bf16.msra.mxu0 0
  %1574 = vmatprep.subr.bf16.mxu0 0
  %1575 = vmatpush1.bf16.msra.mxu0 0
  %1576 = vmatprep.subr.bf16.mxu0 0
  %1577 = vmatpush1.bf16.msra.mxu0 0
  %1578 = vmatprep.subr.bf16.mxu0 0
  %1579 = vmatpush1.bf16.msra.mxu0 0
  %1580 = vmatprep.subr.bf16.mxu0 0
  %1581 = vmatpush1.bf16.msra.mxu0 0
  %1582 = vmatprep.subr.bf16.mxu0 0
  %1583 = vmatpush1.bf16.msra.mxu0 0
  %1584 = vmatprep.subr.bf16.mxu0 0
  %1585 = vmatpush1.bf16.msra.mxu0 0
  %1586 = vmatprep.subr.bf16.mxu0 0
  %1587 = vmatpush1.bf16.msra.mxu0 0
  %1588 = vmatprep.subr.bf16.mxu0 0
  %1589 = vmatpush1.bf16.msra.mxu0 0
  %1590 = vmatprep.subr.bf16.mxu0 0
  %1591 = vmatpush1.bf16.msra.mxu0 0
  %1592 = vmatprep.mubr.bf16.mxu0 0
  %1593 = vmatmul.mubr.bf16.gmra.mrb[0].mxu0 %v1554
  %v1594 = vpop.f32.mrb[0].mxu0
  %v1595 = vadd.f32 0.0, %v1594
  %v1596 = vpop.f32.mrb[0].mxu0
  %v1597 = vpop.f32.mrb[0].mxu0
  %v1598 = vpop.f32.mrb[0].mxu0
  %1599 = vdwg.mxu0
  %v1601 = vsel %vm1526, %v1550, 0
  %v1604 = vsel %vm1556, %v1552, 0
  %1606 = vmatprep.subr.bf16.mxu0 0
  %1607 = vmatpush1.bf16.msra.mxu0 %v1604
  %1608 = vmatprep.subr.bf16.mxu0 0
  %1609 = vmatpush1.bf16.msra.mxu0 0
  %1610 = vmatprep.subr.bf16.mxu0 0
  %1611 = vmatpush1.bf16.msra.mxu0 0
  %1612 = vmatprep.subr.bf16.mxu0 0
  %1613 = vmatpush1.bf16.msra.mxu0 0
  %1614 = vmatprep.subr.bf16.mxu0 0
  %1615 = vmatpush1.bf16.msra.mxu0 0
  %1616 = vmatprep.subr.bf16.mxu0 0
  %1617 = vmatpush1.bf16.msra.mxu0 0
  %1618 = vmatprep.subr.bf16.mxu0 0
  %1619 = vmatpush1.bf16.msra.mxu0 0
  %1620 = vmatprep.subr.bf16.mxu0 0
  %1621 = vmatpush1.bf16.msra.mxu0 0
  %1622 = vmatprep.subr.bf16.mxu0 0
  %1623 = vmatpush1.bf16.msra.mxu0 0
  %1624 = vmatprep.subr.bf16.mxu0 0
  %1625 = vmatpush1.bf16.msra.mxu0 0
  %1626 = vmatprep.subr.bf16.mxu0 0
  %1627 = vmatpush1.bf16.msra.mxu0 0
  %1628 = vmatprep.subr.bf16.mxu0 0
  %1629 = vmatpush1.bf16.msra.mxu0 0
  %1630 = vmatprep.subr.bf16.mxu0 0
  %1631 = vmatpush1.bf16.msra.mxu0 0
  %1632 = vmatprep.subr.bf16.mxu0 0
  %1633 = vmatpush1.bf16.msra.mxu0 0
  %1634 = vmatprep.subr.bf16.mxu0 0
  %1635 = vmatpush1.bf16.msra.mxu0 0
  %1636 = vmatprep.subr.bf16.mxu0 0
  %1637 = vmatpush1.bf16.msra.mxu0 0
  %1638 = vmatprep.mubr.bf16.mxu0 0
  %1639 = vmatmul.mubr.bf16.gmra.mrb[0].mxu0 %v1601
  %v1640 = vpop.f32.mrb[0].mxu0
  %v1641 = vadd.f32 0.0, %v1640
  %v1642 = vpop.f32.mrb[0].mxu0
  %v1643 = vpop.f32.mrb[0].mxu0
  %v1644 = vpop.f32.mrb[0].mxu0
  %1645 = vdwg.mxu0
  %v1646 = vpack.c.bf16 %v1641, %v1595
  %v1647 = vld [vmem:[%s23] sm:$0xf]
  %v1648 = vld [vmem:[%s23 + $0x4] sm:$0xf]
  %v1649 = vld [vmem:[%s23 + $0x8] sm:$0xf]
  %v1650 = vld [vmem:[%s23 + $0xc] sm:$0xf]
  %v1651 = vld [vmem:[%s23 + $0x10] sm:$0xf]
  %v1652 = vld [vmem:[%s23 + $0x14] sm:$0xf]
  %v1653 = vld [vmem:[%s23 + $0x18] sm:$0xf]
  %v1654 = vld [vmem:[%s23 + $0x1c] sm:$0xf]
  %v1655 = vld [vmem:[%s23 + $0x20] sm:$0xf]
  %v1656 = vld [vmem:[%s23 + $0x24] sm:$0xf]
  %v1657 = vld [vmem:[%s23 + $0x28] sm:$0xf]
  %v1658 = vld [vmem:[%s23 + $0x2c] sm:$0xf]
  %v1659 = vld [vmem:[%s23 + $0x30] sm:$0xf]
  %v1660 = vld [vmem:[%s23 + $0x34] sm:$0xf]
  %v1661 = vld [vmem:[%s23 + $0x38] sm:$0xf]
  %v1662 = vld [vmem:[%s23 + $0x3c] sm:$0xf]
  %v1663 = vld [vmem:[%s24] sm:$0x1]
  %v1665 = vlaneseq
  %v1666 = vshrl.u32 %v1665, 7
  %v1667 = vsub.s32 0, %v1666
  %v1668 = vrot.slane %v1663, %v1667
  %v1686 = vunpack.c.l.b16 %v1647
  %v1687 = vunpack.c.l.b16 %v1648
  %v1688 = vunpack.c.l.b16 %v1649
  %v1689 = vunpack.c.l.b16 %v1650
  %v1690 = vunpack.c.l.b16 %v1651
  %v1691 = vunpack.c.l.b16 %v1652
  %v1692 = vunpack.c.l.b16 %v1653
  %v1693 = vunpack.c.l.b16 %v1654
  %v1694 = vunpack.c.l.b16 %v1655
  %v1695 = vunpack.c.l.b16 %v1656
  %v1696 = vunpack.c.l.b16 %v1657
  %v1697 = vunpack.c.l.b16 %v1658
  %v1698 = vunpack.c.l.b16 %v1659
  %v1699 = vunpack.c.l.b16 %v1660
  %v1700 = vunpack.c.l.b16 %v1661
  %v1701 = vunpack.c.l.b16 %v1662
  %v1702 = vpack.c.b16 %v1687, %v1686
  %v1703 = vpack.c.b16 %v1689, %v1688
  %v1704 = vpack.c.b16 %v1691, %v1690
  %v1705 = vpack.c.b16 %v1693, %v1692
  %v1706 = vpack.c.b16 %v1695, %v1694
  %v1707 = vpack.c.b16 %v1697, %v1696
  %v1708 = vpack.c.b16 %v1699, %v1698
  %v1709 = vpack.c.b16 %v1701, %v1700
  %1718 = vmatprep.subr.bf16.mxu0 0
  %1719 = vmatpush1.bf16.msra.mxu0 %v1702
  %1720 = vmatprep.subr.bf16.mxu0 0
  %1721 = vmatpush1.bf16.msra.mxu0 %v1703
  %1722 = vmatprep.subr.bf16.mxu0 0
  %1723 = vmatpush1.bf16.msra.mxu0 %v1704
  %1724 = vmatprep.subr.bf16.mxu0 0
  %1725 = vmatpush1.bf16.msra.mxu0 %v1705
  %1726 = vmatprep.subr.bf16.mxu0 0
  %1727 = vmatpush1.bf16.msra.mxu0 %v1706
  %1728 = vmatprep.subr.bf16.mxu0 0
  %1729 = vmatpush1.bf16.msra.mxu0 %v1707
  %1730 = vmatprep.subr.bf16.mxu0 0
  %1731 = vmatpush1.bf16.msra.mxu0 %v1708
  %1732 = vmatprep.subr.bf16.mxu0 0
  %1733 = vmatpush1.bf16.msra.mxu0 %v1709
  %1734 = vmatprep.subr.bf16.mxu0 0
  %1735 = vmatpush1.bf16.msra.mxu0 0
  %1736 = vmatprep.subr.bf16.mxu0 0
  %1737 = vmatpush1.bf16.msra.mxu0 0
  %1738 = vmatprep.subr.bf16.mxu0 0
  %1739 = vmatpush1.bf16.msra.mxu0 0
  %1740 = vmatprep.subr.bf16.mxu0 0
  %1741 = vmatpush1.bf16.msra.mxu0 0
  %1742 = vmatprep.subr.bf16.mxu0 0
  %1743 = vmatpush1.bf16.msra.mxu0 0
  %1744 = vmatprep.subr.bf16.mxu0 0
  %1745 = vmatpush1.bf16.msra.mxu0 0
  %1746 = vmatprep.subr.bf16.mxu0 0
  %1747 = vmatpush1.bf16.msra.mxu0 0
  %1748 = vmatprep.subr.bf16.mxu0 0
  %1749 = vmatpush1.bf16.msra.mxu0 0
  %1750 = vmatprep.mubr.bf16.mxu0 0
  %1751 = vmatmul.mubr.bf16.gmra.mrb[0].mxu0 %v1646
  %v1752 = vpop.f32.mrb[0].mxu0
  %v1753 = vadd.f32 %v1668, %v1752
  %v1754 = vpop.f32.mrb[0].mxu0
  %v1755 = vpop.f32.mrb[0].mxu0
  %v1756 = vadd.f32 %v1668, %v1755
  %v1757 = vpop.f32.mrb[0].mxu0
  %1758 = vdwg.mxu0
  %1759 = vst [vmem:[%s25] sm:$0xff] %v1753
  %1760 = vst [vmem:[%s25 + $0x8] sm:$0xff] %v1756
  // Predicated region
  $region102: #{crn_dual_forward.3} parent=0 // pred_check
    _
  $region103: #{crn_dual_forward.3} parent=0 // pred_check_branch
    %1762 = sbr.rel (0) target = $region105
  $region104: #{crn_dual_forward.3} parent=0 // pred_region
    _
  $region105: #{crn_dual_forward.3} parent=0 // pred_fallthru
    _
  // Predicated region
  $region106: #{crn_dual_forward.3} parent=0 // pred_check
    _
  $region107: #{crn_dual_forward.3} parent=0 // pred_check_branch
    %1764 = sbr.rel (0) target = $region109
  $region108: #{crn_dual_forward.3} parent=0 // pred_region
    _
  $region109: #{crn_dual_forward.3} parent=0 // pred_fallthru
    _

// kernel: crn_dual_forward.2
$region0: #{crn_dual_forward.2}
  #allocation0 [shape = 'u32[]', space=smem, size = 0x4, offset = 0x4, fixed_abs, tag = 'smem constant byte address 0x4 - core index']
  #allocation1 [shape = 'u32[144,128]{1,0:T(1,128)}', space=vmem, size = 0x12000, scoped, tag = 'internal scratch']
  #allocation2 [shape = 'f32[2,8,128]{2,1,0:T(8,128)}', space=vmem, size = 0x2000, scoped, tag = 'scratch operand']
  %s0 = inlined_call_operand.vmem [shape: f32[2,2,8,128], index: 0, kind: input, shape index: {}]
  %s1 = inlined_call_operand.hbm [shape: bf16[2,6,128,384], index: 1, kind: input, shape index: {}]
  %s2 = inlined_call_operand.hbm [shape: f32[2,6,1,384], index: 2, kind: input, shape index: {}]
  %s3 = inlined_call_operand.hbm [shape: bf16[2,6,128,128], index: 3, kind: input, shape index: {}]
  %s4 = inlined_call_operand.hbm [shape: f32[2,6,1,128], index: 4, kind: input, shape index: {}]
  %s5 = inlined_call_operand.hbm [shape: f32[2,6,1,128], index: 5, kind: input, shape index: {}]
  %s6 = inlined_call_operand.hbm [shape: f32[2,6,1,128], index: 6, kind: input, shape index: {}]
  %s7 = inlined_call_operand.hbm [shape: bf16[2,6,128,512], index: 7, kind: input, shape index: {}]
  %s8 = inlined_call_operand.hbm [shape: f32[2,6,1,512], index: 8, kind: input, shape index: {}]
  %s9 = inlined_call_operand.hbm [shape: bf16[2,6,512,128], index: 9, kind: input, shape index: {}]
  %s10 = inlined_call_operand.hbm [shape: f32[2,6,1,128], index: 10, kind: input, shape index: {}]
  %s11 = inlined_call_operand.hbm [shape: f32[2,6,1,128], index: 11, kind: input, shape index: {}]
  %s12 = inlined_call_operand.hbm [shape: f32[2,6,1,128], index: 12, kind: input, shape index: {}]
  %s13 = inlined_call_operand.hbm [shape: bf16[8,128], index: 13, kind: input, shape index: {}]
  %s14 = inlined_call_operand.vmem [shape: f32[8,1], index: 14, kind: input, shape index: {}]
  %s15 = inlined_call_operand.vmem [shape: f32[2,2,8,128], index: 15, kind: output, shape index: {}]
  %s16 = sld [smem:[#allocation0]]
  $region157: #{crn_dual_forward.2} parent=0
    _
  %s18 = ssub.s32 1, %s16
  %s19 = scalar_select 0, %s18, %s16
  $region1: #{crn_dual_forward.2} parent=0
    #allocation3 [shape = 'u8[196608]{0}', space=vmem, size = 0x30000, scoped, tag = 'input window, operand 1']
    #allocation4 [shape = 's32[2]{0}', space=sflag, size = 0x8, scoped, tag = 'scoped memory for crn_dual_forward.2']
    #allocation5 [shape = 'u8[3072]{0}', space=vmem, size = 0xc00, scoped, tag = 'input window, operand 2']
    #allocation6 [shape = 's32[2]{0}', space=sflag, size = 0x8, scoped, tag = 'scoped memory for crn_dual_forward.2']
    #allocation7 [shape = 'u8[65536]{0}', space=vmem, size = 0x10000, scoped, tag = 'input window, operand 3']
    #allocation8 [shape = 'u8[1024]{0}', space=vmem, size = 0x400, scoped, tag = 'input window, operand 4']
    #allocation9 [shape = 's32[2]{0}', space=sflag, size = 0x8, scoped, tag = 'scoped memory for crn_dual_forward.2']
    #allocation10 [shape = 'u8[1024]{0}', space=vmem, size = 0x400, scoped, tag = 'input window, operand 5']
    #allocation11 [shape = 'u8[1024]{0}', space=vmem, size = 0x400, scoped, tag = 'input window, operand 6']
    #allocation12 [shape = 's32[2]{0}', space=sflag, size = 0x8, scoped, tag = 'scoped memory for crn_dual_forward.2']
    #allocation13 [shape = 'u8[262144]{0}', space=vmem, size = 0x40000, scoped, tag = 'input window, operand 7']
    #allocation14 [shape = 'u8[4096]{0}', space=vmem, size = 0x1000, scoped, tag = 'input window, operand 8']
    #allocation15 [shape = 's32[2]{0}', space=sflag, size = 0x8, scoped, tag = 'scoped memory for crn_dual_forward.2']
    #allocation16 [shape = 'u8[262144]{0}', space=vmem, size = 0x40000, scoped, tag = 'input window, operand 9']
    #allocation17 [shape = 'u8[1024]{0}', space=vmem, size = 0x400, scoped, tag = 'input window, operand 10']
    #allocation18 [shape = 's32[2]{0}', space=sflag, size = 0x8, scoped, tag = 'scoped memory for crn_dual_forward.2']
    #allocation19 [shape = 'u8[1024]{0}', space=vmem, size = 0x400, scoped, tag = 'input window, operand 11']
    #allocation20 [shape = 'u8[1024]{0}', space=vmem, size = 0x400, scoped, tag = 'input window, operand 12']
    #allocation21 [shape = 's32[2]{0}', space=sflag, size = 0x8, scoped, tag = 'scoped memory for crn_dual_forward.2']
    #allocation22 [shape = 'u8[2048]{0}', space=vmem, size = 0x800, scoped, tag = 'input window, operand 13, single buffered']
    %20 = vsyncpa [#allocation4], 0
    %s21 = scalar_lea.sflag [#allocation4], 1
    %22 = vsyncpa %s21, 0
    %23 = vsyncpa [#allocation6], 0
    %s24 = scalar_lea.sflag [#allocation6], 1
    %25 = vsyncpa %s24, 0
    %26 = vsyncpa [#allocation9], 0
    %s27 = scalar_lea.sflag [#allocation9], 1
    %28 = vsyncpa %s27, 0
    %29 = vsyncpa [#allocation12], 0
    %s30 = scalar_lea.sflag [#allocation12], 1
    %31 = vsyncpa %s30, 0
    %32 = vsyncpa [#allocation15], 0
    %s33 = scalar_lea.sflag [#allocation15], 1
    %34 = vsyncpa %s33, 0
    %35 = vsyncpa [#allocation18], 0
    %s36 = scalar_lea.sflag [#allocation18], 1
    %37 = vsyncpa %s36, 0
    %38 = vsyncpa [#allocation21], 0
    %s39 = scalar_lea.sflag [#allocation21], 1
    %40 = vsyncpa %s39, 0
    loop: start=0, step=1, limit=14
    $region2: #{crn_dual_forward.2} parent=1 // loop_pre_header
      _
    $region3: #{crn_dual_forward.2} parent=1 // loop_header
      %s42 = sphi 0, %s46
      %p43 = scmp.ge.s32.totalorder %s42, 14
      %s49 = sphi 0, %s61
      %s50 = sphi 0, %s57
      %s51 = sphi 0, %s49
      %s52 = sphi 0, %s50
      %s53 = sphi 0, %s51
      %s54 = sphi 0, %s52
      %s64 = sphi 0, %s66
      %s67 = sphi 0, %s64
      %s68 = sphi 0, %s67
      %s84 = sphi 0, %s68
      %s92 = sphi 0, %s94
      %s95 = sphi 0, %s92
      %s96 = sphi 0, %s95
      %s112 = sphi 0, %s96
      %s120 = sphi 0, %s122
      %s123 = sphi 0, %s120
      %s124 = sphi 0, %s123
      %s140 = sphi 0, %s124
      %s148 = sphi 0, %s150
      %s151 = sphi 0, %s148
      %s152 = sphi 0, %s151
      %s168 = sphi 0, %s152
      %s176 = sphi 0, %s178
      %s179 = sphi 0, %s176
      %s180 = sphi 0, %s179
      %s196 = sphi 0, %s180
      %s204 = sphi 0, %s206
      %s207 = sphi 0, %s204
      %s208 = sphi 0, %s207
      %s224 = sphi 0, %s208
      %s232 = sphi 0, %s234
      %s235 = sphi 0, %s232
      %s236 = sphi 0, %s235
      %s252 = sphi 0, %s236
      %s260 = sphi 0, %s262
      %s263 = sphi 0, %s260
      %s264 = sphi 0, %s263
      %s280 = sphi 0, %s264
      %s288 = sphi 0, %s290
      %s291 = sphi 0, %s288
      %s292 = sphi 0, %s291
      %s308 = sphi 0, %s292
      %s316 = sphi 0, %s318
      %s319 = sphi 0, %s316
      %s320 = sphi 0, %s319
      %s336 = sphi 0, %s320
      %s344 = sphi 0, %s346
      %s347 = sphi 0, %s344
      %s348 = sphi 0, %s347
      %s364 = sphi 0, %s348
      %s372 = sphi 0, %s374
      %s375 = sphi 0, %s372
      %s376 = sphi 0, %s375
      %s392 = sphi 0, %s376
      %s400 = sphi 0, %s402
      %s403 = sphi 0, %s400
      %s404 = sphi 0, %s403
      %s420 = sphi 0, %s404
      %s424 = sphi 0, %s424
      %s426 = sphi 0, %s424
      %s427 = sphi 0, %s426
      %s441 = sphi 0, %s427
      %s445 = sphi 0, %s445
      %s447 = sphi 0, %s445
      %s448 = sphi 0, %s447
      %s462 = sphi 0, %s448
      %s468 = sphi 0, %s470
      %s471 = sphi 0, %s468
      %s472 = sphi 0, %s471
      %s488 = sphi 0, %s472
    $region4: #{crn_dual_forward.2} parent=1 // loop_header_branch
      %45 = sbr.rel (%p43) target = $region8
    $region5: #{crn_dual_forward.2} parent=1 // loop_body
      %s47 = ssub.s32 %s42, 1
      %s48 = ssub.s32 %s42, 2
      %s55 = sadd.s32 1, %s50
      %p56 = scmp.ge.s32.totalorder %s55, 6
      %s57 = scalar_select %p56, 0, %s55
      %s58 = sadd.s32 1, %s49
      %s59 = scalar_select %p56, %s58, %s49
      %p60 = scmp.ge.s32.totalorder %s59, 2
      %s61 = scalar_select %p60, 0, %s59
      %s62 = ssub.s32 %s49, %s61
      %p63 = scmp.eq.s32.totalorder %s62, 0
      %s65 = sadd.s32 %s64, 1
      %s66 = scalar_select %p63, %s64, %s65
      %p69 = pneg %p63
      %p70 = scmp.eq.s32.totalorder %s42, 11
      %p71 = por %p69, %p70
      %p72 = scmp.ne.s32.totalorder %s64, %s67
      %p73 = scmp.eq.s32.totalorder %s42, 0
      %p74 = por %p72, %p73
      %p75 = scmp.ne.s32.totalorder %s64, %s67
      %p76 = scmp.eq.s32.totalorder %s47, 11
      %p77 = por %p75, %p76
      %p78 = scmp.ne.s32.totalorder %s67, %s68
      %p79 = scmp.eq.s32.totalorder %s47, 0
      %p80 = por %p78, %p79
      %p81 = scmp.ne.s32.totalorder %s67, %s68
      %p82 = scmp.eq.s32.totalorder %s48, 11
      %p83 = por %p81, %p82
      %p85 = scmp.ne.s32.totalorder %s68, %s84
      %p86 = scmp.eq.s32.totalorder %s48, 0
      %p87 = por %p85, %p86
      %s88 = ssub.s32 %s49, %s61
      %s89 = ssub.s32 %s50, %s57
      %s90 = sor.u32 %s88, %s89
      %p91 = scmp.eq.s32.totalorder %s90, 0
      %s93 = sadd.s32 %s92, 1
      %s94 = scalar_select %p91, %s92, %s93
      %p97 = pneg %p91
      %p98 = scmp.eq.s32.totalorder %s42, 11
      %p99 = por %p97, %p98
      %p100 = scmp.ne.s32.totalorder %s92, %s95
      %p101 = scmp.eq.s32.totalorder %s42, 0
      %p102 = por %p100, %p101
      %p103 = scmp.ne.s32.totalorder %s92, %s95
      %p104 = scmp.eq.s32.totalorder %s47, 11
      %p105 = por %p103, %p104
      %p106 = scmp.ne.s32.totalorder %s95, %s96
      %p107 = scmp.eq.s32.totalorder %s47, 0
      %p108 = por %p106, %p107
      %p109 = scmp.ne.s32.totalorder %s95, %s96
      %p110 = scmp.eq.s32.totalorder %s48, 11
      %p111 = por %p109, %p110
      %p113 = scmp.ne.s32.totalorder %s96, %s112
      %p114 = scmp.eq.s32.totalorder %s48, 0
      %p115 = por %p113, %p114
      %s116 = ssub.s32 %s49, %s61
      %s117 = ssub.s32 %s50, %s57
      %s118 = sor.u32 %s116, %s117
      %p119 = scmp.eq.s32.totalorder %s118, 0
      %s121 = sadd.s32 %s120, 1
      %s122 = scalar_select %p119, %s120, %s121
      %p125 = pneg %p119
      %p126 = scmp.eq.s32.totalorder %s42, 11
      %p127 = por %p125, %p126
      %p128 = scmp.ne.s32.totalorder %s120, %s123
      %p129 = scmp.eq.s32.totalorder %s42, 0
      %p130 = por %p128, %p129
      %p131 = scmp.ne.s32.totalorder %s120, %s123
      %p132 = scmp.eq.s32.totalorder %s47, 11
      %p133 = por %p131, %p132
      %p134 = scmp.ne.s32.totalorder %s123, %s124
      %p135 = scmp.eq.s32.totalorder %s47, 0
      %p136 = por %p134, %p135
      %p137 = scmp.ne.s32.totalorder %s123, %s124
      %p138 = scmp.eq.s32.totalorder %s48, 11
      %p139 = por %p137, %p138
      %p141 = scmp.ne.s32.totalorder %s124, %s140
      %p142 = scmp.eq.s32.totalorder %s48, 0
      %p143 = por %p141, %p142
      %s144 = ssub.s32 %s49, %s61
      %s145 = ssub.s32 %s50, %s57
      %s146 = sor.u32 %s144, %s145
      %p147 = scmp.eq.s32.totalorder %s146, 0
      %s149 = sadd.s32 %s148, 1
      %s150 = scalar_select %p147, %s148, %s149
      %p153 = pneg %p147
      %p154 = scmp.eq.s32.totalorder %s42, 11
      %p155 = por %p153, %p154
      %p156 = scmp.ne.s32.totalorder %s148, %s151
      %p157 = scmp.eq.s32.totalorder %s42, 0
      %p158 = por %p156, %p157
      %p159 = scmp.ne.s32.totalorder %s148, %s151
      %p160 = scmp.eq.s32.totalorder %s47, 11
      %p161 = por %p159, %p160
      %p162 = scmp.ne.s32.totalorder %s151, %s152
      %p163 = scmp.eq.s32.totalorder %s47, 0
      %p164 = por %p162, %p163
      %p165 = scmp.ne.s32.totalorder %s151, %s152
      %p166 = scmp.eq.s32.totalorder %s48, 11
      %p167 = por %p165, %p166
      %p169 = scmp.ne.s32.totalorder %s152, %s168
      %p170 = scmp.eq.s32.totalorder %s48, 0
      %p171 = por %p169, %p170
      %s172 = ssub.s32 %s49, %s61
      %s173 = ssub.s32 %s50, %s57
      %s174 = sor.u32 %s172, %s173
      %p175 = scmp.eq.s32.totalorder %s174, 0
      %s177 = sadd.s32 %s176, 1
      %s178 = scalar_select %p175, %s176, %s177
      %p181 = pneg %p175
      %p182 = scmp.eq.s32.totalorder %s42, 11
      %p183 = por %p181, %p182
      %p184 = scmp.ne.s32.totalorder %s176, %s179
      %p185 = scmp.eq.s32.totalorder %s42, 0
      %p186 = por %p184, %p185
      %p187 = scmp.ne.s32.totalorder %s176, %s179
      %p188 = scmp.eq.s32.totalorder %s47, 11
      %p189 = por %p187, %p188
      %p190 = scmp.ne.s32.totalorder %s179, %s180
      %p191 = scmp.eq.s32.totalorder %s47, 0
      %p192 = por %p190, %p191
      %p193 = scmp.ne.s32.totalorder %s179, %s180
      %p194 = scmp.eq.s32.totalorder %s48, 11
      %p195 = por %p193, %p194
      %p197 = scmp.ne.s32.totalorder %s180, %s196
      %p198 = scmp.eq.s32.totalorder %s48, 0
      %p199 = por %p197, %p198
      %s200 = ssub.s32 %s49, %s61
      %s201 = ssub.s32 %s50, %s57
      %s202 = sor.u32 %s200, %s201
      %p203 = scmp.eq.s32.totalorder %s202, 0
      %s205 = sadd.s32 %s204, 1
      %s206 = scalar_select %p203, %s204, %s205
      %p209 = pneg %p203
      %p210 = scmp.eq.s32.totalorder %s42, 11
      %p211 = por %p209, %p210
      %p212 = scmp.ne.s32.totalorder %s204, %s207
      %p213 = scmp.eq.s32.totalorder %s42, 0
      %p214 = por %p212, %p213
      %p215 = scmp.ne.s32.totalorder %s204, %s207
      %p216 = scmp.eq.s32.totalorder %s47, 11
      %p217 = por %p215, %p216
      %p218 = scmp.ne.s32.totalorder %s207, %s208
      %p219 = scmp.eq.s32.totalorder %s47, 0
      %p220 = por %p218, %p219
      %p221 = scmp.ne.s32.totalorder %s207, %s208
      %p222 = scmp.eq.s32.totalorder %s48, 11
      %p223 = por %p221, %p222
      %p225 = scmp.ne.s32.totalorder %s208, %s224
      %p226 = scmp.eq.s32.totalorder %s48, 0
      %p227 = por %p225, %p226
      %s228 = ssub.s32 %s49, %s61
      %s229 = ssub.s32 %s50, %s57
      %s230 = sor.u32 %s228, %s229
      %p231 = scmp.eq.s32.totalorder %s230, 0
      %s233 = sadd.s32 %s232, 1
      %s234 = scalar_select %p231, %s232, %s233
      %p237 = pneg %p231
      %p238 = scmp.eq.s32.totalorder %s42, 11
      %p239 = por %p237, %p238
      %p240 = scmp.ne.s32.totalorder %s232, %s235
      %p241 = scmp.eq.s32.totalorder %s42, 0
      %p242 = por %p240, %p241
      %p243 = scmp.ne.s32.totalorder %s232, %s235
      %p244 = scmp.eq.s32.totalorder %s47, 11
      %p245 = por %p243, %p244
      %p246 = scmp.ne.s32.totalorder %s235, %s236
      %p247 = scmp.eq.s32.totalorder %s47, 0
      %p248 = por %p246, %p247
      %p249 = scmp.ne.s32.totalorder %s235, %s236
      %p250 = scmp.eq.s32.totalorder %s48, 11
      %p251 = por %p249, %p250
      %p253 = scmp.ne.s32.totalorder %s236, %s252
      %p254 = scmp.eq.s32.totalorder %s48, 0
      %p255 = por %p253, %p254
      %s256 = ssub.s32 %s49, %s61
      %s257 = ssub.s32 %s50, %s57
      %s258 = sor.u32 %s256, %s257
      %p259 = scmp.eq.s32.totalorder %s258, 0
      %s261 = sadd.s32 %s260, 1
      %s262 = scalar_select %p259, %s260, %s261
      %p265 = pneg %p259
      %p266 = scmp.eq.s32.totalorder %s42, 11
      %p267 = por %p265, %p266
      %p268 = scmp.ne.s32.totalorder %s260, %s263
      %p269 = scmp.eq.s32.totalorder %s42, 0
      %p270 = por %p268, %p269
      %p271 = scmp.ne.s32.totalorder %s260, %s263
      %p272 = scmp.eq.s32.totalorder %s47, 11
      %p273 = por %p271, %p272
      %p274 = scmp.ne.s32.totalorder %s263, %s264
      %p275 = scmp.eq.s32.totalorder %s47, 0
      %p276 = por %p274, %p275
      %p277 = scmp.ne.s32.totalorder %s263, %s264
      %p278 = scmp.eq.s32.totalorder %s48, 11
      %p279 = por %p277, %p278
      %p281 = scmp.ne.s32.totalorder %s264, %s280
      %p282 = scmp.eq.s32.totalorder %s48, 0
      %p283 = por %p281, %p282
      %s284 = ssub.s32 %s49, %s61
      %s285 = ssub.s32 %s50, %s57
      %s286 = sor.u32 %s284, %s285
      %p287 = scmp.eq.s32.totalorder %s286, 0
      %s289 = sadd.s32 %s288, 1
      %s290 = scalar_select %p287, %s288, %s289
      %p293 = pneg %p287
      %p294 = scmp.eq.s32.totalorder %s42, 11
      %p295 = por %p293, %p294
      %p296 = scmp.ne.s32.totalorder %s288, %s291
      %p297 = scmp.eq.s32.totalorder %s42, 0
      %p298 = por %p296, %p297
      %p299 = scmp.ne.s32.totalorder %s288, %s291
      %p300 = scmp.eq.s32.totalorder %s47, 11
      %p301 = por %p299, %p300
      %p302 = scmp.ne.s32.totalorder %s291, %s292
      %p303 = scmp.eq.s32.totalorder %s47, 0
      %p304 = por %p302, %p303
      %p305 = scmp.ne.s32.totalorder %s291, %s292
      %p306 = scmp.eq.s32.totalorder %s48, 11
      %p307 = por %p305, %p306
      %p309 = scmp.ne.s32.totalorder %s292, %s308
      %p310 = scmp.eq.s32.totalorder %s48, 0
      %p311 = por %p309, %p310
      %s312 = ssub.s32 %s49, %s61
      %s313 = ssub.s32 %s50, %s57
      %s314 = sor.u32 %s312, %s313
      %p315 = scmp.eq.s32.totalorder %s314, 0
      %s317 = sadd.s32 %s316, 1
      %s318 = scalar_select %p315, %s316, %s317
      %p321 = pneg %p315
      %p322 = scmp.eq.s32.totalorder %s42, 11
      %p323 = por %p321, %p322
      %p324 = scmp.ne.s32.totalorder %s316, %s319
      %p325 = scmp.eq.s32.totalorder %s42, 0
      %p326 = por %p324, %p325
      %p327 = scmp.ne.s32.totalorder %s316, %s319
      %p328 = scmp.eq.s32.totalorder %s47, 11
      %p329 = por %p327, %p328
      %p330 = scmp.ne.s32.totalorder %s319, %s320
      %p331 = scmp.eq.s32.totalorder %s47, 0
      %p332 = por %p330, %p331
      %p333 = scmp.ne.s32.totalorder %s319, %s320
      %p334 = scmp.eq.s32.totalorder %s48, 11
      %p335 = por %p333, %p334
      %p337 = scmp.ne.s32.totalorder %s320, %s336
      %p338 = scmp.eq.s32.totalorder %s48, 0
      %p339 = por %p337, %p338
      %s340 = ssub.s32 %s49, %s61
      %s341 = ssub.s32 %s50, %s57
      %s342 = sor.u32 %s340, %s341
      %p343 = scmp.eq.s32.totalorder %s342, 0
      %s345 = sadd.s32 %s344, 1
      %s346 = scalar_select %p343, %s344, %s345
      %p349 = pneg %p343
      %p350 = scmp.eq.s32.totalorder %s42, 11
      %p351 = por %p349, %p350
      %p352 = scmp.ne.s32.totalorder %s344, %s347
      %p353 = scmp.eq.s32.totalorder %s42, 0
      %p354 = por %p352, %p353
      %p355 = scmp.ne.s32.totalorder %s344, %s347
      %p356 = scmp.eq.s32.totalorder %s47, 11
      %p357 = por %p355, %p356
      %p358 = scmp.ne.s32.totalorder %s347, %s348
      %p359 = scmp.eq.s32.totalorder %s47, 0
      %p360 = por %p358, %p359
      %p361 = scmp.ne.s32.totalorder %s347, %s348
      %p362 = scmp.eq.s32.totalorder %s48, 11
      %p363 = por %p361, %p362
      %p365 = scmp.ne.s32.totalorder %s348, %s364
      %p366 = scmp.eq.s32.totalorder %s48, 0
      %p367 = por %p365, %p366
      %s368 = ssub.s32 %s49, %s61
      %s369 = ssub.s32 %s50, %s57
      %s370 = sor.u32 %s368, %s369
      %p371 = scmp.eq.s32.totalorder %s370, 0
      %s373 = sadd.s32 %s372, 1
      %s374 = scalar_select %p371, %s372, %s373
      %p377 = pneg %p371
      %p378 = scmp.eq.s32.totalorder %s42, 11
      %p379 = por %p377, %p378
      %p380 = scmp.ne.s32.totalorder %s372, %s375
      %p381 = scmp.eq.s32.totalorder %s42, 0
      %p382 = por %p380, %p381
      %p383 = scmp.ne.s32.totalorder %s372, %s375
      %p384 = scmp.eq.s32.totalorder %s47, 11
      %p385 = por %p383, %p384
      %p386 = scmp.ne.s32.totalorder %s375, %s376
      %p387 = scmp.eq.s32.totalorder %s47, 0
      %p388 = por %p386, %p387
      %p389 = scmp.ne.s32.totalorder %s375, %s376
      %p390 = scmp.eq.s32.totalorder %s48, 11
      %p391 = por %p389, %p390
      %p393 = scmp.ne.s32.totalorder %s376, %s392
      %p394 = scmp.eq.s32.totalorder %s48, 0
      %p395 = por %p393, %p394
      %s396 = ssub.s32 %s49, %s61
      %s397 = ssub.s32 %s50, %s57
      %s398 = sor.u32 %s396, %s397
      %p399 = scmp.eq.s32.totalorder %s398, 0
      %s401 = sadd.s32 %s400, 1
      %s402 = scalar_select %p399, %s400, %s401
      %p405 = pneg %p399
      %p406 = scmp.eq.s32.totalorder %s42, 11
      %p407 = por %p405, %p406
      %p408 = scmp.ne.s32.totalorder %s400, %s403
      %p409 = scmp.eq.s32.totalorder %s42, 0
      %p410 = por %p408, %p409
      %p411 = scmp.ne.s32.totalorder %s400, %s403
      %p412 = scmp.eq.s32.totalorder %s47, 11
      %p413 = por %p411, %p412
      %p414 = scmp.ne.s32.totalorder %s403, %s404
      %p415 = scmp.eq.s32.totalorder %s47, 0
      %p416 = por %p414, %p415
      %p417 = scmp.ne.s32.totalorder %s403, %s404
      %p418 = scmp.eq.s32.totalorder %s48, 11
      %p419 = por %p417, %p418
      %p421 = scmp.ne.s32.totalorder %s404, %s420
      %p422 = scmp.eq.s32.totalorder %s48, 0
      %p423 = por %p421, %p422
      %s425 = sadd.s32 %s424, 1
      %p428 = scmp.eq.s32.totalorder %s42, 11
      %p429 = scmp.ne.s32.totalorder %s424, %s426
      %p430 = scmp.eq.s32.totalorder %s42, 0
      %p431 = por %p429, %p430
      %p432 = scmp.ne.s32.totalorder %s424, %s426
      %p433 = scmp.eq.s32.totalorder %s47, 11
      %p434 = por %p432, %p433
      %p435 = scmp.ne.s32.totalorder %s426, %s427
      %p436 = scmp.eq.s32.totalorder %s47, 0
      %p437 = por %p435, %p436
      %p438 = scmp.ne.s32.totalorder %s426, %s427
      %p439 = scmp.eq.s32.totalorder %s48, 11
      %p440 = por %p438, %p439
      %p442 = scmp.ne.s32.totalorder %s427, %s441
      %p443 = scmp.eq.s32.totalorder %s48, 0
      %p444 = por %p442, %p443
      %s446 = sadd.s32 %s445, 1
      %p449 = scmp.eq.s32.totalorder %s42, 11
      %p450 = scmp.ne.s32.totalorder %s445, %s447
      %p451 = scmp.eq.s32.totalorder %s42, 0
      %p452 = por %p450, %p451
      %p453 = scmp.ne.s32.totalorder %s445, %s447
      %p454 = scmp.eq.s32.totalorder %s47, 11
      %p455 = por %p453, %p454
      %p456 = scmp.ne.s32.totalorder %s447, %s448
      %p457 = scmp.eq.s32.totalorder %s47, 0
      %p458 = por %p456, %p457
      %p459 = scmp.ne.s32.totalorder %s447, %s448
      %p460 = scmp.eq.s32.totalorder %s48, 11
      %p461 = por %p459, %p460
      %p463 = scmp.ne.s32.totalorder %s448, %s462
      %p464 = scmp.eq.s32.totalorder %s48, 0
      %p465 = por %p463, %p464
      %s466 = ssub.s32 %s49, %s61
      %p467 = scmp.eq.s32.totalorder %s466, 0
      %s469 = sadd.s32 %s468, 1
      %s470 = scalar_select %p467, %s468, %s469
      %p473 = pneg %p467
      %p474 = scmp.eq.s32.totalorder %s42, 11
      %p475 = por %p473, %p474
      %p476 = scmp.ne.s32.totalorder %s468, %s471
      %p477 = scmp.eq.s32.totalorder %s42, 0
      %p478 = por %p476, %p477
      %p479 = scmp.ne.s32.totalorder %s468, %s471
      %p480 = scmp.eq.s32.totalorder %s47, 11
      %p481 = por %p479, %p480
      %p482 = scmp.ne.s32.totalorder %s471, %s472
      %p483 = scmp.eq.s32.totalorder %s47, 0
      %p484 = por %p482, %p483
      %p485 = scmp.ne.s32.totalorder %s471, %s472
      %p486 = scmp.eq.s32.totalorder %s48, 11
      %p487 = por %p485, %p486
      %p489 = scmp.ne.s32.totalorder %s472, %s488
      %p490 = scmp.eq.s32.totalorder %s48, 0
      %p491 = por %p489, %p490
      %p492 = scmp.le.s32.totalorder 1, %s42
      %p493 = scmp.lt.s32.totalorder %s42, 13
      %p494 = pnand %p492, %p493
      %p495 = pneg %p494
      // Predicated region
      $region9: #{crn_dual_forward.2} parent=5 // pred_check
        _
      $region10: #{crn_dual_forward.2} parent=5 // pred_check_branch
        %497 = sbr.rel (%p494) target = $region12
      $region11: #{crn_dual_forward.2} parent=5 // pred_region
        %s498 = ssub.s32 %s42, 1
        // Predicated region
        $region13: #{crn_dual_forward.2} parent=11 // pred_check
          %p499 = pneg %p437
        $region14: #{crn_dual_forward.2} parent=11 // pred_check_branch
          %501 = sbr.rel (%p499) target = $region16
        $region15: #{crn_dual_forward.2} parent=11 // pred_region
          %s503 = ssub.s32 64, 64
          %504 = vsyncadd [#allocation21], %s503
          %s506 = sshll.u32 [#allocation22], 4
          %s507 = int_to_ptr.vmem [resolvable:$true] %s506
          %509 = dma.hbm_to_vmem [thread:$0]  %s13, 64, %s507, [#allocation21]
        $region16: #{crn_dual_forward.2} parent=11 // pred_fallthru
          _
        // Predicated region
        $region17: #{crn_dual_forward.2} parent=11 // pred_check
          %p510 = pneg %p458
        $region18: #{crn_dual_forward.2} parent=11 // pred_check_branch
          %512 = sbr.rel (%p510) target = $region20
        $region19: #{crn_dual_forward.2} parent=11 // pred_region
          _
        $region20: #{crn_dual_forward.2} parent=11 // pred_fallthru
          _
      $region12: #{crn_dual_forward.2} parent=5 // pred_fallthru
        _
      %p513 = scmp.lt.s32.totalorder %s42, 12
      // Predicated region
      $region21: #{crn_dual_forward.2} parent=5 // pred_check
        %p514 = pneg %p513
      $region22: #{crn_dual_forward.2} parent=5 // pred_check_branch
        %516 = sbr.rel (%p514) target = $region24
      $region23: #{crn_dual_forward.2} parent=5 // pred_region
        // Predicated region
        $region25: #{crn_dual_forward.2} parent=23 // pred_check
          %p517 = pneg %p74
        $region26: #{crn_dual_forward.2} parent=23 // pred_check_branch
          %519 = sbr.rel (%p517) target = $region28
        $region27: #{crn_dual_forward.2} parent=23 // pred_region
          %p520 = scmp.lt.s32.totalorder %s49, 1
          %s521 = scalar_select %p520, %s49, 1
          %s522 = smul.addr %s521, 2
          %s523 = smul.addr %s522, 8
          %s524 = scalar_lea.vmem %s0, %s523
        $region28: #{crn_dual_forward.2} parent=23 // pred_fallthru
          _
        // Predicated region
        $region29: #{crn_dual_forward.2} parent=23 // pred_check
          %p525 = pneg %p102
        $region30: #{crn_dual_forward.2} parent=23 // pred_check_branch
          %527 = sbr.rel (%p525) target = $region32
        $region31: #{crn_dual_forward.2} parent=23 // pred_region
          %s528 = sand.u32 %s92, 1
          %s529 = scalar_lea.sflag [#allocation4], %s528
          %s530 = sand.u32 %s92, 1
          %s531 = smul.addr %s530, 192
          %s532 = scalar_lea.vmem [#allocation3], %s531
          %s534 = ssub.s32 3072, 3072
          %535 = vsyncadd %s529, %s534
          %s536 = smul.addr %s50, 48
          %s537 = smul.addr %s49, 288
          %s538 = sadd.s32 %s536, %s537
          %s539 = smul.addr %s538, 64
          %s540 = scalar_lea.hbm %s1, %s539
          %s541 = sshll.u32 %s532, 4
          %s542 = int_to_ptr.vmem [resolvable:$true] %s541
          %547 = dma.hbm_to_vmem [thread:$0]  %s540, 3072, %s542, %s529, 192, 192, 12
        $region32: #{crn_dual_forward.2} parent=23 // pred_fallthru
          _
        // Predicated region
        $region33: #{crn_dual_forward.2} parent=23 // pred_check
          %p548 = pneg %p130
        $region34: #{crn_dual_forward.2} parent=23 // pred_check_branch
          %550 = sbr.rel (%p548) target = $region36
        $region35: #{crn_dual_forward.2} parent=23 // pred_region
          %s551 = sand.u32 %s42, 1
          %s552 = scalar_lea.sflag [#allocation6], %s551
          %s553 = sand.u32 %s120, 1
          %s554 = smul.addr %s553, 3
          %s555 = scalar_lea.vmem [#allocation5], %s554
          %s557 = ssub.s32 48, 48
          %558 = vsyncadd %s552, %s557
          %s559 = smul.addr %s50, 3
          %s560 = smul.addr %s49, 18
          %s561 = sadd.s32 %s559, %s560
          %s562 = smul.addr %s561, 16
          %s563 = scalar_lea.hbm %s2, %s562
          %s565 = sshll.u32 %s555, 4
          %s566 = int_to_ptr.vmem [resolvable:$true] %s565
          %568 = dma.hbm_to_vmem [thread:$0]  %s563, 48, %s566, %s552
        $region36: #{crn_dual_forward.2} parent=23 // pred_fallthru
          _
        // Predicated region
        $region37: #{crn_dual_forward.2} parent=23 // pred_check
          %p569 = pneg %p158
        $region38: #{crn_dual_forward.2} parent=23 // pred_check_branch
          %571 = sbr.rel (%p569) target = $region40
        $region39: #{crn_dual_forward.2} parent=23 // pred_region
          %s572 = sand.u32 %s42, 1
          %s573 = scalar_lea.sflag [#allocation6], %s572
          %s574 = sand.u32 %s148, 1
          %s575 = smul.addr %s574, 64
          %s576 = scalar_lea.vmem [#allocation7], %s575
          %s578 = ssub.s32 1024, 1024
          %579 = vsyncadd %s573, %s578
          %s580 = smul.addr %s50, 16
          %s581 = smul.addr %s49, 96
          %s582 = sadd.s32 %s580, %s581
          %s583 = smul.addr %s582, 64
          %s584 = scalar_lea.hbm %s3, %s583
          %s585 = sshll.u32 %s576, 4
          %s586 = int_to_ptr.vmem [resolvable:$true] %s585
          %591 = dma.hbm_to_vmem [thread:$0]  %s584, 1024, %s586, %s573, 64, 64, 4
        $region40: #{crn_dual_forward.2} parent=23 // pred_fallthru
          _
        // Predicated region
        $region41: #{crn_dual_forward.2} parent=23 // pred_check
          %p592 = pneg %p186
        $region42: #{crn_dual_forward.2} parent=23 // pred_check_branch
          %594 = sbr.rel (%p592) target = $region44
        $region43: #{crn_dual_forward.2} parent=23 // pred_region
          %s595 = sand.u32 %s42, 1
          %s596 = scalar_lea.sflag [#allocation9], %s595
          %s597 = sand.u32 %s176, 1
          %s598 = scalar_lea.vmem [#allocation8], %s597
          %s600 = ssub.s32 16, 16
          %601 = vsyncadd %s596, %s600
          %s602 = smul.addr %s49, 6
          %s603 = sadd.s32 %s50, %s602
          %s604 = smul.addr %s603, 16
          %s605 = scalar_lea.hbm %s4, %s604
          %s607 = sshll.u32 %s598, 4
          %s608 = int_to_ptr.vmem [resolvable:$true] %s607
          %610 = dma.hbm_to_vmem [thread:$0]  %s605, 16, %s608, %s596
        $region44: #{crn_dual_forward.2} parent=23 // pred_fallthru
          _
        // Predicated region
        $region45: #{crn_dual_forward.2} parent=23 // pred_check
          %p611 = pneg %p214
        $region46: #{crn_dual_forward.2} parent=23 // pred_check_branch
          %613 = sbr.rel (%p611) target = $region48
        $region47: #{crn_dual_forward.2} parent=23 // pred_region
          %s614 = sand.u32 %s42, 1
          %s615 = scalar_lea.sflag [#allocation9], %s614
          %s616 = sand.u32 %s204, 1
          %s617 = scalar_lea.vmem [#allocation10], %s616
          %s619 = ssub.s32 16, 16
          %620 = vsyncadd %s615, %s619
          %s621 = smul.addr %s49, 6
          %s622 = sadd.s32 %s50, %s621
          %s623 = smul.addr %s622, 16
          %s624 = scalar_lea.hbm %s5, %s623
          %s626 = sshll.u32 %s617, 4
          %s627 = int_to_ptr.vmem [resolvable:$true] %s626
          %629 = dma.hbm_to_vmem [thread:$0]  %s624, 16, %s627, %s615
        $region48: #{crn_dual_forward.2} parent=23 // pred_fallthru
          _
        // Predicated region
        $region49: #{crn_dual_forward.2} parent=23 // pred_check
          %p630 = pneg %p242
        $region50: #{crn_dual_forward.2} parent=23 // pred_check_branch
          %632 = sbr.rel (%p630) target = $region52
        $region51: #{crn_dual_forward.2} parent=23 // pred_region
          %s633 = sand.u32 %s42, 1
          %s634 = scalar_lea.sflag [#allocation12], %s633
          %s635 = sand.u32 %s232, 1
          %s636 = scalar_lea.vmem [#allocation11], %s635
          %s638 = ssub.s32 16, 16
          %639 = vsyncadd %s634, %s638
          %s640 = smul.addr %s49, 6
          %s641 = sadd.s32 %s50, %s640
          %s642 = smul.addr %s641, 16
          %s643 = scalar_lea.hbm %s6, %s642
          %s645 = sshll.u32 %s636, 4
          %s646 = int_to_ptr.vmem [resolvable:$true] %s645
          %648 = dma.hbm_to_vmem [thread:$0]  %s643, 16, %s646, %s634
        $region52: #{crn_dual_forward.2} parent=23 // pred_fallthru
          _
        // Predicated region
        $region53: #{crn_dual_forward.2} parent=23 // pred_check
          %p649 = pneg %p270
        $region54: #{crn_dual_forward.2} parent=23 // pred_check_branch
          %651 = sbr.rel (%p649) target = $region56
        $region55: #{crn_dual_forward.2} parent=23 // pred_region
          %s652 = sand.u32 %s42, 1
          %s653 = scalar_lea.sflag [#allocation12], %s652
          %s654 = sand.u32 %s260, 1
          %s655 = smul.addr %s654, 256
          %s656 = scalar_lea.vmem [#allocation13], %s655
          %s658 = ssub.s32 4096, 4096
          %659 = vsyncadd %s653, %s658
          %s660 = smul.addr %s50, 64
          %s661 = smul.addr %s49, 384
          %s662 = sadd.s32 %s660, %s661
          %s663 = smul.addr %s662, 64
          %s664 = scalar_lea.hbm %s7, %s663
          %s665 = sshll.u32 %s656, 4
          %s666 = int_to_ptr.vmem [resolvable:$true] %s665
          %671 = dma.hbm_to_vmem [thread:$0]  %s664, 4096, %s666, %s653, 256, 256, 16
        $region56: #{crn_dual_forward.2} parent=23 // pred_fallthru
          _
        // Predicated region
        $region57: #{crn_dual_forward.2} parent=23 // pred_check
          %p672 = pneg %p298
        $region58: #{crn_dual_forward.2} parent=23 // pred_check_branch
          %674 = sbr.rel (%p672) target = $region60
        $region59: #{crn_dual_forward.2} parent=23 // pred_region
          %s675 = sand.u32 %s42, 1
          %s676 = scalar_lea.sflag [#allocation15], %s675
          %s677 = sand.u32 %s288, 1
          %s678 = smul.addr %s677, 4
          %s679 = scalar_lea.vmem [#allocation14], %s678
          %s681 = ssub.s32 64, 64
          %682 = vsyncadd %s676, %s681
          %s683 = smul.addr %s50, 4
          %s684 = smul.addr %s49, 24
          %s685 = sadd.s32 %s683, %s684
          %s686 = smul.addr %s685, 16
          %s687 = scalar_lea.hbm %s8, %s686
          %s689 = sshll.u32 %s679, 4
          %s690 = int_to_ptr.vmem [resolvable:$true] %s689
          %692 = dma.hbm_to_vmem [thread:$0]  %s687, 64, %s690, %s676
        $region60: #{crn_dual_forward.2} parent=23 // pred_fallthru
          _
        // Predicated region
        $region61: #{crn_dual_forward.2} parent=23 // pred_check
          %p693 = pneg %p326
        $region62: #{crn_dual_forward.2} parent=23 // pred_check_branch
          %695 = sbr.rel (%p693) target = $region64
        $region63: #{crn_dual_forward.2} parent=23 // pred_region
          %s696 = sand.u32 %s42, 1
          %s697 = scalar_lea.sflag [#allocation15], %s696
          %s698 = sand.u32 %s316, 1
          %s699 = smul.addr %s698, 256
          %s700 = scalar_lea.vmem [#allocation16], %s699
          %s702 = ssub.s32 4096, 4096
          %703 = vsyncadd %s697, %s702
          %s704 = smul.addr %s50, 64
          %s705 = smul.addr %s49, 384
          %s706 = sadd.s32 %s704, %s705
          %s707 = smul.addr %s706, 64
          %s708 = scalar_lea.hbm %s9, %s707
          %s709 = sshll.u32 %s700, 4
          %s710 = int_to_ptr.vmem [resolvable:$true] %s709
          %715 = dma.hbm_to_vmem [thread:$0]  %s708, 4096, %s710, %s697, 64, 64, 4
        $region64: #{crn_dual_forward.2} parent=23 // pred_fallthru
          _
        // Predicated region
        $region65: #{crn_dual_forward.2} parent=23 // pred_check
          %p716 = pneg %p354
        $region66: #{crn_dual_forward.2} parent=23 // pred_check_branch
          %718 = sbr.rel (%p716) target = $region68
        $region67: #{crn_dual_forward.2} parent=23 // pred_region
          %s719 = sand.u32 %s42, 1
          %s720 = scalar_lea.sflag [#allocation18], %s719
          %s721 = sand.u32 %s344, 1
          %s722 = scalar_lea.vmem [#allocation17], %s721
          %s724 = ssub.s32 16, 16
          %725 = vsyncadd %s720, %s724
          %s726 = smul.addr %s49, 6
          %s727 = sadd.s32 %s50, %s726
          %s728 = smul.addr %s727, 16
          %s729 = scalar_lea.hbm %s10, %s728
          %s731 = sshll.u32 %s722, 4
          %s732 = int_to_ptr.vmem [resolvable:$true] %s731
          %734 = dma.hbm_to_vmem [thread:$0]  %s729, 16, %s732, %s720
        $region68: #{crn_dual_forward.2} parent=23 // pred_fallthru
          _
        // Predicated region
        $region69: #{crn_dual_forward.2} parent=23 // pred_check
          %p735 = pneg %p382
        $region70: #{crn_dual_forward.2} parent=23 // pred_check_branch
          %737 = sbr.rel (%p735) target = $region72
        $region71: #{crn_dual_forward.2} parent=23 // pred_region
          %s738 = sand.u32 %s42, 1
          %s739 = scalar_lea.sflag [#allocation18], %s738
          %s740 = sand.u32 %s372, 1
          %s741 = scalar_lea.vmem [#allocation19], %s740
          %s743 = ssub.s32 16, 16
          %744 = vsyncadd %s739, %s743
          %s745 = smul.addr %s49, 6
          %s746 = sadd.s32 %s50, %s745
          %s747 = smul.addr %s746, 16
          %s748 = scalar_lea.hbm %s11, %s747
          %s750 = sshll.u32 %s741, 4
          %s751 = int_to_ptr.vmem [resolvable:$true] %s750
          %753 = dma.hbm_to_vmem [thread:$0]  %s748, 16, %s751, %s739
        $region72: #{crn_dual_forward.2} parent=23 // pred_fallthru
          _
        // Predicated region
        $region73: #{crn_dual_forward.2} parent=23 // pred_check
          %p754 = pneg %p410
        $region74: #{crn_dual_forward.2} parent=23 // pred_check_branch
          %756 = sbr.rel (%p754) target = $region76
        $region75: #{crn_dual_forward.2} parent=23 // pred_region
          %s757 = sand.u32 %s42, 1
          %s758 = scalar_lea.sflag [#allocation21], %s757
          %s759 = sand.u32 %s400, 1
          %s760 = scalar_lea.vmem [#allocation20], %s759
          %s762 = ssub.s32 16, 16
          %763 = vsyncadd %s758, %s762
          %s764 = smul.addr %s49, 6
          %s765 = sadd.s32 %s50, %s764
          %s766 = smul.addr %s765, 16
          %s767 = scalar_lea.hbm %s12, %s766
          %s769 = sshll.u32 %s760, 4
          %s770 = int_to_ptr.vmem [resolvable:$true] %s769
          %772 = dma.hbm_to_vmem [thread:$0]  %s767, 16, %s770, %s758
        $region76: #{crn_dual_forward.2} parent=23 // pred_fallthru
          _
      $region24: #{crn_dual_forward.2} parent=5 // pred_fallthru
        _
      %p773 = scmp.le.s32.totalorder 1, %s42
      %p774 = scmp.lt.s32.totalorder %s42, 13
      %p775 = pnand %p773, %p774
      %p776 = pneg %p775
      // Predicated region
      $region77: #{crn_dual_forward.2} parent=5 // pred_check
        _
      $region78: #{crn_dual_forward.2} parent=5 // pred_check_branch
        %778 = sbr.rel (%p775) target = $region80
      $region79: #{crn_dual_forward.2} parent=5 // pred_region
        %s779 = ssub.s32 %s42, 1
        %s780 = sand.u32 %s95, 1
        %s781 = scalar_lea.sflag [#allocation4], %s780
        %s782 = sand.u32 %s95, 1
        %s783 = smul.addr %s782, 192
        %s784 = scalar_lea.vmem [#allocation3], %s783
        // Predicated region
        $region81: #{crn_dual_forward.2} parent=79 // pred_check
          %p785 = pneg %p108
        $region82: #{crn_dual_forward.2} parent=79 // pred_check_branch
          %787 = sbr.rel (%p785) target = $region84
        $region83: #{crn_dual_forward.2} parent=79 // pred_region
          %788 = dma.done %s781, 3072
        $region84: #{crn_dual_forward.2} parent=79 // pred_fallthru
          _
        %s789 = sand.u32 %s47, 1
        %s790 = scalar_lea.sflag [#allocation6], %s789
        %s791 = sand.u32 %s123, 1
        %s792 = smul.addr %s791, 3
        %s793 = scalar_lea.vmem [#allocation5], %s792
        // Predicated region
        $region85: #{crn_dual_forward.2} parent=79 // pred_check
          %p794 = pneg %p136
        $region86: #{crn_dual_forward.2} parent=79 // pred_check_branch
          %796 = sbr.rel (%p794) target = $region88
        $region87: #{crn_dual_forward.2} parent=79 // pred_region
          %797 = dma.done %s790, 48
        $region88: #{crn_dual_forward.2} parent=79 // pred_fallthru
          _
        %s798 = sand.u32 %s47, 1
        %s799 = scalar_lea.sflag [#allocation6], %s798
        %s800 = sand.u32 %s151, 1
        %s801 = smul.addr %s800, 64
        %s802 = scalar_lea.vmem [#allocation7], %s801
        // Predicated region
        $region89: #{crn_dual_forward.2} parent=79 // pred_check
          %p803 = pneg %p164
        $region90: #{crn_dual_forward.2} parent=79 // pred_check_branch
          %805 = sbr.rel (%p803) target = $region92
        $region91: #{crn_dual_forward.2} parent=79 // pred_region
          %806 = dma.done %s799, 1024
        $region92: #{crn_dual_forward.2} parent=79 // pred_fallthru
          _
        %s807 = sand.u32 %s47, 1
        %s808 = scalar_lea.sflag [#allocation9], %s807
        %s809 = sand.u32 %s179, 1
        %s810 = scalar_lea.vmem [#allocation8], %s809
        // Predicated region
        $region93: #{crn_dual_forward.2} parent=79 // pred_check
          %p811 = pneg %p192
        $region94: #{crn_dual_forward.2} parent=79 // pred_check_branch
          %813 = sbr.rel (%p811) target = $region96
        $region95: #{crn_dual_forward.2} parent=79 // pred_region
          %814 = dma.done %s808, 16
        $region96: #{crn_dual_forward.2} parent=79 // pred_fallthru
          _
        %s815 = sand.u32 %s47, 1
        %s816 = scalar_lea.sflag [#allocation9], %s815
        %s817 = sand.u32 %s207, 1
        %s818 = scalar_lea.vmem [#allocation10], %s817
        // Predicated region
        $region97: #{crn_dual_forward.2} parent=79 // pred_check
          %p819 = pneg %p220
        $region98: #{crn_dual_forward.2} parent=79 // pred_check_branch
          %821 = sbr.rel (%p819) target = $region100
        $region99: #{crn_dual_forward.2} parent=79 // pred_region
          %822 = dma.done %s816, 16
        $region100: #{crn_dual_forward.2} parent=79 // pred_fallthru
          _
        %s823 = sand.u32 %s47, 1
        %s824 = scalar_lea.sflag [#allocation12], %s823
        %s825 = sand.u32 %s235, 1
        %s826 = scalar_lea.vmem [#allocation11], %s825
        // Predicated region
        $region101: #{crn_dual_forward.2} parent=79 // pred_check
          %p827 = pneg %p248
        $region102: #{crn_dual_forward.2} parent=79 // pred_check_branch
          %829 = sbr.rel (%p827) target = $region104
        $region103: #{crn_dual_forward.2} parent=79 // pred_region
          %830 = dma.done %s824, 16
        $region104: #{crn_dual_forward.2} parent=79 // pred_fallthru
          _
        %s831 = sand.u32 %s47, 1
        %s832 = scalar_lea.sflag [#allocation12], %s831
        %s833 = sand.u32 %s263, 1
        %s834 = smul.addr %s833, 256
        %s835 = scalar_lea.vmem [#allocation13], %s834
        // Predicated region
        $region105: #{crn_dual_forward.2} parent=79 // pred_check
          %p836 = pneg %p276
        $region106: #{crn_dual_forward.2} parent=79 // pred_check_branch
          %838 = sbr.rel (%p836) target = $region108
        $region107: #{crn_dual_forward.2} parent=79 // pred_region
          %839 = dma.done %s832, 4096
        $region108: #{crn_dual_forward.2} parent=79 // pred_fallthru
          _
        %s840 = sand.u32 %s47, 1
        %s841 = scalar_lea.sflag [#allocation15], %s840
        %s842 = sand.u32 %s291, 1
        %s843 = smul.addr %s842, 4
        %s844 = scalar_lea.vmem [#allocation14], %s843
        // Predicated region
        $region109: #{crn_dual_forward.2} parent=79 // pred_check
          %p845 = pneg %p304
        $region110: #{crn_dual_forward.2} parent=79 // pred_check_branch
          %847 = sbr.rel (%p845) target = $region112
        $region111: #{crn_dual_forward.2} parent=79 // pred_region
          %848 = dma.done %s841, 64
        $region112: #{crn_dual_forward.2} parent=79 // pred_fallthru
          _
        %s849 = sand.u32 %s47, 1
        %s850 = scalar_lea.sflag [#allocation15], %s849
        %s851 = sand.u32 %s319, 1
        %s852 = smul.addr %s851, 256
        %s853 = scalar_lea.vmem [#allocation16], %s852
        // Predicated region
        $region113: #{crn_dual_forward.2} parent=79 // pred_check
          %p854 = pneg %p332
        $region114: #{crn_dual_forward.2} parent=79 // pred_check_branch
          %856 = sbr.rel (%p854) target = $region116
        $region115: #{crn_dual_forward.2} parent=79 // pred_region
          %857 = dma.done %s850, 4096
        $region116: #{crn_dual_forward.2} parent=79 // pred_fallthru
          _
        %s858 = sand.u32 %s47, 1
        %s859 = scalar_lea.sflag [#allocation18], %s858
        %s860 = sand.u32 %s347, 1
        %s861 = scalar_lea.vmem [#allocation17], %s860
        // Predicated region
        $region117: #{crn_dual_forward.2} parent=79 // pred_check
          %p862 = pneg %p360
        $region118: #{crn_dual_forward.2} parent=79 // pred_check_branch
          %864 = sbr.rel (%p862) target = $region120
        $region119: #{crn_dual_forward.2} parent=79 // pred_region
          %865 = dma.done %s859, 16
        $region120: #{crn_dual_forward.2} parent=79 // pred_fallthru
          _
        %s866 = sand.u32 %s47, 1
        %s867 = scalar_lea.sflag [#allocation18], %s866
        %s868 = sand.u32 %s375, 1
        %s869 = scalar_lea.vmem [#allocation19], %s868
        // Predicated region
        $region121: #{crn_dual_forward.2} parent=79 // pred_check
          %p870 = pneg %p388
        $region122: #{crn_dual_forward.2} parent=79 // pred_check_branch
          %872 = sbr.rel (%p870) target = $region124
        $region123: #{crn_dual_forward.2} parent=79 // pred_region
          %873 = dma.done %s867, 16
        $region124: #{crn_dual_forward.2} parent=79 // pred_fallthru
          _
        %s874 = sand.u32 %s47, 1
        %s875 = scalar_lea.sflag [#allocation21], %s874
        %s876 = sand.u32 %s403, 1
        %s877 = scalar_lea.vmem [#allocation20], %s876
        // Predicated region
        $region125: #{crn_dual_forward.2} parent=79 // pred_check
          %p878 = pneg %p416
        $region126: #{crn_dual_forward.2} parent=79 // pred_check_branch
          %880 = sbr.rel (%p878) target = $region128
        $region127: #{crn_dual_forward.2} parent=79 // pred_region
          %881 = dma.done %s875, 16
        $region128: #{crn_dual_forward.2} parent=79 // pred_fallthru
          _
        // Predicated region
        $region129: #{crn_dual_forward.2} parent=79 // pred_check
          %p882 = pneg %p437
        $region130: #{crn_dual_forward.2} parent=79 // pred_check_branch
          %884 = sbr.rel (%p882) target = $region132
        $region131: #{crn_dual_forward.2} parent=79 // pred_region
          %885 = dma.done [#allocation21], 64
        $region132: #{crn_dual_forward.2} parent=79 // pred_fallthru
          _
        %p886 = scmp.lt.s32.totalorder %s51, 1
        %s887 = scalar_select %p886, %s51, 1
        %s888 = smul.addr %s887, 2
        %s889 = smul.addr %s888, 8
        %s890 = scalar_lea.vmem %s0, %s889
        %p891 = pneg %p80
        %p892 = pneg %p77
        %s893 = sand.u32 %s95, 1
        %s894 = scalar_lea.sflag [#allocation4], %s893
        %s895 = sand.u32 %s95, 1
        %s896 = smul.addr %s895, 192
        %s897 = scalar_lea.vmem [#allocation3], %s896
        %p898 = pneg %p108
        %p899 = pneg %p105
        %s900 = sand.u32 %s47, 1
        %s901 = scalar_lea.sflag [#allocation6], %s900
        %s902 = sand.u32 %s123, 1
        %s903 = smul.addr %s902, 3
        %s904 = scalar_lea.vmem [#allocation5], %s903
        %p905 = pneg %p136
        %p906 = pneg %p133
        %s907 = sand.u32 %s47, 1
        %s908 = scalar_lea.sflag [#allocation6], %s907
        %s909 = sand.u32 %s151, 1
        %s910 = smul.addr %s909, 64
        %s911 = scalar_lea.vmem [#allocation7], %s910
        %p912 = pneg %p164
        %p913 = pneg %p161
        %s914 = sand.u32 %s47, 1
        %s915 = scalar_lea.sflag [#allocation9], %s914
        %s916 = sand.u32 %s179, 1
        %s917 = scalar_lea.vmem [#allocation8], %s916
        %p918 = pneg %p192
        %p919 = pneg %p189
        %s920 = sand.u32 %s47, 1
        %s921 = scalar_lea.sflag [#allocation9], %s920
        %s922 = sand.u32 %s207, 1
        %s923 = scalar_lea.vmem [#allocation10], %s922
        %p924 = pneg %p220
        %p925 = pneg %p217
        %s926 = sand.u32 %s47, 1
        %s927 = scalar_lea.sflag [#allocation12], %s926
        %s928 = sand.u32 %s235, 1
        %s929 = scalar_lea.vmem [#allocation11], %s928
        %p930 = pneg %p248
        %p931 = pneg %p245
        %s932 = sand.u32 %s47, 1
        %s933 = scalar_lea.sflag [#allocation12], %s932
        %s934 = sand.u32 %s263, 1
        %s935 = smul.addr %s934, 256
        %s936 = scalar_lea.vmem [#allocation13], %s935
        %p937 = pneg %p276
        %p938 = pneg %p273
        %s939 = sand.u32 %s47, 1
        %s940 = scalar_lea.sflag [#allocation15], %s939
        %s941 = sand.u32 %s291, 1
        %s942 = smul.addr %s941, 4
        %s943 = scalar_lea.vmem [#allocation14], %s942
        %p944 = pneg %p304
        %p945 = pneg %p301
        %s946 = sand.u32 %s47, 1
        %s947 = scalar_lea.sflag [#allocation15], %s946
        %s948 = sand.u32 %s319, 1
        %s949 = smul.addr %s948, 256
        %s950 = scalar_lea.vmem [#allocation16], %s949
        %p951 = pneg %p332
        %p952 = pneg %p329
        %s953 = sand.u32 %s47, 1
        %s954 = scalar_lea.sflag [#allocation18], %s953
        %s955 = sand.u32 %s347, 1
        %s956 = scalar_lea.vmem [#allocation17], %s955
        %p957 = pneg %p360
        %p958 = pneg %p357
        %s959 = sand.u32 %s47, 1
        %s960 = scalar_lea.sflag [#allocation18], %s959
        %s961 = sand.u32 %s375, 1
        %s962 = scalar_lea.vmem [#allocation19], %s961
        %p963 = pneg %p388
        %p964 = pneg %p385
        %s965 = sand.u32 %s47, 1
        %s966 = scalar_lea.sflag [#allocation21], %s965
        %s967 = sand.u32 %s403, 1
        %s968 = scalar_lea.vmem [#allocation20], %s967
        %p969 = pneg %p416
        %p970 = pneg %p413
        %p971 = pneg %p437
        %p972 = pneg %p434
        %p973 = pneg %p458
        %p974 = pneg %p455
        %p975 = pneg %p484
        %p976 = pneg %p481
        %p977 = scmp.lt.s32.totalorder %s51, 1
        %s978 = scalar_select %p977, %s51, 1
        %s979 = smul.addr %s978, 2
        %s980 = smul.addr %s979, 8
        %s981 = scalar_lea.vmem %s15, %s980
        %p982 = scmp.lt.s32.totalorder %s51, 1
        %s983 = scalar_select %p982, %s51, 1
        %s984 = smul.addr %s983, 2
        %s985 = smul.addr %s984, 8
        %s986 = scalar_lea.vmem %s0, %s985
        %p987 = scmp.lt.s32.totalorder %s51, 1
        %s988 = scalar_select %p987, %s51, 1
        %s989 = smul.addr %s988, 2
        %s990 = smul.addr %s989, 8
        %s991 = scalar_lea.vmem %s15, %s990
        %p993 = scmp.eq.s32.totalorder %s51, 0
        %s994 = scalar_select %p993, 6, 4
        %p995 = scmp.eq.s32.totalorder %s52, 0
        // Predicated region
        $region133: #{crn_dual_forward.2} parent=79 // pred_check
          %p996 = pneg %p995
        $region134: #{crn_dual_forward.2} parent=79 // pred_check_branch
          %998 = sbr.rel (%p996) target = $region136
        $region135: #{crn_dual_forward.2} parent=79 // pred_region
          %v999 = vld [vmem:[%s986] sm:$0xff]
          %v1000 = vld [vmem:[%s986 + $0x8] sm:$0xff]
          %1001 = vst [vmem:[#allocation2] sm:$0xff] %v999
          %1002 = vst [vmem:[#allocation2 + $0x8] sm:$0xff] %v1000
        $region136: #{crn_dual_forward.2} parent=79 // pred_fallthru
          _
        %p1003 = scmp.lt.s32.totalorder %s52, %s994
        // Predicated region
        $region137: #{crn_dual_forward.2} parent=79 // pred_check
          %p1004 = pneg %p1003
        $region138: #{crn_dual_forward.2} parent=79 // pred_check_branch
          %1006 = sbr.rel (%p1004) target = $region140
        $region139: #{crn_dual_forward.2} parent=79 // pred_region
          %v1007 = vld [vmem:[#allocation2] sm:$0xff]
          %v1008 = vld [vmem:[#allocation2 + $0x8] sm:$0xff]
          %v1009 = vpack.c.bf16 %v1008, %v1007
          %v1010 = vld [vmem:[%s784] sm:$0xff]
          %v1011 = vld [vmem:[%s784 + $0x8] sm:$0xf]
          %v1012 = vld [vmem:[%s784 + $0xc] sm:$0xff]
          %v1013 = vld [vmem:[%s784 + $0x14] sm:$0xf]
          %v1014 = vld [vmem:[%s784 + $0x18] sm:$0xff]
          %v1015 = vld [vmem:[%s784 + $0x20] sm:$0xf]
          %v1016 = vld [vmem:[%s784 + $0x24] sm:$0xff]
          %v1017 = vld [vmem:[%s784 + $0x2c] sm:$0xf]
          %v1018 = vld [vmem:[%s784 + $0x30] sm:$0xff]
          %v1019 = vld [vmem:[%s784 + $0x38] sm:$0xf]
          %v1020 = vld [vmem:[%s784 + $0x3c] sm:$0xff]
          %v1021 = vld [vmem:[%s784 + $0x44] sm:$0xf]
          %v1022 = vld [vmem:[%s784 + $0x48] sm:$0xff]
          %v1023 = vld [vmem:[%s784 + $0x50] sm:$0xf]
          %v1024 = vld [vmem:[%s784 + $0x54] sm:$0xff]
          %v1025 = vld [vmem:[%s784 + $0x5c] sm:$0xf]
          %v1026 = vld [vmem:[%s784 + $0x60] sm:$0xff]
          %v1027 = vld [vmem:[%s784 + $0x68] sm:$0xf]
          %v1028 = vld [vmem:[%s784 + $0x6c] sm:$0xff]
          %v1029 = vld [vmem:[%s784 + $0x74] sm:$0xf]
          %v1030 = vld [vmem:[%s784 + $0x78] sm:$0xff]
          %v1031 = vld [vmem:[%s784 + $0x80] sm:$0xf]
          %v1032 = vld [vmem:[%s784 + $0x84] sm:$0xff]
          %v1033 = vld [vmem:[%s784 + $0x8c] sm:$0xf]
          %v1034 = vld [vmem:[%s784 + $0x90] sm:$0xff]
          %v1035 = vld [vmem:[%s784 + $0x98] sm:$0xf]
          %v1036 = vld [vmem:[%s784 + $0x9c] sm:$0xff]
          %v1037 = vld [vmem:[%s784 + $0xa4] sm:$0xf]
          %v1038 = vld [vmem:[%s784 + $0xa8] sm:$0xff]
          %v1039 = vld [vmem:[%s784 + $0xb0] sm:$0xf]
          %v1040 = vld [vmem:[%s784 + $0xb4] sm:$0xff]
          %v1041 = vld [vmem:[%s784 + $0xbc] sm:$0xf]
          %v1042 = vld [vmem:[%s793] sm:$0x7]
          %v1044 = vlaneseq
          %v1045 = vshrl.u32 %v1044, 7
          %v1046 = vsub.s32 0, %v1045
          %v1047 = vrot.slane %v1042, %v1046
          %v1048 = vlaneseq
          %v1049 = vshrl.u32 %v1048, 7
          %v1050 = vsub.s32 1, %v1049
          %v1051 = vrot.slane %v1042, %v1050
          %v1052 = vlaneseq
          %v1053 = vshrl.u32 %v1052, 7
          %v1054 = vsub.s32 2, %v1053
          %v1055 = vrot.slane %v1042, %v1054
          %v1091 = vunpack.c.l.b16 %v1010
          %v1092 = vunpack.c.h.b16 %v1010
          %v1093 = vunpack.c.l.b16 %v1011
          %v1094 = vunpack.c.l.b16 %v1012
          %v1095 = vunpack.c.h.b16 %v1012
          %v1096 = vunpack.c.l.b16 %v1013
          %v1097 = vunpack.c.l.b16 %v1014
          %v1098 = vunpack.c.h.b16 %v1014
          %v1099 = vunpack.c.l.b16 %v1015
          %v1100 = vunpack.c.l.b16 %v1016
          %v1101 = vunpack.c.h.b16 %v1016
          %v1102 = vunpack.c.l.b16 %v1017
          %v1103 = vunpack.c.l.b16 %v1018
          %v1104 = vunpack.c.h.b16 %v1018
          %v1105 = vunpack.c.l.b16 %v1019
          %v1106 = vunpack.c.l.b16 %v1020
          %v1107 = vunpack.c.h.b16 %v1020
          %v1108 = vunpack.c.l.b16 %v1021
          %v1109 = vunpack.c.l.b16 %v1022
          %v1110 = vunpack.c.h.b16 %v1022
          %v1111 = vunpack.c.l.b16 %v1023
          %v1112 = vunpack.c.l.b16 %v1024
          %v1113 = vunpack.c.h.b16 %v1024
          %v1114 = vunpack.c.l.b16 %v1025
          %v1115 = vunpack.c.l.b16 %v1026
          %v1116 = vunpack.c.h.b16 %v1026
          %v1117 = vunpack.c.l.b16 %v1027
          %v1118 = vunpack.c.l.b16 %v1028
          %v1119 = vunpack.c.h.b16 %v1028
          %v1120 = vunpack.c.l.b16 %v1029
          %v1121 = vunpack.c.l.b16 %v1030
          %v1122 = vunpack.c.h.b16 %v1030
          %v1123 = vunpack.c.l.b16 %v1031
          %v1124 = vunpack.c.l.b16 %v1032
          %v1125 = vunpack.c.h.b16 %v1032
          %v1126 = vunpack.c.l.b16 %v1033
          %v1127 = vunpack.c.l.b16 %v1034
          %v1128 = vunpack.c.h.b16 %v1034
          %v1129 = vunpack.c.l.b16 %v1035
          %v1130 = vunpack.c.l.b16 %v1036
          %v1131 = vunpack.c.h.b16 %v1036
          %v1132 = vunpack.c.l.b16 %v1037
          %v1133 = vunpack.c.l.b16 %v1038
          %v1134 = vunpack.c.h.b16 %v1038
          %v1135 = vunpack.c.l.b16 %v1039
          %v1136 = vunpack.c.l.b16 %v1040
          %v1137 = vunpack.c.h.b16 %v1040
          %v1138 = vunpack.c.l.b16 %v1041
          %v1139 = vpack.c.b16 %v1094, %v1091
          %v1140 = vpack.c.b16 %v1095, %v1092
          %v1141 = vpack.c.b16 %v1096, %v1093
          %v1142 = vpack.c.b16 %v1100, %v1097
          %v1143 = vpack.c.b16 %v1101, %v1098
          %v1144 = vpack.c.b16 %v1102, %v1099
          %v1145 = vpack.c.b16 %v1106, %v1103
          %v1146 = vpack.c.b16 %v1107, %v1104
          %v1147 = vpack.c.b16 %v1108, %v1105
          %v1148 = vpack.c.b16 %v1112, %v1109
          %v1149 = vpack.c.b16 %v1113, %v1110
          %v1150 = vpack.c.b16 %v1114, %v1111
          %v1151 = vpack.c.b16 %v1118, %v1115
          %v1152 = vpack.c.b16 %v1119, %v1116
          %v1153 = vpack.c.b16 %v1120, %v1117
          %v1154 = vpack.c.b16 %v1124, %v1121
          %v1155 = vpack.c.b16 %v1125, %v1122
          %v1156 = vpack.c.b16 %v1126, %v1123
          %v1157 = vpack.c.b16 %v1130, %v1127
          %v1158 = vpack.c.b16 %v1131, %v1128
          %v1159 = vpack.c.b16 %v1132, %v1129
          %v1160 = vpack.c.b16 %v1136, %v1133
          %v1161 = vpack.c.b16 %v1137, %v1134
          %v1162 = vpack.c.b16 %v1138, %v1135
          %1187 = vmatprep.subr.bf16.mxu0 %v1140
          %1188 = vmatpush1.bf16.msra.mxu0 %v1139
          %1189 = vmatprep.subr.bf16.mxu0 %v1143
          %1190 = vmatpush1.bf16.msra.mxu0 %v1142
          %1191 = vmatprep.subr.bf16.mxu0 %v1146
          %1192 = vmatpush1.bf16.msra.mxu0 %v1145
          %1193 = vmatprep.subr.bf16.mxu0 %v1149
          %1194 = vmatpush1.bf16.msra.mxu0 %v1148
          %1195 = vmatprep.subr.bf16.mxu0 %v1152
          %1196 = vmatpush1.bf16.msra.mxu0 %v1151
          %1197 = vmatprep.subr.bf16.mxu0 %v1155
          %1198 = vmatpush1.bf16.msra.mxu0 %v1154
          %1199 = vmatprep.subr.bf16.mxu0 %v1158
          %1200 = vmatpush1.bf16.msra.mxu0 %v1157
          %1201 = vmatprep.subr.bf16.mxu0 %v1161
          %1202 = vmatpush1.bf16.msra.mxu0 %v1160
          %1203 = vmatprep.subr.bf16.mxu0 0
          %1204 = vmatpush1.bf16.msra.mxu0 0
          %1205 = vmatprep.subr.bf16.mxu0 0
          %1206 = vmatpush1.bf16.msra.mxu0 0
          %1207 = vmatprep.subr.bf16.mxu0 0
          %1208 = vmatpush1.bf16.msra.mxu0 0
          %1209 = vmatprep.subr.bf16.mxu0 0
          %1210 = vmatpush1.bf16.msra.mxu0 0
          %1211 = vmatprep.subr.bf16.mxu0 0
          %1212 = vmatpush1.bf16.msra.mxu0 0
          %1213 = vmatprep.subr.bf16.mxu0 0
          %1214 = vmatpush1.bf16.msra.mxu0 0
          %1215 = vmatprep.subr.bf16.mxu0 0
          %1216 = vmatpush1.bf16.msra.mxu0 0
          %1217 = vmatprep.subr.bf16.mxu0 0
          %1218 = vmatpush1.bf16.msra.mxu0 0
          %1219 = vmatprep.mubr.bf16.mxu0 0
          %1220 = vmatmul.mubr.bf16.gmra.mrb[0].mxu0 %v1009
          %v1221 = vpop.f32.mrb[0].mxu0
          %v1222 = vadd.f32 %v1047, %v1221
          %v1223 = vpop.f32.mrb[0].mxu0
          %v1224 = vadd.f32 %v1051, %v1223
          %v1225 = vpop.f32.mrb[0].mxu0
          %v1226 = vadd.f32 %v1047, %v1225
          %v1227 = vpop.f32.mrb[0].mxu0
          %v1228 = vadd.f32 %v1051, %v1227
          %1229 = vdwg.mxu0
          %1230 = vmatprep.subr.bf16.mxu0 0
          %1231 = vmatpush1.bf16.msra.mxu0 %v1141
          %1232 = vmatprep.subr.bf16.mxu0 0
          %1233 = vmatpush1.bf16.msra.mxu0 %v1144
          %1234 = vmatprep.subr.bf16.mxu0 0
          %1235 = vmatpush1.bf16.msra.mxu0 %v1147
          %1236 = vmatprep.subr.bf16.mxu0 0
          %1237 = vmatpush1.bf16.msra.mxu0 %v1150
          %1238 = vmatprep.subr.bf16.mxu0 0
          %1239 = vmatpush1.bf16.msra.mxu0 %v1153
          %1240 = vmatprep.subr.bf16.mxu0 0
          %1241 = vmatpush1.bf16.msra.mxu0 %v1156
          %1242 = vmatprep.subr.bf16.mxu0 0
          %1243 = vmatpush1.bf16.msra.mxu0 %v1159
          %1244 = vmatprep.subr.bf16.mxu0 0
          %1245 = vmatpush1.bf16.msra.mxu0 %v1162
          %1246 = vmatprep.subr.bf16.mxu0 0
          %1247 = vmatpush1.bf16.msra.mxu0 0
          %1248 = vmatprep.subr.bf16.mxu0 0
          %1249 = vmatpush1.bf16.msra.mxu0 0
          %1250 = vmatprep.subr.bf16.mxu0 0
          %1251 = vmatpush1.bf16.msra.mxu0 0
          %1252 = vmatprep.subr.bf16.mxu0 0
          %1253 = vmatpush1.bf16.msra.mxu0 0
          %1254 = vmatprep.subr.bf16.mxu0 0
          %1255 = vmatpush1.bf16.msra.mxu0 0
          %1256 = vmatprep.subr.bf16.mxu0 0
          %1257 = vmatpush1.bf16.msra.mxu0 0
          %1258 = vmatprep.subr.bf16.mxu0 0
          %1259 = vmatpush1.bf16.msra.mxu0 0
          %1260 = vmatprep.subr.bf16.mxu0 0
          %1261 = vmatpush1.bf16.msra.mxu0 0
          %1262 = vmatprep.mubr.bf16.mxu0 0
          %1263 = vmatmul.mubr.bf16.gmra.mrb[0].mxu0 %v1009
          %v1264 = vpop.f32.mrb[0].mxu0
          %v1265 = vadd.f32 %v1055, %v1264
          %v1266 = vpop.f32.mrb[0].mxu0
          %v1267 = vpop.f32.mrb[0].mxu0
          %v1268 = vadd.f32 %v1055, %v1267
          %v1269 = vpop.f32.mrb[0].mxu0
          %1270 = vdwg.mxu0
          %v1271 = vld [vmem:[%s802] sm:$0xf]
          %v1272 = vld [vmem:[%s802 + $0x4] sm:$0xf]
          %v1273 = vld [vmem:[%s802 + $0x8] sm:$0xf]
          %v1274 = vld [vmem:[%s802 + $0xc] sm:$0xf]
          %v1275 = vld [vmem:[%s802 + $0x10] sm:$0xf]
          %v1276 = vld [vmem:[%s802 + $0x14] sm:$0xf]
          %v1277 = vld [vmem:[%s802 + $0x18] sm:$0xf]
          %v1278 = vld [vmem:[%s802 + $0x1c] sm:$0xf]
          %v1279 = vld [vmem:[%s802 + $0x20] sm:$0xf]
          %v1280 = vld [vmem:[%s802 + $0x24] sm:$0xf]
          %v1281 = vld [vmem:[%s802 + $0x28] sm:$0xf]
          %v1282 = vld [vmem:[%s802 + $0x2c] sm:$0xf]
          %v1283 = vld [vmem:[%s802 + $0x30] sm:$0xf]
          %v1284 = vld [vmem:[%s802 + $0x34] sm:$0xf]
          %v1285 = vld [vmem:[%s802 + $0x38] sm:$0xf]
          %v1286 = vld [vmem:[%s802 + $0x3c] sm:$0xf]
          %v1287 = vpack.c.bf16 %v1222, %v1222
          %v1288 = vpack.c.bf16 %v1226, %v1226
          %v1289 = vpack.c.bf16 %v1224, %v1224
          %v1290 = vpack.c.bf16 %v1228, %v1228
          %v1291 = vpack.c.bf16 %v1265, %v1265
          %v1292 = vpack.c.bf16 %v1268, %v1268
          %vm1293 = vcmask 261120
          %v1295 = vsel %vm1293, %v1287, 0
          %v1298 = vsel %vm1293, %v1289, 0
          %1300 = vmatprep.subr.bf16.mxu0 0
          %1301 = vmatpush1.bf16.xpose.msra.mxu0 %v1298
          %1302 = vmatprep.subr.bf16.mxu0 0
          %1303 = vmatpush1.bf16.xpose.msra.mxu0 0
          %1304 = vmatprep.subr.bf16.mxu0 0
          %1305 = vmatpush1.bf16.xpose.msra.mxu0 0
          %1306 = vmatprep.subr.bf16.mxu0 0
          %1307 = vmatpush1.bf16.xpose.msra.mxu0 0
          %1308 = vmatprep.subr.bf16.mxu0 0
          %1309 = vmatpush1.bf16.xpose.msra.mxu0 0
          %1310 = vmatprep.subr.bf16.mxu0 0
          %1311 = vmatpush1.bf16.xpose.msra.mxu0 0
          %1312 = vmatprep.subr.bf16.mxu0 0
          %1313 = vmatpush1.bf16.xpose.msra.mxu0 0
          %1314 = vmatprep.subr.bf16.mxu0 0
          %1315 = vmatpush1.bf16.xpose.msra.mxu0 0
          %1316 = vmatprep.subr.bf16.mxu0 0
          %1317 = vmatpush1.bf16.xpose.msra.mxu0 0
          %1318 = vmatprep.subr.bf16.mxu0 0
          %1319 = vmatpush1.bf16.xpose.msra.mxu0 0
          %1320 = vmatprep.subr.bf16.mxu0 0
          %1321 = vmatpush1.bf16.xpose.msra.mxu0 0
          %1322 = vmatprep.subr.bf16.mxu0 0
          %1323 = vmatpush1.bf16.xpose.msra.mxu0 0
          %1324 = vmatprep.subr.bf16.mxu0 0
          %1325 = vmatpush1.bf16.xpose.msra.mxu0 0
          %1326 = vmatprep.subr.bf16.mxu0 0
          %1327 = vmatpush1.bf16.xpose.msra.mxu0 0
          %1328 = vmatprep.subr.bf16.mxu0 0
          %1329 = vmatpush1.bf16.xpose.msra.mxu0 0
          %1330 = vmatprep.subr.bf16.mxu0 0
          %1331 = vmatpush1.bf16.xpose.msra.mxu0 0
          %1332 = vmatprep.mubr.bf16.mxu0 0
          %1333 = vmatmul.mubr.bf16.gmra.mrb[0].mxu0 %v1295
          %v1334 = vpop.f32.mrb[0].mxu0
          %v1335 = vadd.f32 0.0, %v1334
          %v1336 = vpop.f32.mrb[0].mxu0
          %v1337 = vpop.f32.mrb[0].mxu0
          %v1338 = vpop.f32.mrb[0].mxu0
          %1339 = vdwg.mxu0
          %v1341 = vsel %vm1293, %v1288, 0
          %v1344 = vsel %vm1293, %v1290, 0
          %1346 = vmatprep.subr.bf16.mxu0 0
          %1347 = vmatpush1.bf16.xpose.msra.mxu0 %v1344
          %1348 = vmatprep.subr.bf16.mxu0 0
          %1349 = vmatpush1.bf16.xpose.msra.mxu0 0
          %1350 = vmatprep.subr.bf16.mxu0 0
          %1351 = vmatpush1.bf16.xpose.msra.mxu0 0
          %1352 = vmatprep.subr.bf16.mxu0 0
          %1353 = vmatpush1.bf16.xpose.msra.mxu0 0
          %1354 = vmatprep.subr.bf16.mxu0 0
          %1355 = vmatpush1.bf16.xpose.msra.mxu0 0
          %1356 = vmatprep.subr.bf16.mxu0 0
          %1357 = vmatpush1.bf16.xpose.msra.mxu0 0
          %1358 = vmatprep.subr.bf16.mxu0 0
          %1359 = vmatpush1.bf16.xpose.msra.mxu0 0
          %1360 = vmatprep.subr.bf16.mxu0 0
          %1361 = vmatpush1.bf16.xpose.msra.mxu0 0
          %1362 = vmatprep.subr.bf16.mxu0 0
          %1363 = vmatpush1.bf16.xpose.msra.mxu0 0
          %1364 = vmatprep.subr.bf16.mxu0 0
          %1365 = vmatpush1.bf16.xpose.msra.mxu0 0
          %1366 = vmatprep.subr.bf16.mxu0 0
          %1367 = vmatpush1.bf16.xpose.msra.mxu0 0
          %1368 = vmatprep.subr.bf16.mxu0 0
          %1369 = vmatpush1.bf16.xpose.msra.mxu0 0
          %1370 = vmatprep.subr.bf16.mxu0 0
          %1371 = vmatpush1.bf16.xpose.msra.mxu0 0
          %1372 = vmatprep.subr.bf16.mxu0 0
          %1373 = vmatpush1.bf16.xpose.msra.mxu0 0
          %1374 = vmatprep.subr.bf16.mxu0 0
          %1375 = vmatpush1.bf16.xpose.msra.mxu0 0
          %1376 = vmatprep.subr.bf16.mxu0 0
          %1377 = vmatpush1.bf16.xpose.msra.mxu0 0
          %1378 = vmatprep.mubr.bf16.mxu0 0
          %1379 = vmatmul.mubr.bf16.gmra.mrb[0].mxu0 %v1341
          %v1380 = vpop.f32.mrb[0].mxu0
          %v1381 = vadd.f32 0.0, %v1380
          %v1382 = vpop.f32.mrb[0].mxu0
          %v1383 = vpop.f32.mrb[0].mxu0
          %v1384 = vpop.f32.mrb[0].mxu0
          %1385 = vdwg.mxu0
          %v1386 = vmul.f32 %v1335, 0.17677669
          %v1387 = vmul.f32 %v1381, 0.17677669
          %vm1388 = vcmask 64512
          %v1389 = vsel %vm1388, %v1386, -inf
          %1390 = vmax.xlane.f32.xlu0 %v1389
          %v1391 = vpop.xlane.xlu0 %1390
          %v1392 = vsel %vm1388, %v1387, -inf
          %1393 = vmax.xlane.f32.xlu0 %v1392
          %v1394 = vpop.xlane.xlu0 %1393
          %v1395 = vsub.f32 %v1386, %v1391
          %v1396 = vsub.f32 %v1387, %v1394
          %v1397 = vmul.f32 %v1395, 1.442695
          %v1398 = vpow.pop %v1397
          %v1399 = vmul.f32 %v1396, 1.442695
          %v1400 = vpow.pop %v1399
          %v1401 = vsel %vm1388, %v1398, 0.0
          %1402 = vadd.xlane.f32.xlu0 %v1401
          %v1403 = vpop.xlane.xlu0 %1402
          %v1404 = vsel %vm1388, %v1400, 0.0
          %1405 = vadd.xlane.f32.xlu0 %v1404
          %v1406 = vpop.xlane.xlu0 %1405
          %v1407 = vrcp.pop %v1403
          %v1408 = vmul.f32 %v1398, %v1407
          %v1409 = vrcp.pop %v1406
          %v1410 = vmul.f32 %v1400, %v1409
          %v1411 = vpack.c.bf16 %v1408, %v1408
          %v1412 = vpack.c.bf16 %v1410, %v1410
          %v1414 = vsel %vm1388, %v1411, 0
          %vm1416 = vcmask 1043456
          %v1418 = vsel %vm1416, %v1291, 0
          %1420 = vmatprep.subr.bf16.mxu0 0
          %1421 = vmatpush1.bf16.msra.mxu0 %v1418
          %1422 = vmatprep.subr.bf16.mxu0 0
          %1423 = vmatpush1.bf16.msra.mxu0 0
          %1424 = vmatprep.subr.bf16.mxu0 0
          %1425 = vmatpush1.bf16.msra.mxu0 0
          %1426 = vmatprep.subr.bf16.mxu0 0
          %1427 = vmatpush1.bf16.msra.mxu0 0
          %1428 = vmatprep.subr.bf16.mxu0 0
          %1429 = vmatpush1.bf16.msra.mxu0 0
          %1430 = vmatprep.subr.bf16.mxu0 0
          %1431 = vmatpush1.bf16.msra.mxu0 0
          %1432 = vmatprep.subr.bf16.mxu0 0
          %1433 = vmatpush1.bf16.msra.mxu0 0
          %1434 = vmatprep.subr.bf16.mxu0 0
          %1435 = vmatpush1.bf16.msra.mxu0 0
          %1436 = vmatprep.subr.bf16.mxu0 0
          %1437 = vmatpush1.bf16.msra.mxu0 0
          %1438 = vmatprep.subr.bf16.mxu0 0
          %1439 = vmatpush1.bf16.msra.mxu0 0
          %1440 = vmatprep.subr.bf16.mxu0 0
          %1441 = vmatpush1.bf16.msra.mxu0 0
          %1442 = vmatprep.subr.bf16.mxu0 0
          %1443 = vmatpush1.bf16.msra.mxu0 0
          %1444 = vmatprep.subr.bf16.mxu0 0
          %1445 = vmatpush1.bf16.msra.mxu0 0
          %1446 = vmatprep.subr.bf16.mxu0 0
          %1447 = vmatpush1.bf16.msra.mxu0 0
          %1448 = vmatprep.subr.bf16.mxu0 0
          %1449 = vmatpush1.bf16.msra.mxu0 0
          %1450 = vmatprep.subr.bf16.mxu0 0
          %1451 = vmatpush1.bf16.msra.mxu0 0
          %1452 = vmatprep.mubr.bf16.mxu0 0
          %1453 = vmatmul.mubr.bf16.gmra.mrb[0].mxu0 %v1414
          %v1454 = vpop.f32.mrb[0].mxu0
          %v1455 = vadd.f32 0.0, %v1454
          %v1456 = vpop.f32.mrb[0].mxu0
          %v1457 = vpop.f32.mrb[0].mxu0
          %v1458 = vpop.f32.mrb[0].mxu0
          %1459 = vdwg.mxu0
          %v1461 = vsel %vm1388, %v1412, 0
          %v1464 = vsel %vm1416, %v1292, 0
          %1466 = vmatprep.subr.bf16.mxu0 0
          %1467 = vmatpush1.bf16.msra.mxu0 %v1464
          %1468 = vmatprep.subr.bf16.mxu0 0
          %1469 = vmatpush1.bf16.msra.mxu0 0
          %1470 = vmatprep.subr.bf16.mxu0 0
          %1471 = vmatpush1.bf16.msra.mxu0 0
          %1472 = vmatprep.subr.bf16.mxu0 0
          %1473 = vmatpush1.bf16.msra.mxu0 0
          %1474 = vmatprep.subr.bf16.mxu0 0
          %1475 = vmatpush1.bf16.msra.mxu0 0
          %1476 = vmatprep.subr.bf16.mxu0 0
          %1477 = vmatpush1.bf16.msra.mxu0 0
          %1478 = vmatprep.subr.bf16.mxu0 0
          %1479 = vmatpush1.bf16.msra.mxu0 0
          %1480 = vmatprep.subr.bf16.mxu0 0
          %1481 = vmatpush1.bf16.msra.mxu0 0
          %1482 = vmatprep.subr.bf16.mxu0 0
          %1483 = vmatpush1.bf16.msra.mxu0 0
          %1484 = vmatprep.subr.bf16.mxu0 0
          %1485 = vmatpush1.bf16.msra.mxu0 0
          %1486 = vmatprep.subr.bf16.mxu0 0
          %1487 = vmatpush1.bf16.msra.mxu0 0
          %1488 = vmatprep.subr.bf16.mxu0 0
          %1489 = vmatpush1.bf16.msra.mxu0 0
          %1490 = vmatprep.subr.bf16.mxu0 0
          %1491 = vmatpush1.bf16.msra.mxu0 0
          %1492 = vmatprep.subr.bf16.mxu0 0
          %1493 = vmatpush1.bf16.msra.mxu0 0
          %1494 = vmatprep.subr.bf16.mxu0 0
          %1495 = vmatpush1.bf16.msra.mxu0 0
          %1496 = vmatprep.subr.bf16.mxu0 0
          %1497 = vmatpush1.bf16.msra.mxu0 0
          %1498 = vmatprep.mubr.bf16.mxu0 0
          %1499 = vmatmul.mubr.bf16.gmra.mrb[0].mxu0 %v1461
          %v1500 = vpop.f32.mrb[0].mxu0
          %v1501 = vadd.f32 0.0, %v1500
          %v1502 = vpop.f32.mrb[0].mxu0
          %v1503 = vpop.f32.mrb[0].mxu0
          %v1504 = vpop.f32.mrb[0].mxu0
          %1505 = vdwg.mxu0
          %v1506 = vpack.c.bf16 %v1501, %v1455
          %1508 = vrot.lane.b32.xlu0 %v1287, 96
          %v1509 = vpop.permute.xlu0 %1508
          %1511 = vrot.lane.b32.xlu0 %v1289, 96
          %v1512 = vpop.permute.xlu0 %1511
          %v1514 = vsel %vm1293, %v1509, 0
          %v1517 = vsel %vm1293, %v1512, 0
          %1519 = vmatprep.subr.bf16.mxu0 0
          %1520 = vmatpush1.bf16.xpose.msra.mxu0 %v1517
          %1521 = vmatprep.subr.bf16.mxu0 0
          %1522 = vmatpush1.bf16.xpose.msra.mxu0 0
          %1523 = vmatprep.subr.bf16.mxu0 0
          %1524 = vmatpush1.bf16.xpose.msra.mxu0 0
          %1525 = vmatprep.subr.bf16.mxu0 0
          %1526 = vmatpush1.bf16.xpose.msra.mxu0 0
          %1527 = vmatprep.subr.bf16.mxu0 0
          %1528 = vmatpush1.bf16.xpose.msra.mxu0 0
          %1529 = vmatprep.subr.bf16.mxu0 0
          %1530 = vmatpush1.bf16.xpose.msra.mxu0 0
          %1531 = vmatprep.subr.bf16.mxu0 0
          %1532 = vmatpush1.bf16.xpose.msra.mxu0 0
          %1533 = vmatprep.subr.bf16.mxu0 0
          %1534 = vmatpush1.bf16.xpose.msra.mxu0 0
          %1535 = vmatprep.subr.bf16.mxu0 0
          %1536 = vmatpush1.bf16.xpose.msra.mxu0 0
          %1537 = vmatprep.subr.bf16.mxu0 0
          %1538 = vmatpush1.bf16.xpose.msra.mxu0 0
          %1539 = vmatprep.subr.bf16.mxu0 0
          %1540 = vmatpush1.bf16.xpose.msra.mxu0 0
          %1541 = vmatprep.subr.bf16.mxu0 0
          %1542 = vmatpush1.bf16.xpose.msra.mxu0 0
          %1543 = vmatprep.subr.bf16.mxu0 0
          %1544 = vmatpush1.bf16.xpose.msra.mxu0 0
          %1545 = vmatprep.subr.bf16.mxu0 0
          %1546 = vmatpush1.bf16.xpose.msra.mxu0 0
          %1547 = vmatprep.subr.bf16.mxu0 0
          %1548 = vmatpush1.bf16.xpose.msra.mxu0 0
          %1549 = vmatprep.subr.bf16.mxu0 0
          %1550 = vmatpush1.bf16.xpose.msra.mxu0 0
          %1551 = vmatprep.mubr.bf16.mxu0 0
          %1552 = vmatmul.mubr.bf16.gmra.mrb[0].mxu0 %v1514
          %v1553 = vpop.f32.mrb[0].mxu0
          %v1554 = vadd.f32 0.0, %v1553
          %v1555 = vpop.f32.mrb[0].mxu0
          %v1556 = vpop.f32.mrb[0].mxu0
          %v1557 = vpop.f32.mrb[0].mxu0
          %1558 = vdwg.mxu0
          %1560 = vrot.lane.b32.xlu0 %v1288, 96
          %v1561 = vpop.permute.xlu0 %1560
          %1563 = vrot.lane.b32.xlu0 %v1290, 96
          %v1564 = vpop.permute.xlu0 %1563
          %v1566 = vsel %vm1293, %v1561, 0
          %v1569 = vsel %vm1293, %v1564, 0
          %1571 = vmatprep.subr.bf16.mxu0 0
          %1572 = vmatpush1.bf16.xpose.msra.mxu0 %v1569
          %1573 = vmatprep.subr.bf16.mxu0 0
          %1574 = vmatpush1.bf16.xpose.msra.mxu0 0
          %1575 = vmatprep.subr.bf16.mxu0 0
          %1576 = vmatpush1.bf16.xpose.msra.mxu0 0
          %1577 = vmatprep.subr.bf16.mxu0 0
          %1578 = vmatpush1.bf16.xpose.msra.mxu0 0
          %1579 = vmatprep.subr.bf16.mxu0 0
          %1580 = vmatpush1.bf16.xpose.msra.mxu0 0
          %1581 = vmatprep.subr.bf16.mxu0 0
          %1582 = vmatpush1.bf16.xpose.msra.mxu0 0
          %1583 = vmatprep.subr.bf16.mxu0 0
          %1584 = vmatpush1.bf16.xpose.msra.mxu0 0
          %1585 = vmatprep.subr.bf16.mxu0 0
          %1586 = vmatpush1.bf16.xpose.msra.mxu0 0
          %1587 = vmatprep.subr.bf16.mxu0 0
          %1588 = vmatpush1.bf16.xpose.msra.mxu0 0
          %1589 = vmatprep.subr.bf16.mxu0 0
          %1590 = vmatpush1.bf16.xpose.msra.mxu0 0
          %1591 = vmatprep.subr.bf16.mxu0 0
          %1592 = vmatpush1.bf16.xpose.msra.mxu0 0
          %1593 = vmatprep.subr.bf16.mxu0 0
          %1594 = vmatpush1.bf16.xpose.msra.mxu0 0
          %1595 = vmatprep.subr.bf16.mxu0 0
          %1596 = vmatpush1.bf16.xpose.msra.mxu0 0
          %1597 = vmatprep.subr.bf16.mxu0 0
          %1598 = vmatpush1.bf16.xpose.msra.mxu0 0
          %1599 = vmatprep.subr.bf16.mxu0 0
          %1600 = vmatpush1.bf16.xpose.msra.mxu0 0
          %1601 = vmatprep.subr.bf16.mxu0 0
          %1602 = vmatpush1.bf16.xpose.msra.mxu0 0
          %1603 = vmatprep.mubr.bf16.mxu0 0
          %1604 = vmatmul.mubr.bf16.gmra.mrb[0].mxu0 %v1566
          %v1605 = vpop.f32.mrb[0].mxu0
          %v1606 = vadd.f32 0.0, %v1605
          %v1607 = vpop.f32.mrb[0].mxu0
          %v1608 = vpop.f32.mrb[0].mxu0
          %v1609 = vpop.f32.mrb[0].mxu0
          %1610 = vdwg.mxu0
          %v1611 = vmul.f32 %v1554, 0.17677669
          %v1612 = vmul.f32 %v1606, 0.17677669
          %v1613 = vsel %vm1388, %v1611, -inf
          %1614 = vmax.xlane.f32.xlu0 %v1613
          %v1615 = vpop.xlane.xlu0 %1614
          %v1616 = vsel %vm1388, %v1612, -inf
          %1617 = vmax.xlane.f32.xlu0 %v1616
          %v1618 = vpop.xlane.xlu0 %1617
          %v1619 = vsub.f32 %v1611, %v1615
          %v1620 = vsub.f32 %v1612, %v1618
          %v1621 = vmul.f32 %v1619, 1.442695
          %v1622 = vpow.pop %v1621
          %v1623 = vmul.f32 %v1620, 1.442695
          %v1624 = vpow.pop %v1623
          %v1625 = vsel %vm1388, %v1622, 0.0
          %1626 = vadd.xlane.f32.xlu0 %v1625
          %v1627 = vpop.xlane.xlu0 %1626
          %v1628 = vsel %vm1388, %v1624, 0.0
          %1629 = vadd.xlane.f32.xlu0 %v1628
          %v1630 = vpop.xlane.xlu0 %1629
          %v1631 = vrcp.pop %v1627
          %v1632 = vmul.f32 %v1622, %v1631
          %v1633 = vrcp.pop %v1630
          %v1634 = vmul.f32 %v1624, %v1633
          %v1635 = vpack.c.bf16 %v1632, %v1632
          %v1636 = vpack.c.bf16 %v1634, %v1634
          %1638 = vrot.lane.b32.xlu0 %v1291, 96
          %v1639 = vpop.permute.xlu0 %1638
          %v1641 = vsel %vm1388, %v1635, 0
          %v1644 = vsel %vm1416, %v1639, 0
          %1646 = vmatprep.subr.bf16.mxu0 0
          %1647 = vmatpush1.bf16.msra.mxu0 %v1644
          %1648 = vmatprep.subr.bf16.mxu0 0
          %1649 = vmatpush1.bf16.msra.mxu0 0
          %1650 = vmatprep.subr.bf16.mxu0 0
          %1651 = vmatpush1.bf16.msra.mxu0 0
          %1652 = vmatprep.subr.bf16.mxu0 0
          %1653 = vmatpush1.bf16.msra.mxu0 0
          %1654 = vmatprep.subr.bf16.mxu0 0
          %1655 = vmatpush1.bf16.msra.mxu0 0
          %1656 = vmatprep.subr.bf16.mxu0 0
          %1657 = vmatpush1.bf16.msra.mxu0 0
          %1658 = vmatprep.subr.bf16.mxu0 0
          %1659 = vmatpush1.bf16.msra.mxu0 0
          %1660 = vmatprep.subr.bf16.mxu0 0
          %1661 = vmatpush1.bf16.msra.mxu0 0
          %1662 = vmatprep.subr.bf16.mxu0 0
          %1663 = vmatpush1.bf16.msra.mxu0 0
          %1664 = vmatprep.subr.bf16.mxu0 0
          %1665 = vmatpush1.bf16.msra.mxu0 0
          %1666 = vmatprep.subr.bf16.mxu0 0
          %1667 = vmatpush1.bf16.msra.mxu0 0
          %1668 = vmatprep.subr.bf16.mxu0 0
          %1669 = vmatpush1.bf16.msra.mxu0 0
          %1670 = vmatprep.subr.bf16.mxu0 0
          %1671 = vmatpush1.bf16.msra.mxu0 0
          %1672 = vmatprep.subr.bf16.mxu0 0
          %1673 = vmatpush1.bf16.msra.mxu0 0
          %1674 = vmatprep.subr.bf16.mxu0 0
          %1675 = vmatpush1.bf16.msra.mxu0 0
          %1676 = vmatprep.subr.bf16.mxu0 0
          %1677 = vmatpush1.bf16.msra.mxu0 0
          %1678 = vmatprep.mubr.bf16.mxu0 0
          %1679 = vmatmul.mubr.bf16.gmra.mrb[0].mxu0 %v1641
          %v1680 = vpop.f32.mrb[0].mxu0
          %v1681 = vadd.f32 0.0, %v1680
          %v1682 = vpop.f32.mrb[0].mxu0
          %v1683 = vpop.f32.mrb[0].mxu0
          %v1684 = vpop.f32.mrb[0].mxu0
          %1685 = vdwg.mxu0
          %1687 = vrot.lane.b32.xlu0 %v1292, 96
          %v1688 = vpop.permute.xlu0 %1687
          %v1690 = vsel %vm1388, %v1636, 0
          %v1693 = vsel %vm1416, %v1688, 0
          %1695 = vmatprep.subr.bf16.mxu0 0
          %1696 = vmatpush1.bf16.msra.mxu0 %v1693
          %1697 = vmatprep.subr.bf16.mxu0 0
          %1698 = vmatpush1.bf16.msra.mxu0 0
          %1699 = vmatprep.subr.bf16.mxu0 0
          %1700 = vmatpush1.bf16.msra.mxu0 0
          %1701 = vmatprep.subr.bf16.mxu0 0
          %1702 = vmatpush1.bf16.msra.mxu0 0
          %1703 = vmatprep.subr.bf16.mxu0 0
          %1704 = vmatpush1.bf16.msra.mxu0 0
          %1705 = vmatprep.subr.bf16.mxu0 0
          %1706 = vmatpush1.bf16.msra.mxu0 0
          %1707 = vmatprep.subr.bf16.mxu0 0
          %1708 = vmatpush1.bf16.msra.mxu0 0
          %1709 = vmatprep.subr.bf16.mxu0 0
          %1710 = vmatpush1.bf16.msra.mxu0 0
          %1711 = vmatprep.subr.bf16.mxu0 0
          %1712 = vmatpush1.bf16.msra.mxu0 0
          %1713 = vmatprep.subr.bf16.mxu0 0
          %1714 = vmatpush1.bf16.msra.mxu0 0
          %1715 = vmatprep.subr.bf16.mxu0 0
          %1716 = vmatpush1.bf16.msra.mxu0 0
          %1717 = vmatprep.subr.bf16.mxu0 0
          %1718 = vmatpush1.bf16.msra.mxu0 0
          %1719 = vmatprep.subr.bf16.mxu0 0
          %1720 = vmatpush1.bf16.msra.mxu0 0
          %1721 = vmatprep.subr.bf16.mxu0 0
          %1722 = vmatpush1.bf16.msra.mxu0 0
          %1723 = vmatprep.subr.bf16.mxu0 0
          %1724 = vmatpush1.bf16.msra.mxu0 0
          %1725 = vmatprep.subr.bf16.mxu0 0
          %1726 = vmatpush1.bf16.msra.mxu0 0
          %1727 = vmatprep.mubr.bf16.mxu0 0
          %1728 = vmatmul.mubr.bf16.gmra.mrb[0].mxu0 %v1690
          %v1729 = vpop.f32.mrb[0].mxu0
          %v1730 = vadd.f32 0.0, %v1729
          %v1731 = vpop.f32.mrb[0].mxu0
          %v1732 = vpop.f32.mrb[0].mxu0
          %v1733 = vpop.f32.mrb[0].mxu0
          %1734 = vdwg.mxu0
          %v1735 = vpack.c.bf16 %v1730, %v1681
          %v1740 = vunpack.c.l.b16 %v1275
          %v1741 = vunpack.c.l.b16 %v1276
          %v1742 = vunpack.c.l.b16 %v1277
          %v1743 = vunpack.c.l.b16 %v1278
          %v1744 = vpack.c.b16 %v1741, %v1740
          %v1745 = vpack.c.b16 %v1743, %v1742
          %v1749 = vsel %vm1293, %v1735, 0
          %1751 = vmatprep.subr.bf16.mxu0 0
          %1752 = vmatpush1.bf16.msra.mxu0 %v1744
          %1753 = vmatprep.subr.bf16.mxu0 0
          %1754 = vmatpush1.bf16.msra.mxu0 %v1745
          %1755 = vmatprep.subr.bf16.mxu0 0
          %1756 = vmatpush1.bf16.msra.mxu0 0
          %1757 = vmatprep.subr.bf16.mxu0 0
          %1758 = vmatpush1.bf16.msra.mxu0 0
          %1759 = vmatprep.subr.bf16.mxu0 0
          %1760 = vmatpush1.bf16.msra.mxu0 0
          %1761 = vmatprep.subr.bf16.mxu0 0
          %1762 = vmatpush1.bf16.msra.mxu0 0
          %1763 = vmatprep.subr.bf16.mxu0 0
          %1764 = vmatpush1.bf16.msra.mxu0 0
          %1765 = vmatprep.subr.bf16.mxu0 0
          %1766 = vmatpush1.bf16.msra.mxu0 0
          %1767 = vmatprep.subr.bf16.mxu0 0
          %1768 = vmatpush1.bf16.msra.mxu0 0
          %1769 = vmatprep.subr.bf16.mxu0 0
          %1770 = vmatpush1.bf16.msra.mxu0 0
          %1771 = vmatprep.subr.bf16.mxu0 0
          %1772 = vmatpush1.bf16.msra.mxu0 0
          %1773 = vmatprep.subr.bf16.mxu0 0
          %1774 = vmatpush1.bf16.msra.mxu0 0
          %1775 = vmatprep.subr.bf16.mxu0 0
          %1776 = vmatpush1.bf16.msra.mxu0 0
          %1777 = vmatprep.subr.bf16.mxu0 0
          %1778 = vmatpush1.bf16.msra.mxu0 0
          %1779 = vmatprep.subr.bf16.mxu0 0
          %1780 = vmatpush1.bf16.msra.mxu0 0
          %1781 = vmatprep.subr.bf16.mxu0 0
          %1782 = vmatpush1.bf16.msra.mxu0 0
          %1783 = vmatprep.mubr.bf16.mxu0 0
          %1784 = vmatmul.mubr.bf16.gmra.mrb[0].mxu0 %v1749
          %v1785 = vpop.f32.mrb[0].mxu0
          %v1786 = vadd.f32 0.0, %v1785
          %v1787 = vpop.f32.mrb[0].mxu0
          %v1788 = vpop.f32.mrb[0].mxu0
          %v1789 = vadd.f32 0.0, %v1788
          %v1790 = vpop.f32.mrb[0].mxu0
          %1791 = vdwg.mxu0
          %v1796 = vunpack.c.l.b16 %v1271
          %v1797 = vunpack.c.l.b16 %v1272
          %v1798 = vunpack.c.l.b16 %v1273
          %v1799 = vunpack.c.l.b16 %v1274
          %v1800 = vpack.c.b16 %v1797, %v1796
          %v1801 = vpack.c.b16 %v1799, %v1798
          %v1805 = vsel %vm1293, %v1506, 0
          %1807 = vmatprep.subr.bf16.mxu0 0
          %1808 = vmatpush1.bf16.msra.mxu0 %v1800
          %1809 = vmatprep.subr.bf16.mxu0 0
          %1810 = vmatpush1.bf16.msra.mxu0 %v1801
          %1811 = vmatprep.subr.bf16.mxu0 0
          %1812 = vmatpush1.bf16.msra.mxu0 0
          %1813 = vmatprep.subr.bf16.mxu0 0
          %1814 = vmatpush1.bf16.msra.mxu0 0
          %1815 = vmatprep.subr.bf16.mxu0 0
          %1816 = vmatpush1.bf16.msra.mxu0 0
          %1817 = vmatprep.subr.bf16.mxu0 0
          %1818 = vmatpush1.bf16.msra.mxu0 0
          %1819 = vmatprep.subr.bf16.mxu0 0
          %1820 = vmatpush1.bf16.msra.mxu0 0
          %1821 = vmatprep.subr.bf16.mxu0 0
          %1822 = vmatpush1.bf16.msra.mxu0 0
          %1823 = vmatprep.subr.bf16.mxu0 0
          %1824 = vmatpush1.bf16.msra.mxu0 0
          %1825 = vmatprep.subr.bf16.mxu0 0
          %1826 = vmatpush1.bf16.msra.mxu0 0
          %1827 = vmatprep.subr.bf16.mxu0 0
          %1828 = vmatpush1.bf16.msra.mxu0 0
          %1829 = vmatprep.subr.bf16.mxu0 0
          %1830 = vmatpush1.bf16.msra.mxu0 0
          %1831 = vmatprep.subr.bf16.mxu0 0
          %1832 = vmatpush1.bf16.msra.mxu0 0
          %1833 = vmatprep.subr.bf16.mxu0 0
          %1834 = vmatpush1.bf16.msra.mxu0 0
          %1835 = vmatprep.subr.bf16.mxu0 0
          %1836 = vmatpush1.bf16.msra.mxu0 0
          %1837 = vmatprep.subr.bf16.mxu0 0
          %1838 = vmatpush1.bf16.msra.mxu0 0
          %1839 = vmatprep.mubr.bf16.mxu0 0
          %1840 = vmatmul.mubr.bf16.gmra.mrb[0].mxu0 %v1805
          %v1841 = vpop.f32.mrb[0].mxu0
          %v1842 = vadd.f32 %v1786, %v1841
          %v1843 = vpop.f32.mrb[0].mxu0
          %v1844 = vpop.f32.mrb[0].mxu0
          %v1845 = vadd.f32 %v1789, %v1844
          %v1846 = vpop.f32.mrb[0].mxu0
          %1847 = vdwg.mxu0
          %1848 = vrot.lane.b32.xlu0 %v1287, 64
          %v1849 = vpop.permute.xlu0 %1848
          %1850 = vrot.lane.b32.xlu0 %v1289, 64
          %v1851 = vpop.permute.xlu0 %1850
          %v1853 = vsel %vm1293, %v1849, 0
          %v1856 = vsel %vm1293, %v1851, 0
          %1858 = vmatprep.subr.bf16.mxu0 0
          %1859 = vmatpush1.bf16.xpose.msra.mxu0 %v1856
          %1860 = vmatprep.subr.bf16.mxu0 0
          %1861 = vmatpush1.bf16.xpose.msra.mxu0 0
          %1862 = vmatprep.subr.bf16.mxu0 0
          %1863 = vmatpush1.bf16.xpose.msra.mxu0 0
          %1864 = vmatprep.subr.bf16.mxu0 0
          %1865 = vmatpush1.bf16.xpose.msra.mxu0 0
          %1866 = vmatprep.subr.bf16.mxu0 0
          %1867 = vmatpush1.bf16.xpose.msra.mxu0 0
          %1868 = vmatprep.subr.bf16.mxu0 0
          %1869 = vmatpush1.bf16.xpose.msra.mxu0 0
          %1870 = vmatprep.subr.bf16.mxu0 0
          %1871 = vmatpush1.bf16.xpose.msra.mxu0 0
          %1872 = vmatprep.subr.bf16.mxu0 0
          %1873 = vmatpush1.bf16.xpose.msra.mxu0 0
          %1874 = vmatprep.subr.bf16.mxu0 0
          %1875 = vmatpush1.bf16.xpose.msra.mxu0 0
          %1876 = vmatprep.subr.bf16.mxu0 0
          %1877 = vmatpush1.bf16.xpose.msra.mxu0 0
          %1878 = vmatprep.subr.bf16.mxu0 0
          %1879 = vmatpush1.bf16.xpose.msra.mxu0 0
          %1880 = vmatprep.subr.bf16.mxu0 0
          %1881 = vmatpush1.bf16.xpose.msra.mxu0 0
          %1882 = vmatprep.subr.bf16.mxu0 0
          %1883 = vmatpush1.bf16.xpose.msra.mxu0 0
          %1884 = vmatprep.subr.bf16.mxu0 0
          %1885 = vmatpush1.bf16.xpose.msra.mxu0 0
          %1886 = vmatprep.subr.bf16.mxu0 0
          %1887 = vmatpush1.bf16.xpose.msra.mxu0 0
          %1888 = vmatprep.subr.bf16.mxu0 0
          %1889 = vmatpush1.bf16.xpose.msra.mxu0 0
          %1890 = vmatprep.mubr.bf16.mxu0 0
          %1891 = vmatmul.mubr.bf16.gmra.mrb[0].mxu0 %v1853
          %v1892 = vpop.f32.mrb[0].mxu0
          %v1893 = vadd.f32 0.0, %v1892
          %v1894 = vpop.f32.mrb[0].mxu0
          %v1895 = vpop.f32.mrb[0].mxu0
          %v1896 = vpop.f32.mrb[0].mxu0
          %1897 = vdwg.mxu0
          %1898 = vrot.lane.b32.xlu0 %v1288, 64
          %v1899 = vpop.permute.xlu0 %1898
          %1900 = vrot.lane.b32.xlu0 %v1290, 64
          %v1901 = vpop.permute.xlu0 %1900
          %v1903 = vsel %vm1293, %v1899, 0
          %v1906 = vsel %vm1293, %v1901, 0
          %1908 = vmatprep.subr.bf16.mxu0 0
          %1909 = vmatpush1.bf16.xpose.msra.mxu0 %v1906
          %1910 = vmatprep.subr.bf16.mxu0 0
          %1911 = vmatpush1.bf16.xpose.msra.mxu0 0
          %1912 = vmatprep.subr.bf16.mxu0 0
          %1913 = vmatpush1.bf16.xpose.msra.mxu0 0
          %1914 = vmatprep.subr.bf16.mxu0 0
          %1915 = vmatpush1.bf16.xpose.msra.mxu0 0
          %1916 = vmatprep.subr.bf16.mxu0 0
          %1917 = vmatpush1.bf16.xpose.msra.mxu0 0
          %1918 = vmatprep.subr.bf16.mxu0 0
          %1919 = vmatpush1.bf16.xpose.msra.mxu0 0
          %1920 = vmatprep.subr.bf16.mxu0 0
          %1921 = vmatpush1.bf16.xpose.msra.mxu0 0
          %1922 = vmatprep.subr.bf16.mxu0 0
          %1923 = vmatpush1.bf16.xpose.msra.mxu0 0
          %1924 = vmatprep.subr.bf16.mxu0 0
          %1925 = vmatpush1.bf16.xpose.msra.mxu0 0
          %1926 = vmatprep.subr.bf16.mxu0 0
          %1927 = vmatpush1.bf16.xpose.msra.mxu0 0
          %1928 = vmatprep.subr.bf16.mxu0 0
          %1929 = vmatpush1.bf16.xpose.msra.mxu0 0
          %1930 = vmatprep.subr.bf16.mxu0 0
          %1931 = vmatpush1.bf16.xpose.msra.mxu0 0
          %1932 = vmatprep.subr.bf16.mxu0 0
          %1933 = vmatpush1.bf16.xpose.msra.mxu0 0
          %1934 = vmatprep.subr.bf16.mxu0 0
          %1935 = vmatpush1.bf16.xpose.msra.mxu0 0
          %1936 = vmatprep.subr.bf16.mxu0 0
          %1937 = vmatpush1.bf16.xpose.msra.mxu0 0
          %1938 = vmatprep.subr.bf16.mxu0 0
          %1939 = vmatpush1.bf16.xpose.msra.mxu0 0
          %1940 = vmatprep.mubr.bf16.mxu0 0
          %1941 = vmatmul.mubr.bf16.gmra.mrb[0].mxu0 %v1903
          %v1942 = vpop.f32.mrb[0].mxu0
          %v1943 = vadd.f32 0.0, %v1942
          %v1944 = vpop.f32.mrb[0].mxu0
          %v1945 = vpop.f32.mrb[0].mxu0
          %v1946 = vpop.f32.mrb[0].mxu0
          %1947 = vdwg.mxu0
          %v1948 = vmul.f32 %v1893, 0.17677669
          %v1949 = vmul.f32 %v1943, 0.17677669
          %v1950 = vsel %vm1388, %v1948, -inf
          %1951 = vmax.xlane.f32.xlu0 %v1950
          %v1952 = vpop.xlane.xlu0 %1951
          %v1953 = vsel %vm1388, %v1949, -inf
          %1954 = vmax.xlane.f32.xlu0 %v1953
          %v1955 = vpop.xlane.xlu0 %1954
          %v1956 = vsub.f32 %v1948, %v1952
          %v1957 = vsub.f32 %v1949, %v1955
          %v1958 = vmul.f32 %v1956, 1.442695
          %v1959 = vpow.pop %v1958
          %v1960 = vmul.f32 %v1957, 1.442695
          %v1961 = vpow.pop %v1960
          %v1962 = vsel %vm1388, %v1959, 0.0
          %1963 = vadd.xlane.f32.xlu0 %v1962
          %v1964 = vpop.xlane.xlu0 %1963
          %v1965 = vsel %vm1388, %v1961, 0.0
          %1966 = vadd.xlane.f32.xlu0 %v1965
          %v1967 = vpop.xlane.xlu0 %1966
          %v1968 = vrcp.pop %v1964
          %v1969 = vmul.f32 %v1959, %v1968
          %v1970 = vrcp.pop %v1967
          %v1971 = vmul.f32 %v1961, %v1970
          %v1972 = vpack.c.bf16 %v1969, %v1969
          %v1973 = vpack.c.bf16 %v1971, %v1971
          %1974 = vrot.lane.b32.xlu0 %v1291, 64
          %v1975 = vpop.permute.xlu0 %1974
          %v1977 = vsel %vm1388, %v1972, 0
          %v1980 = vsel %vm1416, %v1975, 0
          %1982 = vmatprep.subr.bf16.mxu0 0
          %1983 = vmatpush1.bf16.msra.mxu0 %v1980
          %1984 = vmatprep.subr.bf16.mxu0 0
          %1985 = vmatpush1.bf16.msra.mxu0 0
          %1986 = vmatprep.subr.bf16.mxu0 0
          %1987 = vmatpush1.bf16.msra.mxu0 0
          %1988 = vmatprep.subr.bf16.mxu0 0
          %1989 = vmatpush1.bf16.msra.mxu0 0
          %1990 = vmatprep.subr.bf16.mxu0 0
          %1991 = vmatpush1.bf16.msra.mxu0 0
          %1992 = vmatprep.subr.bf16.mxu0 0
          %1993 = vmatpush1.bf16.msra.mxu0 0
          %1994 = vmatprep.subr.bf16.mxu0 0
          %1995 = vmatpush1.bf16.msra.mxu0 0
          %1996 = vmatprep.subr.bf16.mxu0 0
          %1997 = vmatpush1.bf16.msra.mxu0 0
          %1998 = vmatprep.subr.bf16.mxu0 0
          %1999 = vmatpush1.bf16.msra.mxu0 0
          %2000 = vmatprep.subr.bf16.mxu0 0
          %2001 = vmatpush1.bf16.msra.mxu0 0
          %2002 = vmatprep.subr.bf16.mxu0 0
          %2003 = vmatpush1.bf16.msra.mxu0 0
          %2004 = vmatprep.subr.bf16.mxu0 0
          %2005 = vmatpush1.bf16.msra.mxu0 0
          %2006 = vmatprep.subr.bf16.mxu0 0
          %2007 = vmatpush1.bf16.msra.mxu0 0
          %2008 = vmatprep.subr.bf16.mxu0 0
          %2009 = vmatpush1.bf16.msra.mxu0 0
          %2010 = vmatprep.subr.bf16.mxu0 0
          %2011 = vmatpush1.bf16.msra.mxu0 0
          %2012 = vmatprep.subr.bf16.mxu0 0
          %2013 = vmatpush1.bf16.msra.mxu0 0
          %2014 = vmatprep.mubr.bf16.mxu0 0
          %2015 = vmatmul.mubr.bf16.gmra.mrb[0].mxu0 %v1977
          %v2016 = vpop.f32.mrb[0].mxu0
          %v2017 = vadd.f32 0.0, %v2016
          %v2018 = vpop.f32.mrb[0].mxu0
          %v2019 = vpop.f32.mrb[0].mxu0
          %v2020 = vpop.f32.mrb[0].mxu0
          %2021 = vdwg.mxu0
          %2022 = vrot.lane.b32.xlu0 %v1292, 64
          %v2023 = vpop.permute.xlu0 %2022
          %v2025 = vsel %vm1388, %v1973, 0
          %v2028 = vsel %vm1416, %v2023, 0
          %2030 = vmatprep.subr.bf16.mxu0 0
          %2031 = vmatpush1.bf16.msra.mxu0 %v2028
          %2032 = vmatprep.subr.bf16.mxu0 0
          %2033 = vmatpush1.bf16.msra.mxu0 0
          %2034 = vmatprep.subr.bf16.mxu0 0
          %2035 = vmatpush1.bf16.msra.mxu0 0
          %2036 = vmatprep.subr.bf16.mxu0 0
          %2037 = vmatpush1.bf16.msra.mxu0 0
          %2038 = vmatprep.subr.bf16.mxu0 0
          %2039 = vmatpush1.bf16.msra.mxu0 0
          %2040 = vmatprep.subr.bf16.mxu0 0
          %2041 = vmatpush1.bf16.msra.mxu0 0
          %2042 = vmatprep.subr.bf16.mxu0 0
          %2043 = vmatpush1.bf16.msra.mxu0 0
          %2044 = vmatprep.subr.bf16.mxu0 0
          %2045 = vmatpush1.bf16.msra.mxu0 0
          %2046 = vmatprep.subr.bf16.mxu0 0
          %2047 = vmatpush1.bf16.msra.mxu0 0
          %2048 = vmatprep.subr.bf16.mxu0 0
          %2049 = vmatpush1.bf16.msra.mxu0 0
          %2050 = vmatprep.subr.bf16.mxu0 0
          %2051 = vmatpush1.bf16.msra.mxu0 0
          %2052 = vmatprep.subr.bf16.mxu0 0
          %2053 = vmatpush1.bf16.msra.mxu0 0
          %2054 = vmatprep.subr.bf16.mxu0 0
          %2055 = vmatpush1.bf16.msra.mxu0 0
          %2056 = vmatprep.subr.bf16.mxu0 0
          %2057 = vmatpush1.bf16.msra.mxu0 0
          %2058 = vmatprep.subr.bf16.mxu0 0
          %2059 = vmatpush1.bf16.msra.mxu0 0
          %2060 = vmatprep.subr.bf16.mxu0 0
          %2061 = vmatpush1.bf16.msra.mxu0 0
          %2062 = vmatprep.mubr.bf16.mxu0 0
          %2063 = vmatmul.mubr.bf16.gmra.mrb[0].mxu0 %v2025
          %v2064 = vpop.f32.mrb[0].mxu0
          %v2065 = vadd.f32 0.0, %v2064
          %v2066 = vpop.f32.mrb[0].mxu0
          %v2067 = vpop.f32.mrb[0].mxu0
          %v2068 = vpop.f32.mrb[0].mxu0
          %2069 = vdwg.mxu0
          %v2070 = vpack.c.bf16 %v2065, %v2017
          %v2075 = vunpack.c.l.b16 %v1279
          %v2076 = vunpack.c.l.b16 %v1280
          %v2077 = vunpack.c.l.b16 %v1281
          %v2078 = vunpack.c.l.b16 %v1282
          %v2079 = vpack.c.b16 %v2076, %v2075
          %v2080 = vpack.c.b16 %v2078, %v2077
          %v2084 = vsel %vm1293, %v2070, 0
          %2086 = vmatprep.subr.bf16.mxu0 0
          %2087 = vmatpush1.bf16.msra.mxu0 %v2079
          %2088 = vmatprep.subr.bf16.mxu0 0
          %2089 = vmatpush1.bf16.msra.mxu0 %v2080
          %2090 = vmatprep.subr.bf16.mxu0 0
          %2091 = vmatpush1.bf16.msra.mxu0 0
          %2092 = vmatprep.subr.bf16.mxu0 0
          %2093 = vmatpush1.bf16.msra.mxu0 0
          %2094 = vmatprep.subr.bf16.mxu0 0
          %2095 = vmatpush1.bf16.msra.mxu0 0
          %2096 = vmatprep.subr.bf16.mxu0 0
          %2097 = vmatpush1.bf16.msra.mxu0 0
          %2098 = vmatprep.subr.bf16.mxu0 0
          %2099 = vmatpush1.bf16.msra.mxu0 0
          %2100 = vmatprep.subr.bf16.mxu0 0
          %2101 = vmatpush1.bf16.msra.mxu0 0
          %2102 = vmatprep.subr.bf16.mxu0 0
          %2103 = vmatpush1.bf16.msra.mxu0 0
          %2104 = vmatprep.subr.bf16.mxu0 0
          %2105 = vmatpush1.bf16.msra.mxu0 0
          %2106 = vmatprep.subr.bf16.mxu0 0
          %2107 = vmatpush1.bf16.msra.mxu0 0
          %2108 = vmatprep.subr.bf16.mxu0 0
          %2109 = vmatpush1.bf16.msra.mxu0 0
          %2110 = vmatprep.subr.bf16.mxu0 0
          %2111 = vmatpush1.bf16.msra.mxu0 0
          %2112 = vmatprep.subr.bf16.mxu0 0
          %2113 = vmatpush1.bf16.msra.mxu0 0
          %2114 = vmatprep.subr.bf16.mxu0 0
          %2115 = vmatpush1.bf16.msra.mxu0 0
          %2116 = vmatprep.subr.bf16.mxu0 0
          %2117 = vmatpush1.bf16.msra.mxu0 0
          %2118 = vmatprep.mubr.bf16.mxu0 0
          %2119 = vmatmul.mubr.bf16.gmra.mrb[0].mxu0 %v2084
          %v2120 = vpop.f32.mrb[0].mxu0
          %v2121 = vadd.f32 0.0, %v2120
          %v2122 = vpop.f32.mrb[0].mxu0
          %v2123 = vpop.f32.mrb[0].mxu0
          %v2124 = vadd.f32 0.0, %v2123
          %v2125 = vpop.f32.mrb[0].mxu0
          %2126 = vdwg.mxu0
          %v2127 = vadd.f32 %v1842, %v2121
          %v2128 = vadd.f32 %v1845, %v2124
          %2129 = vrot.lane.b32.xlu0 %v1287, 32
          %v2130 = vpop.permute.xlu0 %2129
          %2131 = vrot.lane.b32.xlu0 %v1289, 32
          %v2132 = vpop.permute.xlu0 %2131
          %v2134 = vsel %vm1293, %v2130, 0
          %v2137 = vsel %vm1293, %v2132, 0
          %2139 = vmatprep.subr.bf16.mxu0 0
          %2140 = vmatpush1.bf16.xpose.msra.mxu0 %v2137
          %2141 = vmatprep.subr.bf16.mxu0 0
          %2142 = vmatpush1.bf16.xpose.msra.mxu0 0
          %2143 = vmatprep.subr.bf16.mxu0 0
          %2144 = vmatpush1.bf16.xpose.msra.mxu0 0
          %2145 = vmatprep.subr.bf16.mxu0 0
          %2146 = vmatpush1.bf16.xpose.msra.mxu0 0
          %2147 = vmatprep.subr.bf16.mxu0 0
          %2148 = vmatpush1.bf16.xpose.msra.mxu0 0
          %2149 = vmatprep.subr.bf16.mxu0 0
          %2150 = vmatpush1.bf16.xpose.msra.mxu0 0
          %2151 = vmatprep.subr.bf16.mxu0 0
          %2152 = vmatpush1.bf16.xpose.msra.mxu0 0
          %2153 = vmatprep.subr.bf16.mxu0 0
          %2154 = vmatpush1.bf16.xpose.msra.mxu0 0
          %2155 = vmatprep.subr.bf16.mxu0 0
          %2156 = vmatpush1.bf16.xpose.msra.mxu0 0
          %2157 = vmatprep.subr.bf16.mxu0 0
          %2158 = vmatpush1.bf16.xpose.msra.mxu0 0
          %2159 = vmatprep.subr.bf16.mxu0 0
          %2160 = vmatpush1.bf16.xpose.msra.mxu0 0
          %2161 = vmatprep.subr.bf16.mxu0 0
          %2162 = vmatpush1.bf16.xpose.msra.mxu0 0
          %2163 = vmatprep.subr.bf16.mxu0 0
          %2164 = vmatpush1.bf16.xpose.msra.mxu0 0
          %2165 = vmatprep.subr.bf16.mxu0 0
          %2166 = vmatpush1.bf16.xpose.msra.mxu0 0
          %2167 = vmatprep.subr.bf16.mxu0 0
          %2168 = vmatpush1.bf16.xpose.msra.mxu0 0
          %2169 = vmatprep.subr.bf16.mxu0 0
          %2170 = vmatpush1.bf16.xpose.msra.mxu0 0
          %2171 = vmatprep.mubr.bf16.mxu0 0
          %2172 = vmatmul.mubr.bf16.gmra.mrb[0].mxu0 %v2134
          %v2173 = vpop.f32.mrb[0].mxu0
          %v2174 = vadd.f32 0.0, %v2173
          %v2175 = vpop.f32.mrb[0].mxu0
          %v2176 = vpop.f32.mrb[0].mxu0
          %v2177 = vpop.f32.mrb[0].mxu0
          %2178 = vdwg.mxu0
          %2179 = vrot.lane.b32.xlu0 %v1288, 32
          %v2180 = vpop.permute.xlu0 %2179
          %2181 = vrot.lane.b32.xlu0 %v1290, 32
          %v2182 = vpop.permute.xlu0 %2181
          %v2184 = vsel %vm1293, %v2180, 0
          %v2187 = vsel %vm1293, %v2182, 0
          %2189 = vmatprep.subr.bf16.mxu0 0
          %2190 = vmatpush1.bf16.xpose.msra.mxu0 %v2187
          %2191 = vmatprep.subr.bf16.mxu0 0
          %2192 = vmatpush1.bf16.xpose.msra.mxu0 0
          %2193 = vmatprep.subr.bf16.mxu0 0
          %2194 = vmatpush1.bf16.xpose.msra.mxu0 0
          %2195 = vmatprep.subr.bf16.mxu0 0
          %2196 = vmatpush1.bf16.xpose.msra.mxu0 0
          %2197 = vmatprep.subr.bf16.mxu0 0
          %2198 = vmatpush1.bf16.xpose.msra.mxu0 0
          %2199 = vmatprep.subr.bf16.mxu0 0
          %2200 = vmatpush1.bf16.xpose.msra.mxu0 0
          %2201 = vmatprep.subr.bf16.mxu0 0
          %2202 = vmatpush1.bf16.xpose.msra.mxu0 0
          %2203 = vmatprep.subr.bf16.mxu0 0
          %2204 = vmatpush1.bf16.xpose.msra.mxu0 0
          %2205 = vmatprep.subr.bf16.mxu0 0
          %2206 = vmatpush1.bf16.xpose.msra.mxu0 0
          %2207 = vmatprep.subr.bf16.mxu0 0
          %2208 = vmatpush1.bf16.xpose.msra.mxu0 0
          %2209 = vmatprep.subr.bf16.mxu0 0
          %2210 = vmatpush1.bf16.xpose.msra.mxu0 0
          %2211 = vmatprep.subr.bf16.mxu0 0
          %2212 = vmatpush1.bf16.xpose.msra.mxu0 0
          %2213 = vmatprep.subr.bf16.mxu0 0
          %2214 = vmatpush1.bf16.xpose.msra.mxu0 0
          %2215 = vmatprep.subr.bf16.mxu0 0
          %2216 = vmatpush1.bf16.xpose.msra.mxu0 0
          %2217 = vmatprep.subr.bf16.mxu0 0
          %2218 = vmatpush1.bf16.xpose.msra.mxu0 0
          %2219 = vmatprep.subr.bf16.mxu0 0
          %2220 = vmatpush1.bf16.xpose.msra.mxu0 0
          %2221 = vmatprep.mubr.bf16.mxu0 0
          %2222 = vmatmul.mubr.bf16.gmra.mrb[0].mxu0 %v2184
          %v2223 = vpop.f32.mrb[0].mxu0
          %v2224 = vadd.f32 0.0, %v2223
          %v2225 = vpop.f32.mrb[0].mxu0
          %v2226 = vpop.f32.mrb[0].mxu0
          %v2227 = vpop.f32.mrb[0].mxu0
          %2228 = vdwg.mxu0
          %v2229 = vmul.f32 %v2174, 0.17677669
          %v2230 = vmul.f32 %v2224, 0.17677669
          %v2231 = vsel %vm1388, %v2229, -inf
          %2232 = vmax.xlane.f32.xlu0 %v2231
          %v2233 = vpop.xlane.xlu0 %2232
          %v2234 = vsel %vm1388, %v2230, -inf
          %2235 = vmax.xlane.f32.xlu0 %v2234
          %v2236 = vpop.xlane.xlu0 %2235
          %v2237 = vsub.f32 %v2229, %v2233
          %v2238 = vsub.f32 %v2230, %v2236
          %v2239 = vmul.f32 %v2237, 1.442695
          %v2240 = vpow.pop %v2239
          %v2241 = vmul.f32 %v2238, 1.442695
          %v2242 = vpow.pop %v2241
          %v2243 = vsel %vm1388, %v2240, 0.0
          %2244 = vadd.xlane.f32.xlu0 %v2243
          %v2245 = vpop.xlane.xlu0 %2244
          %v2246 = vsel %vm1388, %v2242, 0.0
          %2247 = vadd.xlane.f32.xlu0 %v2246
          %v2248 = vpop.xlane.xlu0 %2247
          %v2249 = vrcp.pop %v2245
          %v2250 = vmul.f32 %v2240, %v2249
          %v2251 = vrcp.pop %v2248
          %v2252 = vmul.f32 %v2242, %v2251
          %v2253 = vpack.c.bf16 %v2250, %v2250
          %v2254 = vpack.c.bf16 %v2252, %v2252
          %2255 = vrot.lane.b32.xlu0 %v1291, 32
          %v2256 = vpop.permute.xlu0 %2255
          %v2258 = vsel %vm1388, %v2253, 0
          %v2261 = vsel %vm1416, %v2256, 0
          %2263 = vmatprep.subr.bf16.mxu0 0
          %2264 = vmatpush1.bf16.msra.mxu0 %v2261
          %2265 = vmatprep.subr.bf16.mxu0 0
          %2266 = vmatpush1.bf16.msra.mxu0 0
          %2267 = vmatprep.subr.bf16.mxu0 0
          %2268 = vmatpush1.bf16.msra.mxu0 0
          %2269 = vmatprep.subr.bf16.mxu0 0
          %2270 = vmatpush1.bf16.msra.mxu0 0
          %2271 = vmatprep.subr.bf16.mxu0 0
          %2272 = vmatpush1.bf16.msra.mxu0 0
          %2273 = vmatprep.subr.bf16.mxu0 0
          %2274 = vmatpush1.bf16.msra.mxu0 0
          %2275 = vmatprep.subr.bf16.mxu0 0
          %2276 = vmatpush1.bf16.msra.mxu0 0
          %2277 = vmatprep.subr.bf16.mxu0 0
          %2278 = vmatpush1.bf16.msra.mxu0 0
          %2279 = vmatprep.subr.bf16.mxu0 0
          %2280 = vmatpush1.bf16.msra.mxu0 0
          %2281 = vmatprep.subr.bf16.mxu0 0
          %2282 = vmatpush1.bf16.msra.mxu0 0
          %2283 = vmatprep.subr.bf16.mxu0 0
          %2284 = vmatpush1.bf16.msra.mxu0 0
          %2285 = vmatprep.subr.bf16.mxu0 0
          %2286 = vmatpush1.bf16.msra.mxu0 0
          %2287 = vmatprep.subr.bf16.mxu0 0
          %2288 = vmatpush1.bf16.msra.mxu0 0
          %2289 = vmatprep.subr.bf16.mxu0 0
          %2290 = vmatpush1.bf16.msra.mxu0 0
          %2291 = vmatprep.subr.bf16.mxu0 0
          %2292 = vmatpush1.bf16.msra.mxu0 0
          %2293 = vmatprep.subr.bf16.mxu0 0
          %2294 = vmatpush1.bf16.msra.mxu0 0
          %2295 = vmatprep.mubr.bf16.mxu0 0
          %2296 = vmatmul.mubr.bf16.gmra.mrb[0].mxu0 %v2258
          %v2297 = vpop.f32.mrb[0].mxu0
          %v2298 = vadd.f32 0.0, %v2297
          %v2299 = vpop.f32.mrb[0].mxu0
          %v2300 = vpop.f32.mrb[0].mxu0
          %v2301 = vpop.f32.mrb[0].mxu0
          %2302 = vdwg.mxu0
          %2303 = vrot.lane.b32.xlu0 %v1292, 32
          %v2304 = vpop.permute.xlu0 %2303
          %v2306 = vsel %vm1388, %v2254, 0
          %v2309 = vsel %vm1416, %v2304, 0
          %2311 = vmatprep.subr.bf16.mxu0 0
          %2312 = vmatpush1.bf16.msra.mxu0 %v2309
          %2313 = vmatprep.subr.bf16.mxu0 0
          %2314 = vmatpush1.bf16.msra.mxu0 0
          %2315 = vmatprep.subr.bf16.mxu0 0
          %2316 = vmatpush1.bf16.msra.mxu0 0
          %2317 = vmatprep.subr.bf16.mxu0 0
          %2318 = vmatpush1.bf16.msra.mxu0 0
          %2319 = vmatprep.subr.bf16.mxu0 0
          %2320 = vmatpush1.bf16.msra.mxu0 0
          %2321 = vmatprep.subr.bf16.mxu0 0
          %2322 = vmatpush1.bf16.msra.mxu0 0
          %2323 = vmatprep.subr.bf16.mxu0 0
          %2324 = vmatpush1.bf16.msra.mxu0 0
          %2325 = vmatprep.subr.bf16.mxu0 0
          %2326 = vmatpush1.bf16.msra.mxu0 0
          %2327 = vmatprep.subr.bf16.mxu0 0
          %2328 = vmatpush1.bf16.msra.mxu0 0
          %2329 = vmatprep.subr.bf16.mxu0 0
          %2330 = vmatpush1.bf16.msra.mxu0 0
          %2331 = vmatprep.subr.bf16.mxu0 0
          %2332 = vmatpush1.bf16.msra.mxu0 0
          %2333 = vmatprep.subr.bf16.mxu0 0
          %2334 = vmatpush1.bf16.msra.mxu0 0
          %2335 = vmatprep.subr.bf16.mxu0 0
          %2336 = vmatpush1.bf16.msra.mxu0 0
          %2337 = vmatprep.subr.bf16.mxu0 0
          %2338 = vmatpush1.bf16.msra.mxu0 0
          %2339 = vmatprep.subr.bf16.mxu0 0
          %2340 = vmatpush1.bf16.msra.mxu0 0
          %2341 = vmatprep.subr.bf16.mxu0 0
          %2342 = vmatpush1.bf16.msra.mxu0 0
          %2343 = vmatprep.mubr.bf16.mxu0 0
          %2344 = vmatmul.mubr.bf16.gmra.mrb[0].mxu0 %v2306
          %v2345 = vpop.f32.mrb[0].mxu0
          %v2346 = vadd.f32 0.0, %v2345
          %v2347 = vpop.f32.mrb[0].mxu0
          %v2348 = vpop.f32.mrb[0].mxu0
          %v2349 = vpop.f32.mrb[0].mxu0
          %2350 = vdwg.mxu0
          %v2351 = vpack.c.bf16 %v2346, %v2298
          %v2356 = vunpack.c.l.b16 %v1283
          %v2357 = vunpack.c.l.b16 %v1284
          %v2358 = vunpack.c.l.b16 %v1285
          %v2359 = vunpack.c.l.b16 %v1286
          %v2360 = vpack.c.b16 %v2357, %v2356
          %v2361 = vpack.c.b16 %v2359, %v2358
          %v2365 = vsel %vm1293, %v2351, 0
          %2367 = vmatprep.subr.bf16.mxu0 0
          %2368 = vmatpush1.bf16.msra.mxu0 %v2360
          %2369 = vmatprep.subr.bf16.mxu0 0
          %2370 = vmatpush1.bf16.msra.mxu0 %v2361
          %2371 = vmatprep.subr.bf16.mxu0 0
          %2372 = vmatpush1.bf16.msra.mxu0 0
          %2373 = vmatprep.subr.bf16.mxu0 0
          %2374 = vmatpush1.bf16.msra.mxu0 0
          %2375 = vmatprep.subr.bf16.mxu0 0
          %2376 = vmatpush1.bf16.msra.mxu0 0
          %2377 = vmatprep.subr.bf16.mxu0 0
          %2378 = vmatpush1.bf16.msra.mxu0 0
          %2379 = vmatprep.subr.bf16.mxu0 0
          %2380 = vmatpush1.bf16.msra.mxu0 0
          %2381 = vmatprep.subr.bf16.mxu0 0
          %2382 = vmatpush1.bf16.msra.mxu0 0
          %2383 = vmatprep.subr.bf16.mxu0 0
          %2384 = vmatpush1.bf16.msra.mxu0 0
          %2385 = vmatprep.subr.bf16.mxu0 0
          %2386 = vmatpush1.bf16.msra.mxu0 0
          %2387 = vmatprep.subr.bf16.mxu0 0
          %2388 = vmatpush1.bf16.msra.mxu0 0
          %2389 = vmatprep.subr.bf16.mxu0 0
          %2390 = vmatpush1.bf16.msra.mxu0 0
          %2391 = vmatprep.subr.bf16.mxu0 0
          %2392 = vmatpush1.bf16.msra.mxu0 0
          %2393 = vmatprep.subr.bf16.mxu0 0
          %2394 = vmatpush1.bf16.msra.mxu0 0
          %2395 = vmatprep.subr.bf16.mxu0 0
          %2396 = vmatpush1.bf16.msra.mxu0 0
          %2397 = vmatprep.subr.bf16.mxu0 0
          %2398 = vmatpush1.bf16.msra.mxu0 0
          %2399 = vmatprep.mubr.bf16.mxu0 0
          %2400 = vmatmul.mubr.bf16.gmra.mrb[0].mxu0 %v2365
          %v2401 = vpop.f32.mrb[0].mxu0
          %v2402 = vadd.f32 0.0, %v2401
          %v2403 = vpop.f32.mrb[0].mxu0
          %v2404 = vpop.f32.mrb[0].mxu0
          %v2405 = vadd.f32 0.0, %v2404
          %v2406 = vpop.f32.mrb[0].mxu0
          %2407 = vdwg.mxu0
          %v2408 = vadd.f32 %v2127, %v2402
          %v2409 = vadd.f32 %v2128, %v2405
          %v2410 = vld [vmem:[%s810] sm:$0x1]
          %v2412 = vlaneseq
          %v2413 = vshrl.u32 %v2412, 7
          %v2414 = vsub.s32 0, %v2413
          %v2415 = vrot.slane %v2410, %v2414
          %v2417 = vadd.f32 %v2408, %v2415
          %v2418 = vadd.f32 %v2409, %v2415
          %v2419 = vadd.f32 %v1007, %v2417
          %v2420 = vadd.f32 %v1008, %v2418
          %v2421 = vld [vmem:[%s818] sm:$0x1]
          %v2422 = vld [vmem:[%s826] sm:$0x1]
          %2423 = vadd.xlane.f32.xlu0 %v2419
          %v2424 = vpop.xlane.xlu0 %2423
          %2425 = vadd.xlane.f32.xlu0 %v2420
          %v2426 = vpop.xlane.xlu0 %2425
          %v2427 = vrcp.pop 128.0
          %v2428 = vmul.f32 %v2424, %v2427
          %v2429 = vmul.f32 %v2426, %v2427
          %v2430 = vsub.f32 %v2419, %v2428
          %v2431 = vsub.f32 %v2420, %v2429
          %v2432 = vmul.f32 %v2430, %v2430
          %v2433 = vmul.f32 %v2431, %v2431
          %2434 = vadd.xlane.f32.xlu0 %v2432
          %v2435 = vpop.xlane.xlu0 %2434
          %2436 = vadd.xlane.f32.xlu0 %v2433
          %v2437 = vpop.xlane.xlu0 %2436
          %v2438 = vmul.f32 %v2435, %v2427
          %v2439 = vmul.f32 %v2437, %v2427
          %v2440 = vadd.f32 %v2438, 1e-05
          %v2441 = vadd.f32 %v2439, 1e-05
          %v2442 = vrsqrt.pop %v2440
          %v2443 = vrsqrt.pop %v2441
          %v2444 = vmul.f32 %v2430, %v2442
          %v2445 = vmul.f32 %v2431, %v2443
          %v2447 = vlaneseq
          %v2448 = vshrl.u32 %v2447, 7
          %v2449 = vsub.s32 0, %v2448
          %v2450 = vrot.slane %v2421, %v2449
          %v2452 = vmul.f32 %v2444, %v2450
          %v2453 = vmul.f32 %v2445, %v2450
          %v2455 = vlaneseq
          %v2456 = vshrl.u32 %v2455, 7
          %v2457 = vsub.s32 0, %v2456
          %v2458 = vrot.slane %v2422, %v2457
          %v2460 = vadd.f32 %v2452, %v2458
          %v2461 = vadd.f32 %v2453, %v2458
          %v2462 = vpack.c.bf16 %v2461, %v2460
          %v2463 = vld [vmem:[%s835] sm:$0xff]
          %v2464 = vld [vmem:[%s835 + $0x8] sm:$0xff]
          %v2465 = vld [vmem:[%s835 + $0x10] sm:$0xff]
          %v2466 = vld [vmem:[%s835 + $0x18] sm:$0xff]
          %v2467 = vld [vmem:[%s835 + $0x20] sm:$0xff]
          %v2468 = vld [vmem:[%s835 + $0x28] sm:$0xff]
          %v2469 = vld [vmem:[%s835 + $0x30] sm:$0xff]
          %v2470 = vld [vmem:[%s835 + $0x38] sm:$0xff]
          %v2471 = vld [vmem:[%s835 + $0x40] sm:$0xff]
          %v2472 = vld [vmem:[%s835 + $0x48] sm:$0xff]
          %v2473 = vld [vmem:[%s835 + $0x50] sm:$0xff]
          %v2474 = vld [vmem:[%s835 + $0x58] sm:$0xff]
          %v2475 = vld [vmem:[%s835 + $0x60] sm:$0xff]
          %v2476 = vld [vmem:[%s835 + $0x68] sm:$0xff]
          %v2477 = vld [vmem:[%s835 + $0x70] sm:$0xff]
          %v2478 = vld [vmem:[%s835 + $0x78] sm:$0xff]
          %v2479 = vld [vmem:[%s835 + $0x80] sm:$0xff]
          %v2480 = vld [vmem:[%s835 + $0x88] sm:$0xff]
          %v2481 = vld [vmem:[%s835 + $0x90] sm:$0xff]
          %v2482 = vld [vmem:[%s835 + $0x98] sm:$0xff]
          %v2483 = vld [vmem:[%s835 + $0xa0] sm:$0xff]
          %v2484 = vld [vmem:[%s835 + $0xa8] sm:$0xff]
          %v2485 = vld [vmem:[%s835 + $0xb0] sm:$0xff]
          %v2486 = vld [vmem:[%s835 + $0xb8] sm:$0xff]
          %v2487 = vld [vmem:[%s835 + $0xc0] sm:$0xff]
          %v2488 = vld [vmem:[%s835 + $0xc8] sm:$0xff]
          %v2489 = vld [vmem:[%s835 + $0xd0] sm:$0xff]
          %v2490 = vld [vmem:[%s835 + $0xd8] sm:$0xff]
          %v2491 = vld [vmem:[%s835 + $0xe0] sm:$0xff]
          %v2492 = vld [vmem:[%s835 + $0xe8] sm:$0xff]
          %v2493 = vld [vmem:[%s835 + $0xf0] sm:$0xff]
          %v2494 = vld [vmem:[%s835 + $0xf8] sm:$0xff]
          %v2495 = vld [vmem:[%s844] sm:$0xf]
          %v2497 = vlaneseq
          %v2498 = vshrl.u32 %v2497, 7
          %v2499 = vsub.s32 0, %v2498
          %v2500 = vrot.slane %v2495, %v2499
          %v2501 = vlaneseq
          %v2502 = vshrl.u32 %v2501, 7
          %v2503 = vsub.s32 1, %v2502
          %v2504 = vrot.slane %v2495, %v2503
          %v2505 = vlaneseq
          %v2506 = vshrl.u32 %v2505, 7
          %v2507 = vsub.s32 2, %v2506
          %v2508 = vrot.slane %v2495, %v2507
          %v2509 = vlaneseq
          %v2510 = vshrl.u32 %v2509, 7
          %v2511 = vsub.s32 3, %v2510
          %v2512 = vrot.slane %v2495, %v2511
          %v2549 = vunpack.c.l.b16 %v2463
          %v2550 = vunpack.c.h.b16 %v2463
          %v2551 = vunpack.c.l.b16 %v2464
          %v2552 = vunpack.c.h.b16 %v2464
          %v2553 = vunpack.c.l.b16 %v2465
          %v2554 = vunpack.c.h.b16 %v2465
          %v2555 = vunpack.c.l.b16 %v2466
          %v2556 = vunpack.c.h.b16 %v2466
          %v2557 = vunpack.c.l.b16 %v2467
          %v2558 = vunpack.c.h.b16 %v2467
          %v2559 = vunpack.c.l.b16 %v2468
          %v2560 = vunpack.c.h.b16 %v2468
          %v2561 = vunpack.c.l.b16 %v2469
          %v2562 = vunpack.c.h.b16 %v2469
          %v2563 = vunpack.c.l.b16 %v2470
          %v2564 = vunpack.c.h.b16 %v2470
          %v2565 = vunpack.c.l.b16 %v2471
          %v2566 = vunpack.c.h.b16 %v2471
          %v2567 = vunpack.c.l.b16 %v2472
          %v2568 = vunpack.c.h.b16 %v2472
          %v2569 = vunpack.c.l.b16 %v2473
          %v2570 = vunpack.c.h.b16 %v2473
          %v2571 = vunpack.c.l.b16 %v2474
          %v2572 = vunpack.c.h.b16 %v2474
          %v2573 = vunpack.c.l.b16 %v2475
          %v2574 = vunpack.c.h.b16 %v2475
          %v2575 = vunpack.c.l.b16 %v2476
          %v2576 = vunpack.c.h.b16 %v2476
          %v2577 = vunpack.c.l.b16 %v2477
          %v2578 = vunpack.c.h.b16 %v2477
          %v2579 = vunpack.c.l.b16 %v2478
          %v2580 = vunpack.c.h.b16 %v2478
          %v2581 = vunpack.c.l.b16 %v2479
          %v2582 = vunpack.c.h.b16 %v2479
          %v2583 = vunpack.c.l.b16 %v2480
          %v2584 = vunpack.c.h.b16 %v2480
          %v2585 = vunpack.c.l.b16 %v2481
          %v2586 = vunpack.c.h.b16 %v2481
          %v2587 = vunpack.c.l.b16 %v2482
          %v2588 = vunpack.c.h.b16 %v2482
          %v2589 = vunpack.c.l.b16 %v2483
          %v2590 = vunpack.c.h.b16 %v2483
          %v2591 = vunpack.c.l.b16 %v2484
          %v2592 = vunpack.c.h.b16 %v2484
          %v2593 = vunpack.c.l.b16 %v2485
          %v2594 = vunpack.c.h.b16 %v2485
          %v2595 = vunpack.c.l.b16 %v2486
          %v2596 = vunpack.c.h.b16 %v2486
          %v2597 = vunpack.c.l.b16 %v2487
          %v2598 = vunpack.c.h.b16 %v2487
          %v2599 = vunpack.c.l.b16 %v2488
          %v2600 = vunpack.c.h.b16 %v2488
          %v2601 = vunpack.c.l.b16 %v2489
          %v2602 = vunpack.c.h.b16 %v2489
          %v2603 = vunpack.c.l.b16 %v2490
          %v2604 = vunpack.c.h.b16 %v2490
          %v2605 = vunpack.c.l.b16 %v2491
          %v2606 = vunpack.c.h.b16 %v2491
          %v2607 = vunpack.c.l.b16 %v2492
          %v2608 = vunpack.c.h.b16 %v2492
          %v2609 = vunpack.c.l.b16 %v2493
          %v2610 = vunpack.c.h.b16 %v2493
          %v2611 = vunpack.c.l.b16 %v2494
          %v2612 = vunpack.c.h.b16 %v2494
          %v2613 = vpack.c.b16 %v2553, %v2549
          %v2614 = vpack.c.b16 %v2554, %v2550
          %v2615 = vpack.c.b16 %v2555, %v2551
          %v2616 = vpack.c.b16 %v2556, %v2552
          %v2617 = vpack.c.b16 %v2561, %v2557
          %v2618 = vpack.c.b16 %v2562, %v2558
          %v2619 = vpack.c.b16 %v2563, %v2559
          %v2620 = vpack.c.b16 %v2564, %v2560
          %v2621 = vpack.c.b16 %v2569, %v2565
          %v2622 = vpack.c.b16 %v2570, %v2566
          %v2623 = vpack.c.b16 %v2571, %v2567
          %v2624 = vpack.c.b16 %v2572, %v2568
          %v2625 = vpack.c.b16 %v2577, %v2573
          %v2626 = vpack.c.b16 %v2578, %v2574
          %v2627 = vpack.c.b16 %v2579, %v2575
          %v2628 = vpack.c.b16 %v2580, %v2576
          %v2629 = vpack.c.b16 %v2585, %v2581
          %v2630 = vpack.c.b16 %v2586, %v2582
          %v2631 = vpack.c.b16 %v2587, %v2583
          %v2632 = vpack.c.b16 %v2588, %v2584
          %v2633 = vpack.c.b16 %v2593, %v2589
          %v2634 = vpack.c.b16 %v2594, %v2590
          %v2635 = vpack.c.b16 %v2595, %v2591
          %v2636 = vpack.c.b16 %v2596, %v2592
          %v2637 = vpack.c.b16 %v2601, %v2597
          %v2638 = vpack.c.b16 %v2602, %v2598
          %v2639 = vpack.c.b16 %v2603, %v2599
          %v2640 = vpack.c.b16 %v2604, %v2600
          %v2641 = vpack.c.b16 %v2609, %v2605
          %v2642 = vpack.c.b16 %v2610, %v2606
          %v2643 = vpack.c.b16 %v2611, %v2607
          %v2644 = vpack.c.b16 %v2612, %v2608
          %2677 = vmatprep.subr.bf16.mxu0 %v2614
          %2678 = vmatpush1.bf16.msra.mxu0 %v2613
          %2679 = vmatprep.subr.bf16.mxu0 %v2618
          %2680 = vmatpush1.bf16.msra.mxu0 %v2617
          %2681 = vmatprep.subr.bf16.mxu0 %v2622
          %2682 = vmatpush1.bf16.msra.mxu0 %v2621
          %2683 = vmatprep.subr.bf16.mxu0 %v2626
          %2684 = vmatpush1.bf16.msra.mxu0 %v2625
          %2685 = vmatprep.subr.bf16.mxu0 %v2630
          %2686 = vmatpush1.bf16.msra.mxu0 %v2629
          %2687 = vmatprep.subr.bf16.mxu0 %v2634
          %2688 = vmatpush1.bf16.msra.mxu0 %v2633
          %2689 = vmatprep.subr.bf16.mxu0 %v2638
          %2690 = vmatpush1.bf16.msra.mxu0 %v2637
          %2691 = vmatprep.subr.bf16.mxu0 %v2642
          %2692 = vmatpush1.bf16.msra.mxu0 %v2641
          %2693 = vmatprep.subr.bf16.mxu0 0
          %2694 = vmatpush1.bf16.msra.mxu0 0
          %2695 = vmatprep.subr.bf16.mxu0 0
          %2696 = vmatpush1.bf16.msra.mxu0 0
          %2697 = vmatprep.subr.bf16.mxu0 0
          %2698 = vmatpush1.bf16.msra.mxu0 0
          %2699 = vmatprep.subr.bf16.mxu0 0
          %2700 = vmatpush1.bf16.msra.mxu0 0
          %2701 = vmatprep.subr.bf16.mxu0 0
          %2702 = vmatpush1.bf16.msra.mxu0 0
          %2703 = vmatprep.subr.bf16.mxu0 0
          %2704 = vmatpush1.bf16.msra.mxu0 0
          %2705 = vmatprep.subr.bf16.mxu0 0
          %2706 = vmatpush1.bf16.msra.mxu0 0
          %2707 = vmatprep.subr.bf16.mxu0 0
          %2708 = vmatpush1.bf16.msra.mxu0 0
          %2709 = vmatprep.mubr.bf16.mxu0 0
          %2710 = vmatmul.mubr.bf16.gmra.mrb[0].mxu0 %v2462
          %v2711 = vpop.f32.mrb[0].mxu0
          %v2712 = vadd.f32 %v2500, %v2711
          %v2713 = vpop.f32.mrb[0].mxu0
          %v2714 = vadd.f32 %v2504, %v2713
          %v2715 = vpop.f32.mrb[0].mxu0
          %v2716 = vadd.f32 %v2500, %v2715
          %v2717 = vpop.f32.mrb[0].mxu0
          %v2718 = vadd.f32 %v2504, %v2717
          %2719 = vdwg.mxu0
          %2720 = vmatprep.subr.bf16.mxu0 %v2616
          %2721 = vmatpush1.bf16.msra.mxu0 %v2615
          %2722 = vmatprep.subr.bf16.mxu0 %v2620
          %2723 = vmatpush1.bf16.msra.mxu0 %v2619
          %2724 = vmatprep.subr.bf16.mxu0 %v2624
          %2725 = vmatpush1.bf16.msra.mxu0 %v2623
          %2726 = vmatprep.subr.bf16.mxu0 %v2628
          %2727 = vmatpush1.bf16.msra.mxu0 %v2627
          %2728 = vmatprep.subr.bf16.mxu0 %v2632
          %2729 = vmatpush1.bf16.msra.mxu0 %v2631
          %2730 = vmatprep.subr.bf16.mxu0 %v2636
          %2731 = vmatpush1.bf16.msra.mxu0 %v2635
          %2732 = vmatprep.subr.bf16.mxu0 %v2640
          %2733 = vmatpush1.bf16.msra.mxu0 %v2639
          %2734 = vmatprep.subr.bf16.mxu0 %v2644
          %2735 = vmatpush1.bf16.msra.mxu0 %v2643
          %2736 = vmatprep.subr.bf16.mxu0 0
          %2737 = vmatpush1.bf16.msra.mxu0 0
          %2738 = vmatprep.subr.bf16.mxu0 0
          %2739 = vmatpush1.bf16.msra.mxu0 0
          %2740 = vmatprep.subr.bf16.mxu0 0
          %2741 = vmatpush1.bf16.msra.mxu0 0
          %2742 = vmatprep.subr.bf16.mxu0 0
          %2743 = vmatpush1.bf16.msra.mxu0 0
          %2744 = vmatprep.subr.bf16.mxu0 0
          %2745 = vmatpush1.bf16.msra.mxu0 0
          %2746 = vmatprep.subr.bf16.mxu0 0
          %2747 = vmatpush1.bf16.msra.mxu0 0
          %2748 = vmatprep.subr.bf16.mxu0 0
          %2749 = vmatpush1.bf16.msra.mxu0 0
          %2750 = vmatprep.subr.bf16.mxu0 0
          %2751 = vmatpush1.bf16.msra.mxu0 0
          %2752 = vmatprep.mubr.bf16.mxu0 0
          %2753 = vmatmul.mubr.bf16.gmra.mrb[0].mxu0 %v2462
          %v2754 = vpop.f32.mrb[0].mxu0
          %v2755 = vadd.f32 %v2508, %v2754
          %v2756 = vpop.f32.mrb[0].mxu0
          %v2757 = vadd.f32 %v2512, %v2756
          %v2758 = vpop.f32.mrb[0].mxu0
          %v2759 = vadd.f32 %v2508, %v2758
          %v2760 = vpop.f32.mrb[0].mxu0
          %v2761 = vadd.f32 %v2512, %v2760
          %2762 = vdwg.mxu0
          %v2763 = vmax.f32 %v2712, 0.0
          %v2764 = vmax.f32 %v2714, 0.0
          %v2765 = vmax.f32 %v2755, 0.0
          %v2766 = vmax.f32 %v2757, 0.0
          %v2767 = vmax.f32 %v2716, 0.0
          %v2768 = vmax.f32 %v2718, 0.0
          %v2769 = vmax.f32 %v2759, 0.0
          %v2770 = vmax.f32 %v2761, 0.0
          %v2771 = vpack.c.bf16 %v2767, %v2763
          %v2772 = vpack.c.bf16 %v2768, %v2764
          %v2773 = vpack.c.bf16 %v2769, %v2765
          %v2774 = vpack.c.bf16 %v2770, %v2766
          %v2775 = vld [vmem:[%s853] sm:$0xf]
          %v2776 = vld [vmem:[%s853 + $0x4] sm:$0xf]
          %v2777 = vld [vmem:[%s853 + $0x8] sm:$0xf]
          %v2778 = vld [vmem:[%s853 + $0xc] sm:$0xf]
          %v2779 = vld [vmem:[%s853 + $0x10] sm:$0xf]
          %v2780 = vld [vmem:[%s853 + $0x14] sm:$0xf]
          %v2781 = vld [vmem:[%s853 + $0x18] sm:$0xf]
          %v2782 = vld [vmem:[%s853 + $0x1c] sm:$0xf]
          %v2783 = vld [vmem:[%s853 + $0x20] sm:$0xf]
          %v2784 = vld [vmem:[%s853 + $0x24] sm:$0xf]
          %v2785 = vld [vmem:[%s853 + $0x28] sm:$0xf]
          %v2786 = vld [vmem:[%s853 + $0x2c] sm:$0xf]
          %v2787 = vld [vmem:[%s853 + $0x30] sm:$0xf]
          %v2788 = vld [vmem:[%s853 + $0x34] sm:$0xf]
          %v2789 = vld [vmem:[%s853 + $0x38] sm:$0xf]
          %v2790 = vld [vmem:[%s853 + $0x3c] sm:$0xf]
          %v2791 = vld [vmem:[%s853 + $0x40] sm:$0xf]
          %v2792 = vld [vmem:[%s853 + $0x44] sm:$0xf]
          %v2793 = vld [vmem:[%s853 + $0x48] sm:$0xf]
          %v2794 = vld [vmem:[%s853 + $0x4c] sm:$0xf]
          %v2795 = vld [vmem:[%s853 + $0x50] sm:$0xf]
          %v2796 = vld [vmem:[%s853 + $0x54] sm:$0xf]
          %v2797 = vld [vmem:[%s853 + $0x58] sm:$0xf]
          %v2798 = vld [vmem:[%s853 + $0x5c] sm:$0xf]
          %v2799 = vld [vmem:[%s853 + $0x60] sm:$0xf]
          %v2800 = vld [vmem:[%s853 + $0x64] sm:$0xf]
          %v2801 = vld [vmem:[%s853 + $0x68] sm:$0xf]
          %v2802 = vld [vmem:[%s853 + $0x6c] sm:$0xf]
          %v2803 = vld [vmem:[%s853 + $0x70] sm:$0xf]
          %v2804 = vld [vmem:[%s853 + $0x74] sm:$0xf]
          %v2805 = vld [vmem:[%s853 + $0x78] sm:$0xf]
          %v2806 = vld [vmem:[%s853 + $0x7c] sm:$0xf]
          %v2807 = vld [vmem:[%s853 + $0x80] sm:$0xf]
          %v2808 = vld [vmem:[%s853 + $0x84] sm:$0xf]
          %v2809 = vld [vmem:[%s853 + $0x88] sm:$0xf]
          %v2810 = vld [vmem:[%s853 + $0x8c] sm:$0xf]
          %v2811 = vld [vmem:[%s853 + $0x90] sm:$0xf]
          %v2812 = vld [vmem:[%s853 + $0x94] sm:$0xf]
          %v2813 = vld [vmem:[%s853 + $0x98] sm:$0xf]
          %v2814 = vld [vmem:[%s853 + $0x9c] sm:$0xf]
          %v2815 = vld [vmem:[%s853 + $0xa0] sm:$0xf]
          %v2816 = vld [vmem:[%s853 + $0xa4] sm:$0xf]
          %v2817 = vld [vmem:[%s853 + $0xa8] sm:$0xf]
          %v2818 = vld [vmem:[%s853 + $0xac] sm:$0xf]
          %v2819 = vld [vmem:[%s853 + $0xb0] sm:$0xf]
          %v2820 = vld [vmem:[%s853 + $0xb4] sm:$0xf]
          %v2821 = vld [vmem:[%s853 + $0xb8] sm:$0xf]
          %v2822 = vld [vmem:[%s853 + $0xbc] sm:$0xf]
          %v2823 = vld [vmem:[%s853 + $0xc0] sm:$0xf]
          %v2824 = vld [vmem:[%s853 + $0xc4] sm:$0xf]
          %v2825 = vld [vmem:[%s853 + $0xc8] sm:$0xf]
          %v2826 = vld [vmem:[%s853 + $0xcc] sm:$0xf]
          %v2827 = vld [vmem:[%s853 + $0xd0] sm:$0xf]
          %v2828 = vld [vmem:[%s853 + $0xd4] sm:$0xf]
          %v2829 = vld [vmem:[%s853 + $0xd8] sm:$0xf]
          %v2830 = vld [vmem:[%s853 + $0xdc] sm:$0xf]
          %v2831 = vld [vmem:[%s853 + $0xe0] sm:$0xf]
          %v2832 = vld [vmem:[%s853 + $0xe4] sm:$0xf]
          %v2833 = vld [vmem:[%s853 + $0xe8] sm:$0xf]
          %v2834 = vld [vmem:[%s853 + $0xec] sm:$0xf]
          %v2835 = vld [vmem:[%s853 + $0xf0] sm:$0xf]
          %v2836 = vld [vmem:[%s853 + $0xf4] sm:$0xf]
          %v2837 = vld [vmem:[%s853 + $0xf8] sm:$0xf]
          %v2838 = vld [vmem:[%s853 + $0xfc] sm:$0xf]
          %v2839 = vld [vmem:[%s861] sm:$0x1]
          %v2841 = vlaneseq
          %v2842 = vshrl.u32 %v2841, 7
          %v2843 = vsub.s32 0, %v2842
          %v2844 = vrot.slane %v2839, %v2843
          %v2910 = vunpack.c.l.b16 %v2775
          %v2911 = vunpack.c.l.b16 %v2776
          %v2912 = vunpack.c.l.b16 %v2777
          %v2913 = vunpack.c.l.b16 %v2778
          %v2914 = vunpack.c.l.b16 %v2779
          %v2915 = vunpack.c.l.b16 %v2780
          %v2916 = vunpack.c.l.b16 %v2781
          %v2917 = vunpack.c.l.b16 %v2782
          %v2918 = vunpack.c.l.b16 %v2783
          %v2919 = vunpack.c.l.b16 %v2784
          %v2920 = vunpack.c.l.b16 %v2785
          %v2921 = vunpack.c.l.b16 %v2786
          %v2922 = vunpack.c.l.b16 %v2787
          %v2923 = vunpack.c.l.b16 %v2788
          %v2924 = vunpack.c.l.b16 %v2789
          %v2925 = vunpack.c.l.b16 %v2790
          %v2926 = vunpack.c.l.b16 %v2791
          %v2927 = vunpack.c.l.b16 %v2792
          %v2928 = vunpack.c.l.b16 %v2793
          %v2929 = vunpack.c.l.b16 %v2794
          %v2930 = vunpack.c.l.b16 %v2795
          %v2931 = vunpack.c.l.b16 %v2796
          %v2932 = vunpack.c.l.b16 %v2797
          %v2933 = vunpack.c.l.b16 %v2798
          %v2934 = vunpack.c.l.b16 %v2799
          %v2935 = vunpack.c.l.b16 %v2800
          %v2936 = vunpack.c.l.b16 %v2801
          %v2937 = vunpack.c.l.b16 %v2802
          %v2938 = vunpack.c.l.b16 %v2803
          %v2939 = vunpack.c.l.b16 %v2804
          %v2940 = vunpack.c.l.b16 %v2805
          %v2941 = vunpack.c.l.b16 %v2806
          %v2942 = vunpack.c.l.b16 %v2807
          %v2943 = vunpack.c.l.b16 %v2808
          %v2944 = vunpack.c.l.b16 %v2809
          %v2945 = vunpack.c.l.b16 %v2810
          %v2946 = vunpack.c.l.b16 %v2811
          %v2947 = vunpack.c.l.b16 %v2812
          %v2948 = vunpack.c.l.b16 %v2813
          %v2949 = vunpack.c.l.b16 %v2814
          %v2950 = vunpack.c.l.b16 %v2815
          %v2951 = vunpack.c.l.b16 %v2816
          %v2952 = vunpack.c.l.b16 %v2817
          %v2953 = vunpack.c.l.b16 %v2818
          %v2954 = vunpack.c.l.b16 %v2819
          %v2955 = vunpack.c.l.b16 %v2820
          %v2956 = vunpack.c.l.b16 %v2821
          %v2957 = vunpack.c.l.b16 %v2822
          %v2958 = vunpack.c.l.b16 %v2823
          %v2959 = vunpack.c.l.b16 %v2824
          %v2960 = vunpack.c.l.b16 %v2825
          %v2961 = vunpack.c.l.b16 %v2826
          %v2962 = vunpack.c.l.b16 %v2827
          %v2963 = vunpack.c.l.b16 %v2828
          %v2964 = vunpack.c.l.b16 %v2829
          %v2965 = vunpack.c.l.b16 %v2830
          %v2966 = vunpack.c.l.b16 %v2831
          %v2967 = vunpack.c.l.b16 %v2832
          %v2968 = vunpack.c.l.b16 %v2833
          %v2969 = vunpack.c.l.b16 %v2834
          %v2970 = vunpack.c.l.b16 %v2835
          %v2971 = vunpack.c.l.b16 %v2836
          %v2972 = vunpack.c.l.b16 %v2837
          %v2973 = vunpack.c.l.b16 %v2838
          %v2974 = vpack.c.b16 %v2911, %v2910
          %v2975 = vpack.c.b16 %v2913, %v2912
          %v2976 = vpack.c.b16 %v2915, %v2914
          %v2977 = vpack.c.b16 %v2917, %v2916
          %v2978 = vpack.c.b16 %v2919, %v2918
          %v2979 = vpack.c.b16 %v2921, %v2920
          %v2980 = vpack.c.b16 %v2923, %v2922
          %v2981 = vpack.c.b16 %v2925, %v2924
          %v2982 = vpack.c.b16 %v2927, %v2926
          %v2983 = vpack.c.b16 %v2929, %v2928
          %v2984 = vpack.c.b16 %v2931, %v2930
          %v2985 = vpack.c.b16 %v2933, %v2932
          %v2986 = vpack.c.b16 %v2935, %v2934
          %v2987 = vpack.c.b16 %v2937, %v2936
          %v2988 = vpack.c.b16 %v2939, %v2938
          %v2989 = vpack.c.b16 %v2941, %v2940
          %v2990 = vpack.c.b16 %v2943, %v2942
          %v2991 = vpack.c.b16 %v2945, %v2944
          %v2992 = vpack.c.b16 %v2947, %v2946
          %v2993 = vpack.c.b16 %v2949, %v2948
          %v2994 = vpack.c.b16 %v2951, %v2950
          %v2995 = vpack.c.b16 %v2953, %v2952
          %v2996 = vpack.c.b16 %v2955, %v2954
          %v2997 = vpack.c.b16 %v2957, %v2956
          %v2998 = vpack.c.b16 %v2959, %v2958
          %v2999 = vpack.c.b16 %v2961, %v2960
          %v3000 = vpack.c.b16 %v2963, %v2962
          %v3001 = vpack.c.b16 %v2965, %v2964
          %v3002 = vpack.c.b16 %v2967, %v2966
          %v3003 = vpack.c.b16 %v2969, %v2968
          %v3004 = vpack.c.b16 %v2971, %v2970
          %v3005 = vpack.c.b16 %v2973, %v2972
          %3038 = vmatprep.subr.bf16.mxu0 0
          %3039 = vmatpush1.bf16.msra.mxu0 %v2974
          %3040 = vmatprep.subr.bf16.mxu0 0
          %3041 = vmatpush1.bf16.msra.mxu0 %v2975
          %3042 = vmatprep.subr.bf16.mxu0 0
          %3043 = vmatpush1.bf16.msra.mxu0 %v2976
          %3044 = vmatprep.subr.bf16.mxu0 0
          %3045 = vmatpush1.bf16.msra.mxu0 %v2977
          %3046 = vmatprep.subr.bf16.mxu0 0
          %3047 = vmatpush1.bf16.msra.mxu0 %v2978
          %3048 = vmatprep.subr.bf16.mxu0 0
          %3049 = vmatpush1.bf16.msra.mxu0 %v2979
          %3050 = vmatprep.subr.bf16.mxu0 0
          %3051 = vmatpush1.bf16.msra.mxu0 %v2980
          %3052 = vmatprep.subr.bf16.mxu0 0
          %3053 = vmatpush1.bf16.msra.mxu0 %v2981
          %3054 = vmatprep.subr.bf16.mxu0 0
          %3055 = vmatpush1.bf16.msra.mxu0 %v2982
          %3056 = vmatprep.subr.bf16.mxu0 0
          %3057 = vmatpush1.bf16.msra.mxu0 %v2983
          %3058 = vmatprep.subr.bf16.mxu0 0
          %3059 = vmatpush1.bf16.msra.mxu0 %v2984
          %3060 = vmatprep.subr.bf16.mxu0 0
          %3061 = vmatpush1.bf16.msra.mxu0 %v2985
          %3062 = vmatprep.subr.bf16.mxu0 0
          %3063 = vmatpush1.bf16.msra.mxu0 %v2986
          %3064 = vmatprep.subr.bf16.mxu0 0
          %3065 = vmatpush1.bf16.msra.mxu0 %v2987
          %3066 = vmatprep.subr.bf16.mxu0 0
          %3067 = vmatpush1.bf16.msra.mxu0 %v2988
          %3068 = vmatprep.subr.bf16.mxu0 0
          %3069 = vmatpush1.bf16.msra.mxu0 %v2989
          %3070 = vmatprep.mubr.bf16.mxu0 %v2772
          %3071 = vmatmul.mubr.bf16.gmra.mrb[0].mxu0 %v2771
          %v3072 = vpop.f32.mrb[0].mxu0
          %v3073 = vadd.f32 %v2844, %v3072
          %v3074 = vpop.f32.mrb[0].mxu0
          %v3075 = vpop.f32.mrb[0].mxu0
          %v3076 = vadd.f32 %v2844, %v3075
          %v3077 = vpop.f32.mrb[0].mxu0
          %3078 = vdwg.mxu0
          %3079 = vmatprep.subr.bf16.mxu0 0
          %3080 = vmatpush1.bf16.msra.mxu0 %v2990
          %3081 = vmatprep.subr.bf16.mxu0 0
          %3082 = vmatpush1.bf16.msra.mxu0 %v2991
          %3083 = vmatprep.subr.bf16.mxu0 0
          %3084 = vmatpush1.bf16.msra.mxu0 %v2992
          %3085 = vmatprep.subr.bf16.mxu0 0
          %3086 = vmatpush1.bf16.msra.mxu0 %v2993
          %3087 = vmatprep.subr.bf16.mxu0 0
          %3088 = vmatpush1.bf16.msra.mxu0 %v2994
          %3089 = vmatprep.subr.bf16.mxu0 0
          %3090 = vmatpush1.bf16.msra.mxu0 %v2995
          %3091 = vmatprep.subr.bf16.mxu0 0
          %3092 = vmatpush1.bf16.msra.mxu0 %v2996
          %3093 = vmatprep.subr.bf16.mxu0 0
          %3094 = vmatpush1.bf16.msra.mxu0 %v2997
          %3095 = vmatprep.subr.bf16.mxu0 0
          %3096 = vmatpush1.bf16.msra.mxu0 %v2998
          %3097 = vmatprep.subr.bf16.mxu0 0
          %3098 = vmatpush1.bf16.msra.mxu0 %v2999
          %3099 = vmatprep.subr.bf16.mxu0 0
          %3100 = vmatpush1.bf16.msra.mxu0 %v3000
          %3101 = vmatprep.subr.bf16.mxu0 0
          %3102 = vmatpush1.bf16.msra.mxu0 %v3001
          %3103 = vmatprep.subr.bf16.mxu0 0
          %3104 = vmatpush1.bf16.msra.mxu0 %v3002
          %3105 = vmatprep.subr.bf16.mxu0 0
          %3106 = vmatpush1.bf16.msra.mxu0 %v3003
          %3107 = vmatprep.subr.bf16.mxu0 0
          %3108 = vmatpush1.bf16.msra.mxu0 %v3004
          %3109 = vmatprep.subr.bf16.mxu0 0
          %3110 = vmatpush1.bf16.msra.mxu0 %v3005
          %3111 = vmatprep.mubr.bf16.mxu0 %v2774
          %3112 = vmatmul.mubr.bf16.gmra.mrb[0].mxu0 %v2773
          %v3113 = vpop.f32.mrb[0].mxu0
          %v3114 = vadd.f32 %v3073, %v3113
          %v3115 = vpop.f32.mrb[0].mxu0
          %v3116 = vpop.f32.mrb[0].mxu0
          %v3117 = vadd.f32 %v3076, %v3116
          %v3118 = vpop.f32.mrb[0].mxu0
          %3119 = vdwg.mxu0
          %v3120 = vadd.f32 %v2460, %v3114
          %v3121 = vadd.f32 %v2461, %v3117
          %v3122 = vld [vmem:[%s869] sm:$0x1]
          %v3123 = vld [vmem:[%s877] sm:$0x1]
          %3124 = vadd.xlane.f32.xlu0 %v3120
          %v3125 = vpop.xlane.xlu0 %3124
          %3126 = vadd.xlane.f32.xlu0 %v3121
          %v3127 = vpop.xlane.xlu0 %3126
          %v3128 = vmul.f32 %v3125, %v2427
          %v3129 = vmul.f32 %v3127, %v2427
          %v3130 = vsub.f32 %v3120, %v3128
          %v3131 = vsub.f32 %v3121, %v3129
          %v3132 = vmul.f32 %v3130, %v3130
          %v3133 = vmul.f32 %v3131, %v3131
          %3134 = vadd.xlane.f32.xlu0 %v3132
          %v3135 = vpop.xlane.xlu0 %3134
          %3136 = vadd.xlane.f32.xlu0 %v3133
          %v3137 = vpop.xlane.xlu0 %3136
          %v3138 = vmul.f32 %v3135, %v2427
          %v3139 = vmul.f32 %v3137, %v2427
          %v3140 = vadd.f32 %v3138, 1e-05
          %v3141 = vadd.f32 %v3139, 1e-05
          %v3142 = vrsqrt.pop %v3140
          %v3143 = vrsqrt.pop %v3141
          %v3144 = vmul.f32 %v3130, %v3142
          %v3145 = vmul.f32 %v3131, %v3143
          %v3147 = vlaneseq
          %v3148 = vshrl.u32 %v3147, 7
          %v3149 = vsub.s32 0, %v3148
          %v3150 = vrot.slane %v3122, %v3149
          %v3152 = vmul.f32 %v3144, %v3150
          %v3153 = vmul.f32 %v3145, %v3150
          %v3155 = vlaneseq
          %v3156 = vshrl.u32 %v3155, 7
          %v3157 = vsub.s32 0, %v3156
          %v3158 = vrot.slane %v3123, %v3157
          %v3160 = vadd.f32 %v3152, %v3158
          %v3161 = vadd.f32 %v3153, %v3158
          %3162 = vst [vmem:[#allocation2] sm:$0xff] %v3160
          %3163 = vst [vmem:[#allocation2 + $0x8] sm:$0xff] %v3161
        $region140: #{crn_dual_forward.2} parent=79 // pred_fallthru
          _
        %p3164 = scmp.eq.s32.totalorder %s52, 5
        // Predicated region
        $region141: #{crn_dual_forward.2} parent=79 // pred_check
          %p3165 = pneg %p3164
        $region142: #{crn_dual_forward.2} parent=79 // pred_check_branch
          %3167 = sbr.rel (%p3165) target = $region144
        $region143: #{crn_dual_forward.2} parent=79 // pred_region
          %v3168 = vld [vmem:[#allocation2] sm:$0xff]
          %v3169 = vld [vmem:[#allocation2 + $0x8] sm:$0xff]
          %v3170 = vld [vmem:[#allocation22] sm:$0xf]
          %v3171 = vld [vmem:[%s14] sm:$0xff]
          %v3172 = vpack.c.bf16 %v3168, %v3168
          %3174 = vset.pattern.permute.xlu0 0
          %3175 = vperm.xlu0 %3174, %v3171
          %v3176 = vpop.permute.xlu0 %3175
          %3178 = vmatprep.subr.bf16.mxu0 0
          %3179 = vmatpush1.bf16.xpose.msra.mxu0 %v3172
          %3180 = vmatprep.subr.bf16.mxu0 0
          %3181 = vmatpush1.bf16.xpose.msra.mxu0 0
          %3182 = vmatprep.subr.bf16.mxu0 0
          %3183 = vmatpush1.bf16.xpose.msra.mxu0 0
          %3184 = vmatprep.subr.bf16.mxu0 0
          %3185 = vmatpush1.bf16.xpose.msra.mxu0 0
          %3186 = vmatprep.subr.bf16.mxu0 0
          %3187 = vmatpush1.bf16.xpose.msra.mxu0 0
          %3188 = vmatprep.subr.bf16.mxu0 0
          %3189 = vmatpush1.bf16.xpose.msra.mxu0 0
          %3190 = vmatprep.subr.bf16.mxu0 0
          %3191 = vmatpush1.bf16.xpose.msra.mxu0 0
          %3192 = vmatprep.subr.bf16.mxu0 0
          %3193 = vmatpush1.bf16.xpose.msra.mxu0 0
          %3194 = vmatprep.subr.bf16.mxu0 0
          %3195 = vmatpush1.bf16.xpose.msra.mxu0 0
          %3196 = vmatprep.subr.bf16.mxu0 0
          %3197 = vmatpush1.bf16.xpose.msra.mxu0 0
          %3198 = vmatprep.subr.bf16.mxu0 0
          %3199 = vmatpush1.bf16.xpose.msra.mxu0 0
          %3200 = vmatprep.subr.bf16.mxu0 0
          %3201 = vmatpush1.bf16.xpose.msra.mxu0 0
          %3202 = vmatprep.subr.bf16.mxu0 0
          %3203 = vmatpush1.bf16.xpose.msra.mxu0 0
          %3204 = vmatprep.subr.bf16.mxu0 0
          %3205 = vmatpush1.bf16.xpose.msra.mxu0 0
          %3206 = vmatprep.subr.bf16.mxu0 0
          %3207 = vmatpush1.bf16.xpose.msra.mxu0 0
          %3208 = vmatprep.subr.bf16.mxu0 0
          %3209 = vmatpush1.bf16.xpose.msra.mxu0 0
          %3210 = vmatprep.mubr.bf16.mxu0 0
          %3211 = vmatmul.mubr.bf16.gmra.mrb[0].mxu0 %v3170
          %v3212 = vpop.f32.mrb[0].mxu0
          %v3213 = vadd.f32 %v3176, %v3212
          %v3214 = vpop.f32.mrb[0].mxu0
          %v3215 = vpop.f32.mrb[0].mxu0
          %v3216 = vpop.f32.mrb[0].mxu0
          %3217 = vdwg.mxu0
          %v3218 = vpack.c.bf16 %v3169, %v3169
          %3219 = vmatprep.subr.bf16.mxu0 0
          %3220 = vmatpush1.bf16.xpose.msra.mxu0 %v3218
          %3221 = vmatprep.subr.bf16.mxu0 0
          %3222 = vmatpush1.bf16.xpose.msra.mxu0 0
          %3223 = vmatprep.subr.bf16.mxu0 0
          %3224 = vmatpush1.bf16.xpose.msra.mxu0 0
          %3225 = vmatprep.subr.bf16.mxu0 0
          %3226 = vmatpush1.bf16.xpose.msra.mxu0 0
          %3227 = vmatprep.subr.bf16.mxu0 0
          %3228 = vmatpush1.bf16.xpose.msra.mxu0 0
          %3229 = vmatprep.subr.bf16.mxu0 0
          %3230 = vmatpush1.bf16.xpose.msra.mxu0 0
          %3231 = vmatprep.subr.bf16.mxu0 0
          %3232 = vmatpush1.bf16.xpose.msra.mxu0 0
          %3233 = vmatprep.subr.bf16.mxu0 0
          %3234 = vmatpush1.bf16.xpose.msra.mxu0 0
          %3235 = vmatprep.subr.bf16.mxu0 0
          %3236 = vmatpush1.bf16.xpose.msra.mxu0 0
          %3237 = vmatprep.subr.bf16.mxu0 0
          %3238 = vmatpush1.bf16.xpose.msra.mxu0 0
          %3239 = vmatprep.subr.bf16.mxu0 0
          %3240 = vmatpush1.bf16.xpose.msra.mxu0 0
          %3241 = vmatprep.subr.bf16.mxu0 0
          %3242 = vmatpush1.bf16.xpose.msra.mxu0 0
          %3243 = vmatprep.subr.bf16.mxu0 0
          %3244 = vmatpush1.bf16.xpose.msra.mxu0 0
          %3245 = vmatprep.subr.bf16.mxu0 0
          %3246 = vmatpush1.bf16.xpose.msra.mxu0 0
          %3247 = vmatprep.subr.bf16.mxu0 0
          %3248 = vmatpush1.bf16.xpose.msra.mxu0 0
          %3249 = vmatprep.subr.bf16.mxu0 0
          %3250 = vmatpush1.bf16.xpose.msra.mxu0 0
          %3251 = vmatprep.mubr.bf16.mxu0 0
          %3252 = vmatmul.mubr.bf16.gmra.mrb[0].mxu0 %v3170
          %v3253 = vpop.f32.mrb[0].mxu0
          %v3254 = vadd.f32 %v3176, %v3253
          %v3255 = vpop.f32.mrb[0].mxu0
          %v3256 = vpop.f32.mrb[0].mxu0
          %v3257 = vpop.f32.mrb[0].mxu0
          %3258 = vdwg.mxu0
          %v3259 = vmax.f32 %v3213, %v3254
          %v3260 = vsub.f32 %v3213, %v3259
          %v3261 = vmul.f32 %v3260, 1.442695
          %v3262 = vpow.pop %v3261
          %v3263 = vsub.f32 %v3254, %v3259
          %v3264 = vmul.f32 %v3263, 1.442695
          %v3265 = vpow.pop %v3264
          %v3266 = vadd.f32 %v3262, %v3265
          %v3267 = vrcp.pop %v3266
          %v3268 = vmul.f32 1.0, %v3267
          %v3269 = vmul.f32 %v3262, %v3268
          %v3270 = vpack.c.bf16 %v3269, %v3269
          %vm3271 = vcmask 64512
          %v3273 = vsel %vm3271, %v3270, 0
          %vm3275 = vcmask 1043456
          %v3277 = vsel %vm3275, %v3172, 0
          %3279 = vmatprep.subr.bf16.mxu0 0
          %3280 = vmatpush1.bf16.msra.mxu0 %v3277
          %3281 = vmatprep.subr.bf16.mxu0 0
          %3282 = vmatpush1.bf16.msra.mxu0 0
          %3283 = vmatprep.subr.bf16.mxu0 0
          %3284 = vmatpush1.bf16.msra.mxu0 0
          %3285 = vmatprep.subr.bf16.mxu0 0
          %3286 = vmatpush1.bf16.msra.mxu0 0
          %3287 = vmatprep.subr.bf16.mxu0 0
          %3288 = vmatpush1.bf16.msra.mxu0 0
          %3289 = vmatprep.subr.bf16.mxu0 0
          %3290 = vmatpush1.bf16.msra.mxu0 0
          %3291 = vmatprep.subr.bf16.mxu0 0
          %3292 = vmatpush1.bf16.msra.mxu0 0
          %3293 = vmatprep.subr.bf16.mxu0 0
          %3294 = vmatpush1.bf16.msra.mxu0 0
          %3295 = vmatprep.subr.bf16.mxu0 0
          %3296 = vmatpush1.bf16.msra.mxu0 0
          %3297 = vmatprep.subr.bf16.mxu0 0
          %3298 = vmatpush1.bf16.msra.mxu0 0
          %3299 = vmatprep.subr.bf16.mxu0 0
          %3300 = vmatpush1.bf16.msra.mxu0 0
          %3301 = vmatprep.subr.bf16.mxu0 0
          %3302 = vmatpush1.bf16.msra.mxu0 0
          %3303 = vmatprep.subr.bf16.mxu0 0
          %3304 = vmatpush1.bf16.msra.mxu0 0
          %3305 = vmatprep.subr.bf16.mxu0 0
          %3306 = vmatpush1.bf16.msra.mxu0 0
          %3307 = vmatprep.subr.bf16.mxu0 0
          %3308 = vmatpush1.bf16.msra.mxu0 0
          %3309 = vmatprep.subr.bf16.mxu0 0
          %3310 = vmatpush1.bf16.msra.mxu0 0
          %3311 = vmatprep.mubr.bf16.mxu0 0
          %3312 = vmatmul.mubr.bf16.gmra.mrb[0].mxu0 %v3273
          %v3313 = vpop.f32.mrb[0].mxu0
          %v3314 = vadd.f32 0.0, %v3313
          %v3315 = vpop.f32.mrb[0].mxu0
          %v3316 = vpop.f32.mrb[0].mxu0
          %v3317 = vpop.f32.mrb[0].mxu0
          %3318 = vdwg.mxu0
          %3319 = vst [vmem:[%s991] sm:$0xff] %v3314
          %v3320 = vmul.f32 %v3265, %v3268
          %v3321 = vpack.c.bf16 %v3320, %v3320
          %v3323 = vsel %vm3271, %v3321, 0
          %v3326 = vsel %vm3275, %v3218, 0
          %3328 = vmatprep.subr.bf16.mxu0 0
          %3329 = vmatpush1.bf16.msra.mxu0 %v3326
          %3330 = vmatprep.subr.bf16.mxu0 0
          %3331 = vmatpush1.bf16.msra.mxu0 0
          %3332 = vmatprep.subr.bf16.mxu0 0
          %3333 = vmatpush1.bf16.msra.mxu0 0
          %3334 = vmatprep.subr.bf16.mxu0 0
          %3335 = vmatpush1.bf16.msra.mxu0 0
          %3336 = vmatprep.subr.bf16.mxu0 0
          %3337 = vmatpush1.bf16.msra.mxu0 0
          %3338 = vmatprep.subr.bf16.mxu0 0
          %3339 = vmatpush1.bf16.msra.mxu0 0
          %3340 = vmatprep.subr.bf16.mxu0 0
          %3341 = vmatpush1.bf16.msra.mxu0 0
          %3342 = vmatprep.subr.bf16.mxu0 0
          %3343 = vmatpush1.bf16.msra.mxu0 0
          %3344 = vmatprep.subr.bf16.mxu0 0
          %3345 = vmatpush1.bf16.msra.mxu0 0
          %3346 = vmatprep.subr.bf16.mxu0 0
          %3347 = vmatpush1.bf16.msra.mxu0 0
          %3348 = vmatprep.subr.bf16.mxu0 0
          %3349 = vmatpush1.bf16.msra.mxu0 0
          %3350 = vmatprep.subr.bf16.mxu0 0
          %3351 = vmatpush1.bf16.msra.mxu0 0
          %3352 = vmatprep.subr.bf16.mxu0 0
          %3353 = vmatpush1.bf16.msra.mxu0 0
          %3354 = vmatprep.subr.bf16.mxu0 0
          %3355 = vmatpush1.bf16.msra.mxu0 0
          %3356 = vmatprep.subr.bf16.mxu0 0
          %3357 = vmatpush1.bf16.msra.mxu0 0
          %3358 = vmatprep.subr.bf16.mxu0 0
          %3359 = vmatpush1.bf16.msra.mxu0 0
          %3360 = vmatprep.mubr.bf16.mxu0 0
          %3361 = vmatmul.mubr.bf16.gmra.mrb[0].mxu0 %v3323
          %v3362 = vpop.f32.mrb[0].mxu0
          %v3363 = vadd.f32 0.0, %v3362
          %v3364 = vpop.f32.mrb[0].mxu0
          %v3365 = vpop.f32.mrb[0].mxu0
          %v3366 = vpop.f32.mrb[0].mxu0
          %3367 = vdwg.mxu0
          %s3368 = scalar_lea.vmem %s991, 8
          %3369 = vst [vmem:[%s3368] sm:$0xff] %v3363
        $region144: #{crn_dual_forward.2} parent=79 // pred_fallthru
          _
        %p3370 = scmp.lt.s32.totalorder %s51, 1
        %s3371 = scalar_select %p3370, %s51, 1
        %s3372 = smul.addr %s3371, 2
        %s3373 = smul.addr %s3372, 8
        %s3374 = scalar_lea.vmem %s15, %s3373
        // Predicated region
        $region145: #{crn_dual_forward.2} parent=79 // pred_check
          %p3375 = pneg %p481
        $region146: #{crn_dual_forward.2} parent=79 // pred_check_branch
          %3377 = sbr.rel (%p3375) target = $region148
        $region147: #{crn_dual_forward.2} parent=79 // pred_region
          _
        $region148: #{crn_dual_forward.2} parent=79 // pred_fallthru
          _
      $region80: #{crn_dual_forward.2} parent=5 // pred_fallthru
        _
      %p3378 = scmp.le.s32.totalorder 2, %s42
      // Predicated region
      $region149: #{crn_dual_forward.2} parent=5 // pred_check
        %p3379 = pneg %p3378
      $region150: #{crn_dual_forward.2} parent=5 // pred_check_branch
        %3381 = sbr.rel (%p3379) target = $region152
      $region151: #{crn_dual_forward.2} parent=5 // pred_region
        %s3382 = ssub.s32 %s42, 2
        // Predicated region
        $region153: #{crn_dual_forward.2} parent=151 // pred_check
          %p3383 = pneg %p487
        $region154: #{crn_dual_forward.2} parent=151 // pred_check_branch
          %3385 = sbr.rel (%p3383) target = $region156
        $region155: #{crn_dual_forward.2} parent=151 // pred_region
          %p3386 = scmp.lt.s32.totalorder %s53, 1
          %s3387 = scalar_select %p3386, %s53, 1
          %s3388 = smul.addr %s3387, 2
          %s3389 = smul.addr %s3388, 8
          %s3390 = scalar_lea.vmem %s15, %s3389
        $region156: #{crn_dual_forward.2} parent=151 // pred_fallthru
          _
      $region152: #{crn_dual_forward.2} parent=5 // pred_fallthru
        _
    $region6: #{crn_dual_forward.2} parent=1 // loop_footer
      %s46 = sadd.s32 1, %s42
    $region7: #{crn_dual_forward.2} parent=1 // loop_footer_branch
      %41 = sbr.rel target = $region3
    $region8: #{crn_dual_forward.2} parent=1 // loop_exit
      _
    %3391 = vsyncpa [#allocation4], 1
    %s3392 = scalar_lea.sflag [#allocation4], 1
    %3393 = vsyncpa %s3392, 1
    %3394 = vsyncpa [#allocation6], 1
    %s3395 = scalar_lea.sflag [#allocation6], 1
    %3396 = vsyncpa %s3395, 1
    %3397 = vsyncpa [#allocation9], 1
    %s3398 = scalar_lea.sflag [#allocation9], 1
    %3399 = vsyncpa %s3398, 1
    %3400 = vsyncpa [#allocation12], 1
    %s3401 = scalar_lea.sflag [#allocation12], 1
    %3402 = vsyncpa %s3401, 1
    %3403 = vsyncpa [#allocation15], 1
    %s3404 = scalar_lea.sflag [#allocation15], 1
    %3405 = vsyncpa %s3404, 1
    %3406 = vsyncpa [#allocation18], 1
    %s3407 = scalar_lea.sflag [#allocation18], 1
    %3408 = vsyncpa %s3407, 1
    %3409 = vsyncpa [#allocation21], 1
    %s3410 = scalar_lea.sflag [#allocation21], 1
    %3411 = vsyncpa %s3410, 1

</llo_original>
